<compile_context>
chip_gen: v7x
topology: tpu7x:2x2x1
jax: 0.10.0
libtpu: 0.0.40
codegen_flags: <defaults>
</compile_context>

<pallas_src>
import functools

import jax
import jax.numpy as jnp
import numpy as np
from jax import lax
from jax.experimental import pallas as pl
from jax.experimental.pallas import tpu as pltpu


def _sep_conv3(x_rows, wa, wb, G, H, W):
    """Factorized (1x3 then 3x1, padding=1, stride=1) conv as 6 accumulated MXU matmuls.

    x_rows: (G*H*W, Cin) f32, row-major over (g, h, w), channels on lanes.
    wa:     (3, Cin, R)  bf16 -- 1x3 conv along W, tap order (w-1, w, w+1).
    wb:     (3, R, Cout) bf16 -- 3x1 conv along H, tap order (h-1, h, h+1), 1/rate folded.

    The flattened-roll wrap rows (previous row's last pixel / next row's first
    pixel, including cross-sample wraps when G > 1) coincide exactly with the
    masked w==0 / w==W-1 (resp. h==0 / h==H-1) positions, so padding=1 and the
    per-step sample batching are both exact.
    """
    rows, Cin = x_rows.shape
    R = wa.shape[-1]
    bf16, f32 = jnp.bfloat16, jnp.float32

    # ---- 1x3 along W: +-1 in w == +-1 flattened row. One iota, two compares.
    w_idx = lax.broadcasted_iota(jnp.int32, (G, H, W, Cin), 2).reshape(rows, Cin)
    x_m1 = jnp.where(w_idx > 0, pltpu.roll(x_rows, shift=1, axis=0), 0.0)
    x_p1 = jnp.where(w_idx < W - 1, pltpu.roll(x_rows, shift=rows - 1, axis=0), 0.0)
    t = (jnp.dot(x_m1.astype(bf16), wa[0], preferred_element_type=f32)
         + jnp.dot(x_rows.astype(bf16), wa[1], preferred_element_type=f32)
         + jnp.dot(x_p1.astype(bf16), wa[2], preferred_element_type=f32))    # (rows, R) f32

    # ---- 3x1 along H: +-1 in h == +-W flattened rows.
    h_idx = lax.broadcasted_iota(jnp.int32, (G, H, W, R), 1).reshape(rows, R)
    t_m1 = jnp.where(h_idx > 0, pltpu.roll(t, shift=W, axis=0), 0.0)
    t_p1 = jnp.where(h_idx < H - 1, pltpu.roll(t, shift=rows - W, axis=0), 0.0)
    return (jnp.dot(t_m1.astype(bf16), wb[0], preferred_element_type=f32)
            + jnp.dot(t.astype(bf16), wb[1], preferred_element_type=f32)
            + jnp.dot(t_p1.astype(bf16), wb[2], preferred_element_type=f32))  # (rows, Cout) f32


def _partial_stats(y):
    # Per-channel (sum, sum-of-squares) for exact cross-tile BN batch stats,
    # computed on the f32 value (before any bf16 downcast of the stored output).
    s = jnp.sum(y, axis=0, keepdims=True)
    ss = jnp.sum(y * y, axis=0, keepdims=True)
    return jnp.concatenate([s, ss], axis=0)            # (2, C) f32


def _conv1_stats_kernel(G, H, W, x_ref, wa_ref, wb_ref, y_ref, st_ref):
    y = _sep_conv3(x_ref[...], wa_ref[...], wb_ref[...], G, H, W)   # f32
    st_ref[0] = _partial_stats(y)
    y_ref[...] = y.astype(y_ref.dtype)                 # bf16 store (half the bytes)


def _bn_relu_conv2_stats_kernel(G, H, W, y1_ref, sc_ref, bi_ref, wa_ref, wb_ref,
                                y_ref, st_ref):
    h = jnp.maximum(
        y1_ref[...].astype(jnp.float32) * sc_ref[...] + bi_ref[...], 0.0)   # fused BN1+ReLU, f32
    y = _sep_conv3(h, wa_ref[...], wb_ref[...], G, H, W)
    st_ref[0] = _partial_stats(y)
    y_ref[...] = y.astype(y_ref.dtype)                 # bf16 store


def _bn_residual_relu_kernel(y2_ref, x_ref, sc_ref, bi_ref, out_ref):
    y2 = y2_ref[...].astype(jnp.float32)
    out_ref[...] = jnp.maximum(y2 * sc_ref[...] + bi_ref[...] + x_ref[...], 0.0)


def _fold_bn(stats, gamma, beta, count, eps):
    """Reduce per-step (sum, sumsq) partials and fold BN into one scale/bias."""
    s = jnp.sum(stats[:, 0, :], axis=0)
    ss = jnp.sum(stats[:, 1, :], axis=0)
    mean = s / count
    # TODO(synk): E[x^2]-E[x]^2 in f32 is cancellation-prone for huge, strongly
    # off-center batches; switch to a Welford-style merge of per-step moments
    # if that regime matters. The clamp keeps rsqrt finite.
    var = jnp.maximum(ss / count - mean * mean, 0.0)
    scale = gamma.astype(jnp.float32) * lax.rsqrt(var + eps)
    bias = beta.astype(jnp.float32) - mean * scale
    return scale.reshape(1, -1), bias.reshape(1, -1)


def _pick_group(N, HW, C, R, budget_bytes):
    """Largest divisor-of-N sample group whose per-step VMEM footprint (double-
    buffered in/out + conv temporaries, ~40 B/elem) fits the budget, while
    keeping >=2 grid steps so both TensorCores get work on v7x."""
    per_sample = HW * (40 * C + 12 * R)
    best = 1
    for g in range(1, N + 1):
        if N % g:
            continue
        if g * per_sample > budget_bytes:
            break
        if N >= 2 and N // g < 2:
            continue
        best = g
    return best


def meta_basic_block_forward_nhwc(x_nhwc, params, rate=1.0, eps=1e-5,
                                  vmem_budget_bytes=20 * 1024 * 1024):
    """x_nhwc: (N, H, W, C) float32. Returns (N, H, W, C) float32.

    NHWC is the native layout: a full network should stay NHWC between blocks
    (no per-block NCHW<->NHWC transposes -- those cost a full HBM round trip).
    """
    N, H, W, C = x_nhwc.shape
    HW = H * W
    R = params["conv1_v"].shape[0]
    x2 = x_nhwc.reshape(N * HW, C).astype(jnp.float32)   # pure flatten, no transpose

    inv_rate = 1.0 / rate
    # Re-pack PyTorch conv weights into per-tap matmul operands (bf16 for the
    # MXU); fold the Scaler's 1/rate into the second (3x1) conv of each pair
    # (the conv is linear, so this is exact).
    #   conv*_v: (R, C, 1, 3) -> (3, C, R)    conv*_u: (C, R, 3, 1) -> (3, R, C)
    w1a = jnp.transpose(params["conv1_v"][:, :, 0, :], (2, 1, 0)).astype(jnp.bfloat16)
    w1b = (jnp.transpose(params["conv1_u"][:, :, :, 0], (2, 1, 0)) * inv_rate).astype(jnp.bfloat16)
    w2a = jnp.transpose(params["conv2_v"][:, :, 0, :], (2, 1, 0)).astype(jnp.bfloat16)
    w2b = (jnp.transpose(params["conv2_u"][:, :, :, 0], (2, 1, 0)) * inv_rate).astype(jnp.bfloat16)

    G = _pick_group(N, HW, C, R, vmem_budget_bytes)
    steps = N // G
    rows = G * HW

    # 32 MiB sits inside the scoped default on v5e/v6e/v7x (v7x has 64 MiB/TC
    # physical). On v5e/v6e (128 MiB physical) raise this together with
    # vmem_budget_bytes toward 64-96 MiB when enlarging G.
    cparams = pltpu.CompilerParams(
        dimension_semantics=("parallel",),           # shard grid steps across TCs
        vmem_limit_bytes=32 * 1024 * 1024)

    act_spec = pl.BlockSpec((rows, C), lambda i: (i, 0))
    st_spec = pl.BlockSpec((1, 2, C), lambda i: (i, 0, 0))
    vec_spec = pl.BlockSpec((1, C), lambda i: (0, 0))
    wa_spec = pl.BlockSpec((3, C, R), lambda i: (0, 0, 0))
    wb_spec = pl.BlockSpec((3, R, C), lambda i: (0, 0, 0))

    nelem = N * HW * C
    conv_flops = 12 * N * HW * C * R                    # 6 accumulated matmuls / pass
    wbytes = (3 * C * R + 3 * R * C) * 2
    stbytes = steps * 2 * C * 4
    ce1 = pl.CostEstimate(flops=conv_flops + 3 * nelem, transcendentals=0,
                          bytes_accessed=nelem * (4 + 2) + wbytes + stbytes)
    ce2 = pl.CostEstimate(flops=conv_flops + 6 * nelem, transcendentals=0,
                          bytes_accessed=nelem * (2 + 2) + wbytes + stbytes)
    ce3 = pl.CostEstimate(flops=4 * nelem, transcendentals=0,
                          bytes_accessed=nelem * (2 + 4 + 4))

    # Pass 1: y1 = FactorizedConv1(x)/rate (bf16 store); per-step BN1 partials.
    y1, st1 = pl.pallas_call(
        functools.partial(_conv1_stats_kernel, G, H, W),
        grid=(steps,),
        in_specs=[act_spec, wa_spec, wb_spec],
        out_specs=[act_spec, st_spec],
        out_shape=[jax.ShapeDtypeStruct((N * HW, C), jnp.bfloat16),
                   jax.ShapeDtypeStruct((steps, 2, C), jnp.float32)],
        compiler_params=cparams,
        cost_estimate=ce1,
    )(x2, w1a, w1b)
    sc1, bi1 = _fold_bn(st1, params["bn1_gamma"], params["bn1_beta"], N * HW, eps)

    # Pass 2: h = ReLU(BN1(y1)); y2 = FactorizedConv2(h)/rate (bf16, aliases y1's
    # buffer); per-step BN2 partials.
    y2, st2 = pl.pallas_call(
        functools.partial(_bn_relu_conv2_stats_kernel, G, H, W),
        grid=(steps,),
        in_specs=[act_spec, vec_spec, vec_spec, wa_spec, wb_spec],
        out_specs=[act_spec, st_spec],
        out_shape=[jax.ShapeDtypeStruct((N * HW, C), jnp.bfloat16),
                   jax.ShapeDtypeStruct((steps, 2, C), jnp.float32)],
        compiler_params=cparams,
        input_output_aliases={0: 0},                  # reuse y1's HBM buffer for y2
        cost_estimate=ce2,
    )(y1, sc1, bi1, w2a, w2b)
    sc2, bi2 = _fold_bn(st2, params["bn2_gamma"], params["bn2_beta"], N * HW, eps)

    # Pass 3: out = ReLU(BN2(y2) + x)   (identity residual: stride=1, no downsample)
    out = pl.pallas_call(
        _bn_residual_relu_kernel,
        grid=(steps,),
        in_specs=[act_spec, act_spec, vec_spec, vec_spec],
        out_specs=act_spec,
        out_shape=jax.ShapeDtypeStruct((N * HW, C), jnp.float32),
        compiler_params=cparams,
        cost_estimate=ce3,
    )(y2, x2, sc2, bi2)
    return out.reshape(N, H, W, C)


def _reference_forward(x, params, rate):
    """Pure-JAX NCHW f32 (HIGHEST precision) reference mirroring the PyTorch forward."""
    eps = 1e-5

    def conv(inp, w, pad):
        return lax.conv_general_dilated(
            inp, w, window_strides=(1, 1), padding=pad,
            dimension_numbers=("NCHW", "OIHW", "NCHW"),
            precision=lax.Precision.HIGHEST)

    def bn(inp, g, b):
        mu = jnp.mean(inp, axis=(0, 2, 3), keepdims=True)
        var = jnp.mean((inp - mu) ** 2, axis=(0, 2, 3), keepdims=True)
        return ((inp - mu) / jnp.sqrt(var + eps)) * g.reshape(1, -1, 1, 1) \
            + b.reshape(1, -1, 1, 1)

    h = conv(x, params["conv1_v"], [(0, 0), (1, 1)])
    h = conv(h, params["conv1_u"], [(1, 1), (0, 0)])
    h = h / rate
    h = bn(h, params["bn1_gamma"], params["bn1_beta"])
    h = jnp.maximum(h, 0.0)
    h = conv(h, params["conv2_v"], [(0, 0), (1, 1)])
    h = conv(h, params["conv2_u"], [(1, 1), (0, 0)])
    h = h / rate
    h = bn(h, params["bn2_gamma"], params["bn2_beta"])
    return jnp.maximum(h + x, 0.0)


if __name__ == "__main__":
    key = jax.random.PRNGKey(0)
    N, C, H, W = 2, 4, 16, 16      # inplanes = planes = 4 (identity residual)
    R = 2                          # n_basis (low rank of the factorized conv)
    rate = 1.0                     # Scaler rate (module default)

    ks = jax.random.split(key, 9)
    x_nchw = jax.random.normal(ks[0], (N, C, H, W), jnp.float32)
    params = {
        # FactorizedConv1: Conv2d(C,R,(1,3)) then Conv2d(R,C,(3,1)), bias=False
        "conv1_v": 0.3 * jax.random.normal(ks[1], (R, C, 1, 3), jnp.float32),
        "conv1_u": 0.3 * jax.random.normal(ks[2], (C, R, 3, 1), jnp.float32),
        # FactorizedConv2
        "conv2_v": 0.3 * jax.random.normal(ks[3], (R, C, 1, 3), jnp.float32),
        "conv2_u": 0.3 * jax.random.normal(ks[4], (C, R, 3, 1), jnp.float32),
        # BatchNorm affine params
        "bn1_gamma": 1.0 + 0.1 * jax.random.normal(ks[5], (C,), jnp.float32),
        "bn1_beta": 0.1 * jax.random.normal(ks[6], (C,), jnp.float32),
        "bn2_gamma": 1.0 + 0.1 * jax.random.normal(ks[7], (C,), jnp.float32),
        "bn2_beta": 0.1 * jax.random.normal(ks[8], (C,), jnp.float32),
    }

    # Harness-only relayout for comparison against the NCHW reference; a full
    # NHWC network never pays these transposes per block.
    x_nhwc = jnp.transpose(x_nchw, (0, 2, 3, 1))
    fwd = jax.jit(lambda x_: meta_basic_block_forward_nhwc(x_, params, rate=rate))
    out_nhwc = jax.block_until_ready(fwd(x_nhwc))
    out_nchw = jnp.transpose(out_nhwc, (0, 3, 1, 2))

    ref = jax.block_until_ready(_reference_forward(x_nchw, params, rate))
    # Kernel uses bf16 MXU operands AND bf16 inter-pass intermediates; the
    # reference is f32/HIGHEST — tolerance sized for bf16 rounding through
    # 4 matmuls, 2 bf16 activation round-trips and 2 batch-stat BN renorms.
    np.testing.assert_allclose(np.asarray(out_nchw), np.asarray(ref),
                               rtol=3e-2, atol=3e-2)
    print("KERNEL_OK")
</pallas_src>

<mosaic_0001>
module attributes {stable_mosaic.version = 11 : i64} {
  func.func @_conv1_stats_kernel(%arg0: i32, %arg1: memref<256x4xf32, #tpu.memory_space<vmem>>, %arg2: memref<3x4x2xbf16, #tpu.memory_space<vmem>>, %arg3: memref<3x2x4xbf16, #tpu.memory_space<vmem>>, %arg4: memref<256x4xbf16, #tpu.memory_space<vmem>>, %arg5: memref<1x2x4xf32, #tpu.memory_space<vmem>>) attributes {dimension_semantics = [#tpu.dimension_semantics<parallel>], iteration_bounds = array<i64: 2>, scalar_prefetch = 0 : i64, scratch_operands = 0 : i64, tpu.core_type = #tpu.core_type<tc>, window_params = [{transform_indices = @transform_0, window_bounds = array<i64: 256, 4>}, {pipeline_mode = #tpu.pipeline_mode<synchronous>, transform_indices = @transform_1, window_bounds = array<i64: 3, 4, 2>}, {pipeline_mode = #tpu.pipeline_mode<synchronous>, transform_indices = @transform_2, window_bounds = array<i64: 3, 2, 4>}, {transform_indices = @transform_3, window_bounds = array<i64: 256, 4>}, {transform_indices = @transform_4, window_bounds = array<i64: 1, 2, 4>}]} {
    %c0 = arith.constant 0 : index
    %c0_0 = arith.constant 0 : index
    %0 = vector.load %arg1[%c0, %c0_0] : memref<256x4xf32, #tpu.memory_space<vmem>>, vector<256x4xf32>
    %c0_1 = arith.constant 0 : index
    %c0_2 = arith.constant 0 : index
    %c0_3 = arith.constant 0 : index
    %1 = vector.load %arg2[%c0_1, %c0_2, %c0_3] : memref<3x4x2xbf16, #tpu.memory_space<vmem>>, vector<3x4x2xbf16>
    %c0_4 = arith.constant 0 : index
    %c0_5 = arith.constant 0 : index
    %c0_6 = arith.constant 0 : index
    %2 = vector.load %arg3[%c0_4, %c0_5, %c0_6] : memref<3x2x4xbf16, #tpu.memory_space<vmem>>, vector<3x2x4xbf16>
    %3 = tpu.iota {dimensions = array<i32: 2>} : vector<1x16x16x4xi32>
    %4 = vector.shape_cast %3 : vector<1x16x16x4xi32> to vector<256x4xi32>
    %c0_i32 = arith.constant 0 : i32
    %5 = vector.broadcast %c0_i32 : i32 to vector<256x4xi32>
    %6 = arith.cmpi sgt, %4, %5 : vector<256x4xi32>
    %c1_i32 = arith.constant 1 : i32
    %7 = tpu.dynamic_rotate %0 by %c1_i32 dim 0 : vector<256x4xf32>, i32 -> vector<256x4xf32>
    %cst = arith.constant 0.000000e+00 : f32
    %8 = vector.broadcast %cst : f32 to vector<256x4xf32>
    %9 = arith.select %6, %7, %8 : vector<256x4xi1>, vector<256x4xf32>
    %c15_i32 = arith.constant 15 : i32
    %10 = vector.broadcast %c15_i32 : i32 to vector<256x4xi32>
    %11 = arith.cmpi slt, %4, %10 : vector<256x4xi32>
    %c255_i32 = arith.constant 255 : i32
    %12 = tpu.dynamic_rotate %0 by %c255_i32 dim 0 : vector<256x4xf32>, i32 -> vector<256x4xf32>
    %cst_7 = arith.constant 0.000000e+00 : f32
    %13 = vector.broadcast %cst_7 : f32 to vector<256x4xf32>
    %14 = arith.select %11, %12, %13 : vector<256x4xi1>, vector<256x4xf32>
    %15 = arith.truncf %9 : vector<256x4xf32> to vector<256x4xbf16>
    %16 = vector.extract_strided_slice %1 {offsets = [0, 0, 0], sizes = [1, 4, 2], strides = [1, 1, 1]} : vector<3x4x2xbf16> to vector<1x4x2xbf16>
    %17 = vector.shape_cast %16 : vector<1x4x2xbf16> to vector<4x2xbf16>
    %cst_8 = arith.constant dense<0.000000e+00> : vector<256x2xf32>
    %18 = tpu.matmul %15, %17, %cst_8 {dimension_numbers = #tpu.dot_dimension_numbers<[1], [0], [0], [1], [0, 0, 1, 1], [], []>} : vector<256x4xbf16>, vector<4x2xbf16>, vector<256x2xf32> -> vector<256x2xf32>
    %19 = arith.truncf %0 : vector<256x4xf32> to vector<256x4xbf16>
    %20 = vector.extract_strided_slice %1 {offsets = [1, 0, 0], sizes = [1, 4, 2], strides = [1, 1, 1]} : vector<3x4x2xbf16> to vector<1x4x2xbf16>
    %21 = vector.shape_cast %20 : vector<1x4x2xbf16> to vector<4x2xbf16>
    %cst_9 = arith.constant dense<0.000000e+00> : vector<256x2xf32>
    %22 = tpu.matmul %19, %21, %cst_9 {dimension_numbers = #tpu.dot_dimension_numbers<[1], [0], [0], [1], [0, 0, 1, 1], [], []>} : vector<256x4xbf16>, vector<4x2xbf16>, vector<256x2xf32> -> vector<256x2xf32>
    %23 = arith.addf %18, %22 : vector<256x2xf32>
    %24 = arith.truncf %14 : vector<256x4xf32> to vector<256x4xbf16>
    %25 = vector.extract_strided_slice %1 {offsets = [2, 0, 0], sizes = [1, 4, 2], strides = [1, 1, 1]} : vector<3x4x2xbf16> to vector<1x4x2xbf16>
    %26 = vector.shape_cast %25 : vector<1x4x2xbf16> to vector<4x2xbf16>
    %cst_10 = arith.constant dense<0.000000e+00> : vector<256x2xf32>
    %27 = tpu.matmul %24, %26, %cst_10 {dimension_numbers = #tpu.dot_dimension_numbers<[1], [0], [0], [1], [0, 0, 1, 1], [], []>} : vector<256x4xbf16>, vector<4x2xbf16>, vector<256x2xf32> -> vector<256x2xf32>
    %28 = arith.addf %23, %27 : vector<256x2xf32>
    %29 = tpu.iota {dimensions = array<i32: 1>} : vector<1x16x16x2xi32>
    %30 = vector.shape_cast %29 : vector<1x16x16x2xi32> to vector<256x2xi32>
    %c0_i32_11 = arith.constant 0 : i32
    %31 = vector.broadcast %c0_i32_11 : i32 to vector<256x2xi32>
    %32 = arith.cmpi sgt, %30, %31 : vector<256x2xi32>
    %c16_i32 = arith.constant 16 : i32
    %33 = tpu.dynamic_rotate %28 by %c16_i32 dim 0 : vector<256x2xf32>, i32 -> vector<256x2xf32>
    %cst_12 = arith.constant 0.000000e+00 : f32
    %34 = vector.broadcast %cst_12 : f32 to vector<256x2xf32>
    %35 = arith.select %32, %33, %34 : vector<256x2xi1>, vector<256x2xf32>
    %c15_i32_13 = arith.constant 15 : i32
    %36 = vector.broadcast %c15_i32_13 : i32 to vector<256x2xi32>
    %37 = arith.cmpi slt, %30, %36 : vector<256x2xi32>
    %c240_i32 = arith.constant 240 : i32
    %38 = tpu.dynamic_rotate %28 by %c240_i32 dim 0 : vector<256x2xf32>, i32 -> vector<256x2xf32>
    %cst_14 = arith.constant 0.000000e+00 : f32
    %39 = vector.broadcast %cst_14 : f32 to vector<256x2xf32>
    %40 = arith.select %37, %38, %39 : vector<256x2xi1>, vector<256x2xf32>
    %41 = arith.truncf %35 : vector<256x2xf32> to vector<256x2xbf16>
    %42 = vector.extract_strided_slice %2 {offsets = [0, 0, 0], sizes = [1, 2, 4], strides = [1, 1, 1]} : vector<3x2x4xbf16> to vector<1x2x4xbf16>
    %43 = vector.shape_cast %42 : vector<1x2x4xbf16> to vector<2x4xbf16>
    %cst_15 = arith.constant dense<0.000000e+00> : vector<256x4xf32>
    %44 = tpu.matmul %41, %43, %cst_15 {dimension_numbers = #tpu.dot_dimension_numbers<[1], [0], [0], [1], [0, 0, 1, 1], [], []>} : vector<256x2xbf16>, vector<2x4xbf16>, vector<256x4xf32> -> vector<256x4xf32>
    %45 = arith.truncf %28 : vector<256x2xf32> to vector<256x2xbf16>
    %46 = vector.extract_strided_slice %2 {offsets = [1, 0, 0], sizes = [1, 2, 4], strides = [1, 1, 1]} : vector<3x2x4xbf16> to vector<1x2x4xbf16>
    %47 = vector.shape_cast %46 : vector<1x2x4xbf16> to vector<2x4xbf16>
    %cst_16 = arith.constant dense<0.000000e+00> : vector<256x4xf32>
    %48 = tpu.matmul %45, %47, %cst_16 {dimension_numbers = #tpu.dot_dimension_numbers<[1], [0], [0], [1], [0, 0, 1, 1], [], []>} : vector<256x2xbf16>, vector<2x4xbf16>, vector<256x4xf32> -> vector<256x4xf32>
    %49 = arith.addf %44, %48 : vector<256x4xf32>
    %50 = arith.truncf %40 : vector<256x2xf32> to vector<256x2xbf16>
    %51 = vector.extract_strided_slice %2 {offsets = [2, 0, 0], sizes = [1, 2, 4], strides = [1, 1, 1]} : vector<3x2x4xbf16> to vector<1x2x4xbf16>
    %52 = vector.shape_cast %51 : vector<1x2x4xbf16> to vector<2x4xbf16>
    %cst_17 = arith.constant dense<0.000000e+00> : vector<256x4xf32>
    %53 = tpu.matmul %50, %52, %cst_17 {dimension_numbers = #tpu.dot_dimension_numbers<[1], [0], [0], [1], [0, 0, 1, 1], [], []>} : vector<256x2xbf16>, vector<2x4xbf16>, vector<256x4xf32> -> vector<256x4xf32>
    %54 = arith.addf %49, %53 : vector<256x4xf32>
    %cst_18 = arith.constant dense<0.000000e+00> : vector<4xf32>
    %55 = vector.multi_reduction <add>, %54, %cst_18 [0] : vector<256x4xf32> to vector<4xf32>
    %56 = vector.shape_cast %55 : vector<4xf32> to vector<1x4xf32>
    %57 = arith.mulf %54, %54 : vector<256x4xf32>
    %cst_19 = arith.constant dense<0.000000e+00> : vector<4xf32>
    %58 = vector.multi_reduction <add>, %57, %cst_19 [0] : vector<256x4xf32> to vector<4xf32>
    %59 = vector.shape_cast %58 : vector<4xf32> to vector<1x4xf32>
    %60 = tpu.concatenate %56, %59 in 0 : vector<1x4xf32>, vector<1x4xf32> -> vector<2x4xf32>
    %c0_20 = arith.constant 0 : index
    %c0_21 = arith.constant 0 : index
    %c0_22 = arith.constant 0 : index
    %61 = vector.load %arg5[%c0_20, %c0_21, %c0_22] : memref<1x2x4xf32, #tpu.memory_space<vmem>>, vector<1x2x4xf32>
    %62 = vector.shape_cast %61 : vector<1x2x4xf32> to vector<2x4xf32>
    %63 = vector.shape_cast %60 : vector<2x4xf32> to vector<1x2x4xf32>
    tpu.vector_store %arg5[%c0_20, %c0_21, %c0_22], %63 {strides = array<i32>} : memref<1x2x4xf32, #tpu.memory_space<vmem>>, vector<1x2x4xf32>,
    %64 = arith.truncf %54 : vector<256x4xf32> to vector<256x4xbf16>
    %c0_23 = arith.constant 0 : index
    %c0_24 = arith.constant 0 : index
    %65 = vector.load %arg4[%c0_23, %c0_24] : memref<256x4xbf16, #tpu.memory_space<vmem>>, vector<256x4xbf16>
    tpu.vector_store %arg4[%c0_23, %c0_24], %64 {strides = array<i32>} : memref<256x4xbf16, #tpu.memory_space<vmem>>, vector<256x4xbf16>,
    return
  }
  func.func @transform_0(%arg0: i32) -> (i32, i32) {
    %c0_i32 = arith.constant 0 : i32
    %c0_i32_0 = arith.constant 0 : i32
    return %arg0, %c0_i32 : i32, i32
  }
  func.func @transform_1(%arg0: i32) -> (i32, i32, i32) {
    %c0_i32 = arith.constant 0 : i32
    %c0_i32_0 = arith.constant 0 : i32
    %c0_i32_1 = arith.constant 0 : i32
    %c0_i32_2 = arith.constant 0 : i32
    return %c0_i32, %c0_i32_0, %c0_i32_1 : i32, i32, i32
  }
  func.func @transform_2(%arg0: i32) -> (i32, i32, i32) {
    %c0_i32 = arith.constant 0 : i32
    %c0_i32_0 = arith.constant 0 : i32
    %c0_i32_1 = arith.constant 0 : i32
    %c0_i32_2 = arith.constant 0 : i32
    return %c0_i32, %c0_i32_0, %c0_i32_1 : i32, i32, i32
  }
  func.func @transform_3(%arg0: i32) -> (i32, i32) {
    %c0_i32 = arith.constant 0 : i32
    %c0_i32_0 = arith.constant 0 : i32
    return %arg0, %c0_i32 : i32, i32
  }
  func.func @transform_4(%arg0: i32) -> (i32, i32, i32) {
    %c0_i32 = arith.constant 0 : i32
    %c0_i32_0 = arith.constant 0 : i32
    %c0_i32_1 = arith.constant 0 : i32
    return %arg0, %c0_i32, %c0_i32_0 : i32, i32, i32
  }
}

module attributes {stable_mosaic.version = 11 : i64} {
  func.func @_bn_residual_relu_kernel(%arg0: i32, %arg1: memref<256x4xbf16, #tpu.memory_space<vmem>>, %arg2: memref<256x4xf32, #tpu.memory_space<vmem>>, %arg3: memref<1x4xf32, #tpu.memory_space<vmem>>, %arg4: memref<1x4xf32, #tpu.memory_space<vmem>>, %arg5: memref<256x4xf32, #tpu.memory_space<vmem>>) attributes {dimension_semantics = [#tpu.dimension_semantics<parallel>], iteration_bounds = array<i64: 2>, scalar_prefetch = 0 : i64, scratch_operands = 0 : i64, tpu.core_type = #tpu.core_type<tc>, window_params = [{transform_indices = @transform_0, window_bounds = array<i64: 256, 4>}, {transform_indices = @transform_1, window_bounds = array<i64: 256, 4>}, {pipeline_mode = #tpu.pipeline_mode<synchronous>, transform_indices = @transform_2, window_bounds = array<i64: 1, 4>}, {pipeline_mode = #tpu.pipeline_mode<synchronous>, transform_indices = @transform_3, window_bounds = array<i64: 1, 4>}, {transform_indices = @transform_4, window_bounds = array<i64: 256, 4>}]} {
    %c0 = arith.constant 0 : index
    %c0_0 = arith.constant 0 : index
    %0 = vector.load %arg1[%c0, %c0_0] : memref<256x4xbf16, #tpu.memory_space<vmem>>, vector<256x4xbf16>
    %1 = arith.extf %0 : vector<256x4xbf16> to vector<256x4xf32>
    %c0_1 = arith.constant 0 : index
    %c0_2 = arith.constant 0 : index
    %2 = vector.load %arg3[%c0_1, %c0_2] : memref<1x4xf32, #tpu.memory_space<vmem>>, vector<1x4xf32>
    %3 = vector.broadcast %2 : vector<1x4xf32> to vector<256x4xf32>
    %4 = arith.mulf %1, %3 : vector<256x4xf32>
    %c0_3 = arith.constant 0 : index
    %c0_4 = arith.constant 0 : index
    %5 = vector.load %arg4[%c0_3, %c0_4] : memref<1x4xf32, #tpu.memory_space<vmem>>, vector<1x4xf32>
    %6 = vector.broadcast %5 : vector<1x4xf32> to vector<256x4xf32>
    %7 = arith.addf %4, %6 : vector<256x4xf32>
    %c0_5 = arith.constant 0 : index
    %c0_6 = arith.constant 0 : index
    %8 = vector.load %arg2[%c0_5, %c0_6] : memref<256x4xf32, #tpu.memory_space<vmem>>, vector<256x4xf32>
    %9 = arith.addf %7, %8 : vector<256x4xf32>
    %cst = arith.constant 0.000000e+00 : f32
    %10 = vector.broadcast %cst : f32 to vector<256x4xf32>
    %11 = arith.maximumf %9, %10 : vector<256x4xf32>
    %c0_7 = arith.constant 0 : index
    %c0_8 = arith.constant 0 : index
    %12 = vector.load %arg5[%c0_7, %c0_8] : memref<256x4xf32, #tpu.memory_space<vmem>>, vector<256x4xf32>
    tpu.vector_store %arg5[%c0_7, %c0_8], %11 {strides = array<i32>} : memref<256x4xf32, #tpu.memory_space<vmem>>, vector<256x4xf32>,
    return
  }
  func.func @transform_0(%arg0: i32) -> (i32, i32) {
    %c0_i32 = arith.constant 0 : i32
    %c0_i32_0 = arith.constant 0 : i32
    return %arg0, %c0_i32 : i32, i32
  }
  func.func @transform_1(%arg0: i32) -> (i32, i32) {
    %c0_i32 = arith.constant 0 : i32
    %c0_i32_0 = arith.constant 0 : i32
    return %arg0, %c0_i32 : i32, i32
  }
  func.func @transform_2(%arg0: i32) -> (i32, i32) {
    %c0_i32 = arith.constant 0 : i32
    %c0_i32_0 = arith.constant 0 : i32
    %c0_i32_1 = arith.constant 0 : i32
    return %c0_i32, %c0_i32_0 : i32, i32
  }
  func.func @transform_3(%arg0: i32) -> (i32, i32) {
    %c0_i32 = arith.constant 0 : i32
    %c0_i32_0 = arith.constant 0 : i32
    %c0_i32_1 = arith.constant 0 : i32
    return %c0_i32, %c0_i32_0 : i32, i32
  }
  func.func @transform_4(%arg0: i32) -> (i32, i32) {
    %c0_i32 = arith.constant 0 : i32
    %c0_i32_0 = arith.constant 0 : i32
    return %arg0, %c0_i32 : i32, i32
  }
}

module attributes {stable_mosaic.version = 11 : i64} {
  func.func @_bn_relu_conv2_stats_kernel(%arg0: i32, %arg1: memref<256x4xbf16, #tpu.memory_space<vmem>>, %arg2: memref<1x4xf32, #tpu.memory_space<vmem>>, %arg3: memref<1x4xf32, #tpu.memory_space<vmem>>, %arg4: memref<3x4x2xbf16, #tpu.memory_space<vmem>>, %arg5: memref<3x2x4xbf16, #tpu.memory_space<vmem>>, %arg6: memref<256x4xbf16, #tpu.memory_space<vmem>>, %arg7: memref<1x2x4xf32, #tpu.memory_space<vmem>>) attributes {dimension_semantics = [#tpu.dimension_semantics<parallel>], iteration_bounds = array<i64: 2>, scalar_prefetch = 0 : i64, scratch_operands = 0 : i64, tpu.core_type = #tpu.core_type<tc>, window_params = [{transform_indices = @transform_0, window_bounds = array<i64: 256, 4>}, {pipeline_mode = #tpu.pipeline_mode<synchronous>, transform_indices = @transform_1, window_bounds = array<i64: 1, 4>}, {pipeline_mode = #tpu.pipeline_mode<synchronous>, transform_indices = @transform_2, window_bounds = array<i64: 1, 4>}, {pipeline_mode = #tpu.pipeline_mode<synchronous>, transform_indices = @transform_3, window_bounds = array<i64: 3, 4, 2>}, {pipeline_mode = #tpu.pipeline_mode<synchronous>, transform_indices = @transform_4, window_bounds = array<i64: 3, 2, 4>}, {transform_indices = @transform_5, window_bounds = array<i64: 256, 4>}, {transform_indices = @transform_6, window_bounds = array<i64: 1, 2, 4>}]} {
    %c0 = arith.constant 0 : index
    %c0_0 = arith.constant 0 : index
    %0 = vector.load %arg1[%c0, %c0_0] : memref<256x4xbf16, #tpu.memory_space<vmem>>, vector<256x4xbf16>
    %1 = arith.extf %0 : vector<256x4xbf16> to vector<256x4xf32>
    %c0_1 = arith.constant 0 : index
    %c0_2 = arith.constant 0 : index
    %2 = vector.load %arg2[%c0_1, %c0_2] : memref<1x4xf32, #tpu.memory_space<vmem>>, vector<1x4xf32>
    %3 = vector.broadcast %2 : vector<1x4xf32> to vector<256x4xf32>
    %4 = arith.mulf %1, %3 : vector<256x4xf32>
    %c0_3 = arith.constant 0 : index
    %c0_4 = arith.constant 0 : index
    %5 = vector.load %arg3[%c0_3, %c0_4] : memref<1x4xf32, #tpu.memory_space<vmem>>, vector<1x4xf32>
    %6 = vector.broadcast %5 : vector<1x4xf32> to vector<256x4xf32>
    %7 = arith.addf %4, %6 : vector<256x4xf32>
    %cst = arith.constant 0.000000e+00 : f32
    %8 = vector.broadcast %cst : f32 to vector<256x4xf32>
    %9 = arith.maximumf %7, %8 : vector<256x4xf32>
    %c0_5 = arith.constant 0 : index
    %c0_6 = arith.constant 0 : index
    %c0_7 = arith.constant 0 : index
    %10 = vector.load %arg4[%c0_5, %c0_6, %c0_7] : memref<3x4x2xbf16, #tpu.memory_space<vmem>>, vector<3x4x2xbf16>
    %c0_8 = arith.constant 0 : index
    %c0_9 = arith.constant 0 : index
    %c0_10 = arith.constant 0 : index
    %11 = vector.load %arg5[%c0_8, %c0_9, %c0_10] : memref<3x2x4xbf16, #tpu.memory_space<vmem>>, vector<3x2x4xbf16>
    %12 = tpu.iota {dimensions = array<i32: 2>} : vector<1x16x16x4xi32>
    %13 = vector.shape_cast %12 : vector<1x16x16x4xi32> to vector<256x4xi32>
    %c0_i32 = arith.constant 0 : i32
    %14 = vector.broadcast %c0_i32 : i32 to vector<256x4xi32>
    %15 = arith.cmpi sgt, %13, %14 : vector<256x4xi32>
    %c1_i32 = arith.constant 1 : i32
    %16 = tpu.dynamic_rotate %9 by %c1_i32 dim 0 : vector<256x4xf32>, i32 -> vector<256x4xf32>
    %cst_11 = arith.constant 0.000000e+00 : f32
    %17 = vector.broadcast %cst_11 : f32 to vector<256x4xf32>
    %18 = arith.select %15, %16, %17 : vector<256x4xi1>, vector<256x4xf32>
    %c15_i32 = arith.constant 15 : i32
    %19 = vector.broadcast %c15_i32 : i32 to vector<256x4xi32>
    %20 = arith.cmpi slt, %13, %19 : vector<256x4xi32>
    %c255_i32 = arith.constant 255 : i32
    %21 = tpu.dynamic_rotate %9 by %c255_i32 dim 0 : vector<256x4xf32>, i32 -> vector<256x4xf32>
    %cst_12 = arith.constant 0.000000e+00 : f32
    %22 = vector.broadcast %cst_12 : f32 to vector<256x4xf32>
    %23 = arith.select %20, %21, %22 : vector<256x4xi1>, vector<256x4xf32>
    %24 = arith.truncf %18 : vector<256x4xf32> to vector<256x4xbf16>
    %25 = vector.extract_strided_slice %10 {offsets = [0, 0, 0], sizes = [1, 4, 2], strides = [1, 1, 1]} : vector<3x4x2xbf16> to vector<1x4x2xbf16>
    %26 = vector.shape_cast %25 : vector<1x4x2xbf16> to vector<4x2xbf16>
    %cst_13 = arith.constant dense<0.000000e+00> : vector<256x2xf32>
    %27 = tpu.matmul %24, %26, %cst_13 {dimension_numbers = #tpu.dot_dimension_numbers<[1], [0], [0], [1], [0, 0, 1, 1], [], []>} : vector<256x4xbf16>, vector<4x2xbf16>, vector<256x2xf32> -> vector<256x2xf32>
    %28 = arith.truncf %9 : vector<256x4xf32> to vector<256x4xbf16>
    %29 = vector.extract_strided_slice %10 {offsets = [1, 0, 0], sizes = [1, 4, 2], strides = [1, 1, 1]} : vector<3x4x2xbf16> to vector<1x4x2xbf16>
    %30 = vector.shape_cast %29 : vector<1x4x2xbf16> to vector<4x2xbf16>
    %cst_14 = arith.constant dense<0.000000e+00> : vector<256x2xf32>
    %31 = tpu.matmul %28, %30, %cst_14 {dimension_numbers = #tpu.dot_dimension_numbers<[1], [0], [0], [1], [0, 0, 1, 1], [], []>} : vector<256x4xbf16>, vector<4x2xbf16>, vector<256x2xf32> -> vector<256x2xf32>
    %32 = arith.addf %27, %31 : vector<256x2xf32>
    %33 = arith.truncf %23 : vector<256x4xf32> to vector<256x4xbf16>
    %34 = vector.extract_strided_slice %10 {offsets = [2, 0, 0], sizes = [1, 4, 2], strides = [1, 1, 1]} : vector<3x4x2xbf16> to vector<1x4x2xbf16>
    %35 = vector.shape_cast %34 : vector<1x4x2xbf16> to vector<4x2xbf16>
    %cst_15 = arith.constant dense<0.000000e+00> : vector<256x2xf32>
    %36 = tpu.matmul %33, %35, %cst_15 {dimension_numbers = #tpu.dot_dimension_numbers<[1], [0], [0], [1], [0, 0, 1, 1], [], []>} : vector<256x4xbf16>, vector<4x2xbf16>, vector<256x2xf32> -> vector<256x2xf32>
    %37 = arith.addf %32, %36 : vector<256x2xf32>
    %38 = tpu.iota {dimensions = array<i32: 1>} : vector<1x16x16x2xi32>
    %39 = vector.shape_cast %38 : vector<1x16x16x2xi32> to vector<256x2xi32>
    %c0_i32_16 = arith.constant 0 : i32
    %40 = vector.broadcast %c0_i32_16 : i32 to vector<256x2xi32>
    %41 = arith.cmpi sgt, %39, %40 : vector<256x2xi32>
    %c16_i32 = arith.constant 16 : i32
    %42 = tpu.dynamic_rotate %37 by %c16_i32 dim 0 : vector<256x2xf32>, i32 -> vector<256x2xf32>
    %cst_17 = arith.constant 0.000000e+00 : f32
    %43 = vector.broadcast %cst_17 : f32 to vector<256x2xf32>
    %44 = arith.select %41, %42, %43 : vector<256x2xi1>, vector<256x2xf32>
    %c15_i32_18 = arith.constant 15 : i32
    %45 = vector.broadcast %c15_i32_18 : i32 to vector<256x2xi32>
    %46 = arith.cmpi slt, %39, %45 : vector<256x2xi32>
    %c240_i32 = arith.constant 240 : i32
    %47 = tpu.dynamic_rotate %37 by %c240_i32 dim 0 : vector<256x2xf32>, i32 -> vector<256x2xf32>
    %cst_19 = arith.constant 0.000000e+00 : f32
    %48 = vector.broadcast %cst_19 : f32 to vector<256x2xf32>
    %49 = arith.select %46, %47, %48 : vector<256x2xi1>, vector<256x2xf32>
    %50 = arith.truncf %44 : vector<256x2xf32> to vector<256x2xbf16>
    %51 = vector.extract_strided_slice %11 {offsets = [0, 0, 0], sizes = [1, 2, 4], strides = [1, 1, 1]} : vector<3x2x4xbf16> to vector<1x2x4xbf16>
    %52 = vector.shape_cast %51 : vector<1x2x4xbf16> to vector<2x4xbf16>
    %cst_20 = arith.constant dense<0.000000e+00> : vector<256x4xf32>
    %53 = tpu.matmul %50, %52, %cst_20 {dimension_numbers = #tpu.dot_dimension_numbers<[1], [0], [0], [1], [0, 0, 1, 1], [], []>} : vector<256x2xbf16>, vector<2x4xbf16>, vector<256x4xf32> -> vector<256x4xf32>
    %54 = arith.truncf %37 : vector<256x2xf32> to vector<256x2xbf16>
    %55 = vector.extract_strided_slice %11 {offsets = [1, 0, 0], sizes = [1, 2, 4], strides = [1, 1, 1]} : vector<3x2x4xbf16> to vector<1x2x4xbf16>
    %56 = vector.shape_cast %55 : vector<1x2x4xbf16> to vector<2x4xbf16>
    %cst_21 = arith.constant dense<0.000000e+00> : vector<256x4xf32>
    %57 = tpu.matmul %54, %56, %cst_21 {dimension_numbers = #tpu.dot_dimension_numbers<[1], [0], [0], [1], [0, 0, 1, 1], [], []>} : vector<256x2xbf16>, vector<2x4xbf16>, vector<256x4xf32> -> vector<256x4xf32>
    %58 = arith.addf %53, %57 : vector<256x4xf32>
    %59 = arith.truncf %49 : vector<256x2xf32> to vector<256x2xbf16>
    %60 = vector.extract_strided_slice %11 {offsets = [2, 0, 0], sizes = [1, 2, 4], strides = [1, 1, 1]} : vector<3x2x4xbf16> to vector<1x2x4xbf16>
    %61 = vector.shape_cast %60 : vector<1x2x4xbf16> to vector<2x4xbf16>
    %cst_22 = arith.constant dense<0.000000e+00> : vector<256x4xf32>
    %62 = tpu.matmul %59, %61, %cst_22 {dimension_numbers = #tpu.dot_dimension_numbers<[1], [0], [0], [1], [0, 0, 1, 1], [], []>} : vector<256x2xbf16>, vector<2x4xbf16>, vector<256x4xf32> -> vector<256x4xf32>
    %63 = arith.addf %58, %62 : vector<256x4xf32>
    %cst_23 = arith.constant dense<0.000000e+00> : vector<4xf32>
    %64 = vector.multi_reduction <add>, %63, %cst_23 [0] : vector<256x4xf32> to vector<4xf32>
    %65 = vector.shape_cast %64 : vector<4xf32> to vector<1x4xf32>
    %66 = arith.mulf %63, %63 : vector<256x4xf32>
    %cst_24 = arith.constant dense<0.000000e+00> : vector<4xf32>
    %67 = vector.multi_reduction <add>, %66, %cst_24 [0] : vector<256x4xf32> to vector<4xf32>
    %68 = vector.shape_cast %67 : vector<4xf32> to vector<1x4xf32>
    %69 = tpu.concatenate %65, %68 in 0 : vector<1x4xf32>, vector<1x4xf32> -> vector<2x4xf32>
    %c0_25 = arith.constant 0 : index
    %c0_26 = arith.constant 0 : index
    %c0_27 = arith.constant 0 : index
    %70 = vector.load %arg7[%c0_25, %c0_26, %c0_27] : memref<1x2x4xf32, #tpu.memory_space<vmem>>, vector<1x2x4xf32>
    %71 = vector.shape_cast %70 : vector<1x2x4xf32> to vector<2x4xf32>
    %72 = vector.shape_cast %69 : vector<2x4xf32> to vector<1x2x4xf32>
    tpu.vector_store %arg7[%c0_25, %c0_26, %c0_27], %72 {strides = array<i32>} : memref<1x2x4xf32, #tpu.memory_space<vmem>>, vector<1x2x4xf32>,
    %73 = arith.truncf %63 : vector<256x4xf32> to vector<256x4xbf16>
    %c0_28 = arith.constant 0 : index
    %c0_29 = arith.constant 0 : index
    %74 = vector.load %arg6[%c0_28, %c0_29] : memref<256x4xbf16, #tpu.memory_space<vmem>>, vector<256x4xbf16>
    tpu.vector_store %arg6[%c0_28, %c0_29], %73 {strides = array<i32>} : memref<256x4xbf16, #tpu.memory_space<vmem>>, vector<256x4xbf16>,
    return
  }
  func.func @transform_0(%arg0: i32) -> (i32, i32) {
    %c0_i32 = arith.constant 0 : i32
    %c0_i32_0 = arith.constant 0 : i32
    return %arg0, %c0_i32 : i32, i32
  }
  func.func @transform_1(%arg0: i32) -> (i32, i32) {
    %c0_i32 = arith.constant 0 : i32
    %c0_i32_0 = arith.constant 0 : i32
    %c0_i32_1 = arith.constant 0 : i32
    return %c0_i32, %c0_i32_0 : i32, i32
  }
  func.func @transform_2(%arg0: i32) -> (i32, i32) {
    %c0_i32 = arith.constant 0 : i32
    %c0_i32_0 = arith.constant 0 : i32
    %c0_i32_1 = arith.constant 0 : i32
    return %c0_i32, %c0_i32_0 : i32, i32
  }
  func.func @transform_3(%arg0: i32) -> (i32, i32, i32) {
    %c0_i32 = arith.constant 0 : i32
    %c0_i32_0 = arith.constant 0 : i32
    %c0_i32_1 = arith.constant 0 : i32
    %c0_i32_2 = arith.constant 0 : i32
    return %c0_i32, %c0_i32_0, %c0_i32_1 : i32, i32, i32
  }
  func.func @transform_4(%arg0: i32) -> (i32, i32, i32) {
    %c0_i32 = arith.constant 0 : i32
    %c0_i32_0 = arith.constant 0 : i32
    %c0_i32_1 = arith.constant 0 : i32
    %c0_i32_2 = arith.constant 0 : i32
    return %c0_i32, %c0_i32_0, %c0_i32_1 : i32, i32, i32
  }
  func.func @transform_5(%arg0: i32) -> (i32, i32) {
    %c0_i32 = arith.constant 0 : i32
    %c0_i32_0 = arith.constant 0 : i32
    return %arg0, %c0_i32 : i32, i32
  }
  func.func @transform_6(%arg0: i32) -> (i32, i32, i32) {
    %c0_i32 = arith.constant 0 : i32
    %c0_i32_0 = arith.constant 0 : i32
    %c0_i32_1 = arith.constant 0 : i32
    return %arg0, %c0_i32, %c0_i32_0 : i32, i32, i32
  }
}

</mosaic_0001>

<llo_original>
// kernel: _lambda_.5
$region0: #{_lambda_.5}
  #allocation0 [shape = 'u32[]', space=smem, size = 0x4, offset = 0x4, fixed_abs, tag = 'smem constant byte address 0x4 - core index']
  #allocation1 [shape = 'u32[144,128]{1,0:T(1,128)}', space=vmem, size = 0x12000, scoped, tag = 'internal scratch']
  %s0 = inlined_call_operand.vmem [shape: bf16[512,4], index: 0, kind: input, shape index: {}]
  %s1 = inlined_call_operand.vmem [shape: f32[512,4], index: 1, kind: input, shape index: {}]
  %s2 = inlined_call_operand.vmem [shape: f32[1,4], index: 2, kind: input, shape index: {}]
  %s3 = inlined_call_operand.vmem [shape: f32[1,4], index: 3, kind: input, shape index: {}]
  %s4 = inlined_call_operand.vmem [shape: f32[512,4], index: 4, kind: output, shape index: {}]
  %s5 = sld [smem:[#allocation0]]
  $region49: #{_lambda_.5} parent=0
    _
  %s7 = ssub.s32 1, %s5
  %s8 = scalar_select 0, %s7, %s5
  loop: start=0, step=1, limit=4
  $region2: #{_lambda_.5} parent=0 // loop_pre_header
    _
  $region3: #{_lambda_.5} parent=0 // loop_header
    %s10 = sphi 0, %s14
    %p11 = scmp.ge.s32.totalorder %s10, 4
    %s20 = sphi 0, %s22
    %s23 = sphi 0, %s20
    %s24 = sphi 0, %s23
    %s40 = sphi 0, %s24
    %s46 = sphi 0, %s48
    %s49 = sphi 0, %s46
    %s50 = sphi 0, %s49
    %s66 = sphi 0, %s50
    %s70 = sphi 0, %s70
    %s72 = sphi 0, %s70
    %s73 = sphi 0, %s72
    %s87 = sphi 0, %s73
    %s91 = sphi 0, %s91
    %s93 = sphi 0, %s91
    %s94 = sphi 0, %s93
    %s108 = sphi 0, %s94
    %s114 = sphi 0, %s116
    %s117 = sphi 0, %s114
    %s118 = sphi 0, %s117
    %s134 = sphi 0, %s118
  $region4: #{_lambda_.5} parent=0 // loop_header_branch
    %13 = sbr.rel (%p11) target = $region8
  $region5: #{_lambda_.5} parent=0 // loop_body
    %s15 = ssub.s32 %s10, 1
    %s16 = ssub.s32 %s10, 2
    %s17 = sadd.s32 %s10, 1
    %s18 = ssub.s32 %s10, %s17
    %p19 = scmp.eq.s32.totalorder %s18, 0
    %s21 = sadd.s32 %s20, 1
    %s22 = scalar_select %p19, %s20, %s21
    %p25 = pneg %p19
    %p26 = scmp.eq.s32.totalorder %s10, 1
    %p27 = por %p25, %p26
    %p28 = scmp.ne.s32.totalorder %s20, %s23
    %p29 = scmp.eq.s32.totalorder %s10, 0
    %p30 = por %p28, %p29
    %p31 = scmp.ne.s32.totalorder %s20, %s23
    %p32 = scmp.eq.s32.totalorder %s15, 1
    %p33 = por %p31, %p32
    %p34 = scmp.ne.s32.totalorder %s23, %s24
    %p35 = scmp.eq.s32.totalorder %s15, 0
    %p36 = por %p34, %p35
    %p37 = scmp.ne.s32.totalorder %s23, %s24
    %p38 = scmp.eq.s32.totalorder %s16, 1
    %p39 = por %p37, %p38
    %p41 = scmp.ne.s32.totalorder %s24, %s40
    %p42 = scmp.eq.s32.totalorder %s16, 0
    %p43 = por %p41, %p42
    %s44 = ssub.s32 %s10, %s17
    %p45 = scmp.eq.s32.totalorder %s44, 0
    %s47 = sadd.s32 %s46, 1
    %s48 = scalar_select %p45, %s46, %s47
    %p51 = pneg %p45
    %p52 = scmp.eq.s32.totalorder %s10, 1
    %p53 = por %p51, %p52
    %p54 = scmp.ne.s32.totalorder %s46, %s49
    %p55 = scmp.eq.s32.totalorder %s10, 0
    %p56 = por %p54, %p55
    %p57 = scmp.ne.s32.totalorder %s46, %s49
    %p58 = scmp.eq.s32.totalorder %s15, 1
    %p59 = por %p57, %p58
    %p60 = scmp.ne.s32.totalorder %s49, %s50
    %p61 = scmp.eq.s32.totalorder %s15, 0
    %p62 = por %p60, %p61
    %p63 = scmp.ne.s32.totalorder %s49, %s50
    %p64 = scmp.eq.s32.totalorder %s16, 1
    %p65 = por %p63, %p64
    %p67 = scmp.ne.s32.totalorder %s50, %s66
    %p68 = scmp.eq.s32.totalorder %s16, 0
    %p69 = por %p67, %p68
    %s71 = sadd.s32 %s70, 1
    %p74 = scmp.eq.s32.totalorder %s10, 1
    %p75 = scmp.ne.s32.totalorder %s70, %s72
    %p76 = scmp.eq.s32.totalorder %s10, 0
    %p77 = por %p75, %p76
    %p78 = scmp.ne.s32.totalorder %s70, %s72
    %p79 = scmp.eq.s32.totalorder %s15, 1
    %p80 = por %p78, %p79
    %p81 = scmp.ne.s32.totalorder %s72, %s73
    %p82 = scmp.eq.s32.totalorder %s15, 0
    %p83 = por %p81, %p82
    %p84 = scmp.ne.s32.totalorder %s72, %s73
    %p85 = scmp.eq.s32.totalorder %s16, 1
    %p86 = por %p84, %p85
    %p88 = scmp.ne.s32.totalorder %s73, %s87
    %p89 = scmp.eq.s32.totalorder %s16, 0
    %p90 = por %p88, %p89
    %s92 = sadd.s32 %s91, 1
    %p95 = scmp.eq.s32.totalorder %s10, 1
    %p96 = scmp.ne.s32.totalorder %s91, %s93
    %p97 = scmp.eq.s32.totalorder %s10, 0
    %p98 = por %p96, %p97
    %p99 = scmp.ne.s32.totalorder %s91, %s93
    %p100 = scmp.eq.s32.totalorder %s15, 1
    %p101 = por %p99, %p100
    %p102 = scmp.ne.s32.totalorder %s93, %s94
    %p103 = scmp.eq.s32.totalorder %s15, 0
    %p104 = por %p102, %p103
    %p105 = scmp.ne.s32.totalorder %s93, %s94
    %p106 = scmp.eq.s32.totalorder %s16, 1
    %p107 = por %p105, %p106
    %p109 = scmp.ne.s32.totalorder %s94, %s108
    %p110 = scmp.eq.s32.totalorder %s16, 0
    %p111 = por %p109, %p110
    %s112 = ssub.s32 %s10, %s17
    %p113 = scmp.eq.s32.totalorder %s112, 0
    %s115 = sadd.s32 %s114, 1
    %s116 = scalar_select %p113, %s114, %s115
    %p119 = pneg %p113
    %p120 = scmp.eq.s32.totalorder %s10, 1
    %p121 = por %p119, %p120
    %p122 = scmp.ne.s32.totalorder %s114, %s117
    %p123 = scmp.eq.s32.totalorder %s10, 0
    %p124 = por %p122, %p123
    %p125 = scmp.ne.s32.totalorder %s114, %s117
    %p126 = scmp.eq.s32.totalorder %s15, 1
    %p127 = por %p125, %p126
    %p128 = scmp.ne.s32.totalorder %s117, %s118
    %p129 = scmp.eq.s32.totalorder %s15, 0
    %p130 = por %p128, %p129
    %p131 = scmp.ne.s32.totalorder %s117, %s118
    %p132 = scmp.eq.s32.totalorder %s16, 1
    %p133 = por %p131, %p132
    %p135 = scmp.ne.s32.totalorder %s118, %s134
    %p136 = scmp.eq.s32.totalorder %s16, 0
    %p137 = por %p135, %p136
    %p138 = scmp.le.s32.totalorder 1, %s10
    %p139 = scmp.lt.s32.totalorder %s10, 3
    %p140 = pnand %p138, %p139
    %p141 = pneg %p140
    // Predicated region
    $region9: #{_lambda_.5} parent=5 // pred_check
      _
    $region10: #{_lambda_.5} parent=5 // pred_check_branch
      %143 = sbr.rel (%p140) target = $region12
    $region11: #{_lambda_.5} parent=5 // pred_region
      %s144 = ssub.s32 %s10, 1
      // Predicated region
      $region13: #{_lambda_.5} parent=11 // pred_check
        %p145 = pneg %p83
      $region14: #{_lambda_.5} parent=11 // pred_check_branch
        %147 = sbr.rel (%p145) target = $region16
      $region15: #{_lambda_.5} parent=11 // pred_region
        _
      $region16: #{_lambda_.5} parent=11 // pred_fallthru
        _
      // Predicated region
      $region17: #{_lambda_.5} parent=11 // pred_check
        %p148 = pneg %p104
      $region18: #{_lambda_.5} parent=11 // pred_check_branch
        %150 = sbr.rel (%p148) target = $region20
      $region19: #{_lambda_.5} parent=11 // pred_region
        _
      $region20: #{_lambda_.5} parent=11 // pred_fallthru
        _
    $region12: #{_lambda_.5} parent=5 // pred_fallthru
      _
    %p151 = scmp.lt.s32.totalorder %s10, 2
    // Predicated region
    $region21: #{_lambda_.5} parent=5 // pred_check
      %p152 = pneg %p151
    $region22: #{_lambda_.5} parent=5 // pred_check_branch
      %154 = sbr.rel (%p152) target = $region24
    $region23: #{_lambda_.5} parent=5 // pred_region
      // Predicated region
      $region25: #{_lambda_.5} parent=23 // pred_check
        %p155 = pneg %p30
      $region26: #{_lambda_.5} parent=23 // pred_check_branch
        %157 = sbr.rel (%p155) target = $region28
      $region27: #{_lambda_.5} parent=23 // pred_region
        %s158 = smul.u32 32, %s10
        %p159 = scmp.lt.s32.totalorder %s158, 63
        %s160 = scalar_select %p159, %s158, 63
        %s161 = smul.addr %s160, 4
        %s162 = scalar_lea.vmem %s0, %s161
        %s163 = smul.u32 32, %s10
      $region28: #{_lambda_.5} parent=23 // pred_fallthru
        _
      // Predicated region
      $region29: #{_lambda_.5} parent=23 // pred_check
        %p164 = pneg %p56
      $region30: #{_lambda_.5} parent=23 // pred_check_branch
        %166 = sbr.rel (%p164) target = $region32
      $region31: #{_lambda_.5} parent=23 // pred_region
        %s167 = smul.u32 32, %s10
        %p168 = scmp.lt.s32.totalorder %s167, 63
        %s169 = scalar_select %p168, %s167, 63
        %s170 = smul.addr %s169, 8
        %s171 = scalar_lea.vmem %s1, %s170
        %s172 = smul.u32 32, %s10
      $region32: #{_lambda_.5} parent=23 // pred_fallthru
        _
    $region24: #{_lambda_.5} parent=5 // pred_fallthru
      _
    %p173 = scmp.le.s32.totalorder 1, %s10
    %p174 = scmp.lt.s32.totalorder %s10, 3
    %p175 = pnand %p173, %p174
    %p176 = pneg %p175
    // Predicated region
    $region33: #{_lambda_.5} parent=5 // pred_check
      _
    $region34: #{_lambda_.5} parent=5 // pred_check_branch
      %178 = sbr.rel (%p175) target = $region36
    $region35: #{_lambda_.5} parent=5 // pred_region
      %s179 = ssub.s32 %s10, 1
      %s180 = smul.u32 32, %s15
      %p181 = scmp.lt.s32.totalorder %s180, 63
      %s182 = scalar_select %p181, %s180, 63
      %s183 = smul.addr %s182, 4
      %s184 = scalar_lea.vmem %s0, %s183
      %p185 = pneg %p36
      %p186 = pneg %p33
      %s187 = smul.u32 32, %s15
      %p188 = scmp.lt.s32.totalorder %s187, 63
      %s189 = scalar_select %p188, %s187, 63
      %s190 = smul.addr %s189, 8
      %s191 = scalar_lea.vmem %s1, %s190
      %p192 = pneg %p62
      %p193 = pneg %p59
      %p194 = pneg %p83
      %p195 = pneg %p80
      %p196 = pneg %p104
      %p197 = pneg %p101
      %p198 = pneg %p130
      %p199 = pneg %p127
      %s200 = smul.u32 32, %s15
      %p201 = scmp.lt.s32.totalorder %s200, 63
      %s202 = scalar_select %p201, %s200, 63
      %s203 = smul.addr %s202, 8
      %s204 = scalar_lea.vmem %s4, %s203
      %s205 = smul.u32 32, %s15
      %p206 = scmp.lt.s32.totalorder %s205, 63
      %s207 = scalar_select %p206, %s205, 63
      %s208 = smul.addr %s207, 4
      %s209 = scalar_lea.vmem %s0, %s208
      %s210 = smul.u32 32, %s15
      %s211 = smul.u32 32, %s15
      %p212 = scmp.lt.s32.totalorder %s211, 63
      %s213 = scalar_select %p212, %s211, 63
      %s214 = smul.addr %s213, 8
      %s215 = scalar_lea.vmem %s1, %s214
      %s216 = smul.u32 32, %s15
      %s217 = smul.u32 32, %s15
      %p218 = scmp.lt.s32.totalorder %s217, 63
      %s219 = scalar_select %p218, %s217, 63
      %s220 = smul.addr %s219, 8
      %s221 = scalar_lea.vmem %s4, %s220
      %s222 = smul.u32 32, %s15
      %v223 = vld [vmem:[%s209] sm:$0xf]
      %v224 = vld [vmem:[%s209 + $0x4] sm:$0xf]
      %v225 = vld [vmem:[%s209 + $0x8] sm:$0xf]
      %v226 = vld [vmem:[%s209 + $0xc] sm:$0xf]
      %v227 = vld [vmem:[%s209 + $0x10] sm:$0xf]
      %v228 = vld [vmem:[%s209 + $0x14] sm:$0xf]
      %v229 = vld [vmem:[%s209 + $0x18] sm:$0xf]
      %v230 = vld [vmem:[%s209 + $0x1c] sm:$0xf]
      %v231 = vld [vmem:[%s209 + $0x20] sm:$0xf]
      %v232 = vld [vmem:[%s209 + $0x24] sm:$0xf]
      %v233 = vld [vmem:[%s209 + $0x28] sm:$0xf]
      %v234 = vld [vmem:[%s209 + $0x2c] sm:$0xf]
      %v235 = vld [vmem:[%s209 + $0x30] sm:$0xf]
      %v236 = vld [vmem:[%s209 + $0x34] sm:$0xf]
      %v237 = vld [vmem:[%s209 + $0x38] sm:$0xf]
      %v238 = vld [vmem:[%s209 + $0x3c] sm:$0xf]
      %v239 = vld [vmem:[%s209 + $0x40] sm:$0xf]
      %v240 = vld [vmem:[%s209 + $0x44] sm:$0xf]
      %v241 = vld [vmem:[%s209 + $0x48] sm:$0xf]
      %v242 = vld [vmem:[%s209 + $0x4c] sm:$0xf]
      %v243 = vld [vmem:[%s209 + $0x50] sm:$0xf]
      %v244 = vld [vmem:[%s209 + $0x54] sm:$0xf]
      %v245 = vld [vmem:[%s209 + $0x58] sm:$0xf]
      %v246 = vld [vmem:[%s209 + $0x5c] sm:$0xf]
      %v247 = vld [vmem:[%s209 + $0x60] sm:$0xf]
      %v248 = vld [vmem:[%s209 + $0x64] sm:$0xf]
      %v249 = vld [vmem:[%s209 + $0x68] sm:$0xf]
      %v250 = vld [vmem:[%s209 + $0x6c] sm:$0xf]
      %v251 = vld [vmem:[%s209 + $0x70] sm:$0xf]
      %v252 = vld [vmem:[%s209 + $0x74] sm:$0xf]
      %v253 = vld [vmem:[%s209 + $0x78] sm:$0xf]
      %v254 = vld [vmem:[%s209 + $0x7c] sm:$0xf]
      %v255 = vunpack.c.l.bf16 %v223
      %v256 = vunpack.c.l.bf16 %v224
      %v257 = vunpack.c.l.bf16 %v225
      %v258 = vunpack.c.l.bf16 %v226
      %v259 = vunpack.c.l.bf16 %v227
      %v260 = vunpack.c.l.bf16 %v228
      %v261 = vunpack.c.l.bf16 %v229
      %v262 = vunpack.c.l.bf16 %v230
      %v263 = vunpack.c.l.bf16 %v231
      %v264 = vunpack.c.l.bf16 %v232
      %v265 = vunpack.c.l.bf16 %v233
      %v266 = vunpack.c.l.bf16 %v234
      %v267 = vunpack.c.l.bf16 %v235
      %v268 = vunpack.c.l.bf16 %v236
      %v269 = vunpack.c.l.bf16 %v237
      %v270 = vunpack.c.l.bf16 %v238
      %v271 = vunpack.c.l.bf16 %v239
      %v272 = vunpack.c.l.bf16 %v240
      %v273 = vunpack.c.l.bf16 %v241
      %v274 = vunpack.c.l.bf16 %v242
      %v275 = vunpack.c.l.bf16 %v243
      %v276 = vunpack.c.l.bf16 %v244
      %v277 = vunpack.c.l.bf16 %v245
      %v278 = vunpack.c.l.bf16 %v246
      %v279 = vunpack.c.l.bf16 %v247
      %v280 = vunpack.c.l.bf16 %v248
      %v281 = vunpack.c.l.bf16 %v249
      %v282 = vunpack.c.l.bf16 %v250
      %v283 = vunpack.c.l.bf16 %v251
      %v284 = vunpack.c.l.bf16 %v252
      %v285 = vunpack.c.l.bf16 %v253
      %v286 = vunpack.c.l.bf16 %v254
      %v287 = vld [vmem:[%s2] sm:$0x1]
      %v289 = vlaneseq
      %v290 = vshrl.u32 %v289, 7
      %v291 = vsub.s32 0, %v290
      %v292 = vrot.slane %v287, %v291
      %v294 = vmul.f32 %v255, %v292
      %v295 = vmul.f32 %v256, %v292
      %v296 = vmul.f32 %v257, %v292
      %v297 = vmul.f32 %v258, %v292
      %v298 = vmul.f32 %v259, %v292
      %v299 = vmul.f32 %v260, %v292
      %v300 = vmul.f32 %v261, %v292
      %v301 = vmul.f32 %v262, %v292
      %v302 = vmul.f32 %v263, %v292
      %v303 = vmul.f32 %v264, %v292
      %v304 = vmul.f32 %v265, %v292
      %v305 = vmul.f32 %v266, %v292
      %v306 = vmul.f32 %v267, %v292
      %v307 = vmul.f32 %v268, %v292
      %v308 = vmul.f32 %v269, %v292
      %v309 = vmul.f32 %v270, %v292
      %v310 = vmul.f32 %v271, %v292
      %v311 = vmul.f32 %v272, %v292
      %v312 = vmul.f32 %v273, %v292
      %v313 = vmul.f32 %v274, %v292
      %v314 = vmul.f32 %v275, %v292
      %v315 = vmul.f32 %v276, %v292
      %v316 = vmul.f32 %v277, %v292
      %v317 = vmul.f32 %v278, %v292
      %v318 = vmul.f32 %v279, %v292
      %v319 = vmul.f32 %v280, %v292
      %v320 = vmul.f32 %v281, %v292
      %v321 = vmul.f32 %v282, %v292
      %v322 = vmul.f32 %v283, %v292
      %v323 = vmul.f32 %v284, %v292
      %v324 = vmul.f32 %v285, %v292
      %v325 = vmul.f32 %v286, %v292
      %v326 = vld [vmem:[%s3] sm:$0x1]
      %v328 = vlaneseq
      %v329 = vshrl.u32 %v328, 7
      %v330 = vsub.s32 0, %v329
      %v331 = vrot.slane %v326, %v330
      %v333 = vadd.f32 %v294, %v331
      %v334 = vadd.f32 %v295, %v331
      %v335 = vadd.f32 %v296, %v331
      %v336 = vadd.f32 %v297, %v331
      %v337 = vadd.f32 %v298, %v331
      %v338 = vadd.f32 %v299, %v331
      %v339 = vadd.f32 %v300, %v331
      %v340 = vadd.f32 %v301, %v331
      %v341 = vadd.f32 %v302, %v331
      %v342 = vadd.f32 %v303, %v331
      %v343 = vadd.f32 %v304, %v331
      %v344 = vadd.f32 %v305, %v331
      %v345 = vadd.f32 %v306, %v331
      %v346 = vadd.f32 %v307, %v331
      %v347 = vadd.f32 %v308, %v331
      %v348 = vadd.f32 %v309, %v331
      %v349 = vadd.f32 %v310, %v331
      %v350 = vadd.f32 %v311, %v331
      %v351 = vadd.f32 %v312, %v331
      %v352 = vadd.f32 %v313, %v331
      %v353 = vadd.f32 %v314, %v331
      %v354 = vadd.f32 %v315, %v331
      %v355 = vadd.f32 %v316, %v331
      %v356 = vadd.f32 %v317, %v331
      %v357 = vadd.f32 %v318, %v331
      %v358 = vadd.f32 %v319, %v331
      %v359 = vadd.f32 %v320, %v331
      %v360 = vadd.f32 %v321, %v331
      %v361 = vadd.f32 %v322, %v331
      %v362 = vadd.f32 %v323, %v331
      %v363 = vadd.f32 %v324, %v331
      %v364 = vadd.f32 %v325, %v331
      %v365 = vld [vmem:[%s215] sm:$0xff]
      %v366 = vld [vmem:[%s215 + $0x8] sm:$0xff]
      %v367 = vld [vmem:[%s215 + $0x10] sm:$0xff]
      %v368 = vld [vmem:[%s215 + $0x18] sm:$0xff]
      %v369 = vld [vmem:[%s215 + $0x20] sm:$0xff]
      %v370 = vld [vmem:[%s215 + $0x28] sm:$0xff]
      %v371 = vld [vmem:[%s215 + $0x30] sm:$0xff]
      %v372 = vld [vmem:[%s215 + $0x38] sm:$0xff]
      %v373 = vld [vmem:[%s215 + $0x40] sm:$0xff]
      %v374 = vld [vmem:[%s215 + $0x48] sm:$0xff]
      %v375 = vld [vmem:[%s215 + $0x50] sm:$0xff]
      %v376 = vld [vmem:[%s215 + $0x58] sm:$0xff]
      %v377 = vld [vmem:[%s215 + $0x60] sm:$0xff]
      %v378 = vld [vmem:[%s215 + $0x68] sm:$0xff]
      %v379 = vld [vmem:[%s215 + $0x70] sm:$0xff]
      %v380 = vld [vmem:[%s215 + $0x78] sm:$0xff]
      %v381 = vld [vmem:[%s215 + $0x80] sm:$0xff]
      %v382 = vld [vmem:[%s215 + $0x88] sm:$0xff]
      %v383 = vld [vmem:[%s215 + $0x90] sm:$0xff]
      %v384 = vld [vmem:[%s215 + $0x98] sm:$0xff]
      %v385 = vld [vmem:[%s215 + $0xa0] sm:$0xff]
      %v386 = vld [vmem:[%s215 + $0xa8] sm:$0xff]
      %v387 = vld [vmem:[%s215 + $0xb0] sm:$0xff]
      %v388 = vld [vmem:[%s215 + $0xb8] sm:$0xff]
      %v389 = vld [vmem:[%s215 + $0xc0] sm:$0xff]
      %v390 = vld [vmem:[%s215 + $0xc8] sm:$0xff]
      %v391 = vld [vmem:[%s215 + $0xd0] sm:$0xff]
      %v392 = vld [vmem:[%s215 + $0xd8] sm:$0xff]
      %v393 = vld [vmem:[%s215 + $0xe0] sm:$0xff]
      %v394 = vld [vmem:[%s215 + $0xe8] sm:$0xff]
      %v395 = vld [vmem:[%s215 + $0xf0] sm:$0xff]
      %v396 = vld [vmem:[%s215 + $0xf8] sm:$0xff]
      %v397 = vadd.f32 %v333, %v365
      %v398 = vadd.f32 %v334, %v366
      %v399 = vadd.f32 %v335, %v367
      %v400 = vadd.f32 %v336, %v368
      %v401 = vadd.f32 %v337, %v369
      %v402 = vadd.f32 %v338, %v370
      %v403 = vadd.f32 %v339, %v371
      %v404 = vadd.f32 %v340, %v372
      %v405 = vadd.f32 %v341, %v373
      %v406 = vadd.f32 %v342, %v374
      %v407 = vadd.f32 %v343, %v375
      %v408 = vadd.f32 %v344, %v376
      %v409 = vadd.f32 %v345, %v377
      %v410 = vadd.f32 %v346, %v378
      %v411 = vadd.f32 %v347, %v379
      %v412 = vadd.f32 %v348, %v380
      %v413 = vadd.f32 %v349, %v381
      %v414 = vadd.f32 %v350, %v382
      %v415 = vadd.f32 %v351, %v383
      %v416 = vadd.f32 %v352, %v384
      %v417 = vadd.f32 %v353, %v385
      %v418 = vadd.f32 %v354, %v386
      %v419 = vadd.f32 %v355, %v387
      %v420 = vadd.f32 %v356, %v388
      %v421 = vadd.f32 %v357, %v389
      %v422 = vadd.f32 %v358, %v390
      %v423 = vadd.f32 %v359, %v391
      %v424 = vadd.f32 %v360, %v392
      %v425 = vadd.f32 %v361, %v393
      %v426 = vadd.f32 %v362, %v394
      %v427 = vadd.f32 %v363, %v395
      %v428 = vadd.f32 %v364, %v396
      %v429 = vmax.f32 %v397, 0.0
      %v430 = vmax.f32 %v398, 0.0
      %v431 = vmax.f32 %v399, 0.0
      %v432 = vmax.f32 %v400, 0.0
      %v433 = vmax.f32 %v401, 0.0
      %v434 = vmax.f32 %v402, 0.0
      %v435 = vmax.f32 %v403, 0.0
      %v436 = vmax.f32 %v404, 0.0
      %v437 = vmax.f32 %v405, 0.0
      %v438 = vmax.f32 %v406, 0.0
      %v439 = vmax.f32 %v407, 0.0
      %v440 = vmax.f32 %v408, 0.0
      %v441 = vmax.f32 %v409, 0.0
      %v442 = vmax.f32 %v410, 0.0
      %v443 = vmax.f32 %v411, 0.0
      %v444 = vmax.f32 %v412, 0.0
      %v445 = vmax.f32 %v413, 0.0
      %v446 = vmax.f32 %v414, 0.0
      %v447 = vmax.f32 %v415, 0.0
      %v448 = vmax.f32 %v416, 0.0
      %v449 = vmax.f32 %v417, 0.0
      %v450 = vmax.f32 %v418, 0.0
      %v451 = vmax.f32 %v419, 0.0
      %v452 = vmax.f32 %v420, 0.0
      %v453 = vmax.f32 %v421, 0.0
      %v454 = vmax.f32 %v422, 0.0
      %v455 = vmax.f32 %v423, 0.0
      %v456 = vmax.f32 %v424, 0.0
      %v457 = vmax.f32 %v425, 0.0
      %v458 = vmax.f32 %v426, 0.0
      %v459 = vmax.f32 %v427, 0.0
      %v460 = vmax.f32 %v428, 0.0
      %vm461 = vcmask 31744
      %462 = vst.msk [vmem:[%s221] sm:$0xff] %vm461, %v429
      %463 = vst.msk [vmem:[%s221 + $0x8] sm:$0xff] %vm461, %v430
      %464 = vst.msk [vmem:[%s221 + $0x10] sm:$0xff] %vm461, %v431
      %465 = vst.msk [vmem:[%s221 + $0x18] sm:$0xff] %vm461, %v432
      %466 = vst.msk [vmem:[%s221 + $0x20] sm:$0xff] %vm461, %v433
      %467 = vst.msk [vmem:[%s221 + $0x28] sm:$0xff] %vm461, %v434
      %468 = vst.msk [vmem:[%s221 + $0x30] sm:$0xff] %vm461, %v435
      %469 = vst.msk [vmem:[%s221 + $0x38] sm:$0xff] %vm461, %v436
      %470 = vst.msk [vmem:[%s221 + $0x40] sm:$0xff] %vm461, %v437
      %471 = vst.msk [vmem:[%s221 + $0x48] sm:$0xff] %vm461, %v438
      %472 = vst.msk [vmem:[%s221 + $0x50] sm:$0xff] %vm461, %v439
      %473 = vst.msk [vmem:[%s221 + $0x58] sm:$0xff] %vm461, %v440
      %474 = vst.msk [vmem:[%s221 + $0x60] sm:$0xff] %vm461, %v441
      %475 = vst.msk [vmem:[%s221 + $0x68] sm:$0xff] %vm461, %v442
      %476 = vst.msk [vmem:[%s221 + $0x70] sm:$0xff] %vm461, %v443
      %477 = vst.msk [vmem:[%s221 + $0x78] sm:$0xff] %vm461, %v444
      %478 = vst.msk [vmem:[%s221 + $0x80] sm:$0xff] %vm461, %v445
      %479 = vst.msk [vmem:[%s221 + $0x88] sm:$0xff] %vm461, %v446
      %480 = vst.msk [vmem:[%s221 + $0x90] sm:$0xff] %vm461, %v447
      %481 = vst.msk [vmem:[%s221 + $0x98] sm:$0xff] %vm461, %v448
      %482 = vst.msk [vmem:[%s221 + $0xa0] sm:$0xff] %vm461, %v449
      %483 = vst.msk [vmem:[%s221 + $0xa8] sm:$0xff] %vm461, %v450
      %484 = vst.msk [vmem:[%s221 + $0xb0] sm:$0xff] %vm461, %v451
      %485 = vst.msk [vmem:[%s221 + $0xb8] sm:$0xff] %vm461, %v452
      %486 = vst.msk [vmem:[%s221 + $0xc0] sm:$0xff] %vm461, %v453
      %487 = vst.msk [vmem:[%s221 + $0xc8] sm:$0xff] %vm461, %v454
      %488 = vst.msk [vmem:[%s221 + $0xd0] sm:$0xff] %vm461, %v455
      %489 = vst.msk [vmem:[%s221 + $0xd8] sm:$0xff] %vm461, %v456
      %490 = vst.msk [vmem:[%s221 + $0xe0] sm:$0xff] %vm461, %v457
      %491 = vst.msk [vmem:[%s221 + $0xe8] sm:$0xff] %vm461, %v458
      %492 = vst.msk [vmem:[%s221 + $0xf0] sm:$0xff] %vm461, %v459
      %493 = vst.msk [vmem:[%s221 + $0xf8] sm:$0xff] %vm461, %v460
      %s494 = smul.u32 32, %s15
      %p495 = scmp.lt.s32.totalorder %s494, 63
      %s496 = scalar_select %p495, %s494, 63
      %s497 = smul.addr %s496, 8
      %s498 = scalar_lea.vmem %s4, %s497
      // Predicated region
      $region37: #{_lambda_.5} parent=35 // pred_check
        %p499 = pneg %p127
      $region38: #{_lambda_.5} parent=35 // pred_check_branch
        %501 = sbr.rel (%p499) target = $region40
      $region39: #{_lambda_.5} parent=35 // pred_region
        %s502 = smul.u32 32, %s15
      $region40: #{_lambda_.5} parent=35 // pred_fallthru
        _
    $region36: #{_lambda_.5} parent=5 // pred_fallthru
      _
    %p503 = scmp.le.s32.totalorder 2, %s10
    // Predicated region
    $region41: #{_lambda_.5} parent=5 // pred_check
      %p504 = pneg %p503
    $region42: #{_lambda_.5} parent=5 // pred_check_branch
      %506 = sbr.rel (%p504) target = $region44
    $region43: #{_lambda_.5} parent=5 // pred_region
      %s507 = ssub.s32 %s10, 2
      // Predicated region
      $region45: #{_lambda_.5} parent=43 // pred_check
        %p508 = pneg %p133
      $region46: #{_lambda_.5} parent=43 // pred_check_branch
        %510 = sbr.rel (%p508) target = $region48
      $region47: #{_lambda_.5} parent=43 // pred_region
        %s511 = smul.u32 32, %s16
        %p512 = scmp.lt.s32.totalorder %s511, 63
        %s513 = scalar_select %p512, %s511, 63
        %s514 = smul.addr %s513, 8
        %s515 = scalar_lea.vmem %s4, %s514
      $region48: #{_lambda_.5} parent=43 // pred_fallthru
        _
    $region44: #{_lambda_.5} parent=5 // pred_fallthru
      _
  $region6: #{_lambda_.5} parent=0 // loop_footer
    %s14 = sadd.s32 1, %s10
  $region7: #{_lambda_.5} parent=0 // loop_footer_branch
    %9 = sbr.rel target = $region3
  $region8: #{_lambda_.5} parent=0 // loop_exit
    _

// kernel: _lambda_.3
$region0: #{_lambda_.3}
  #allocation0 [shape = 'u32[]', space=smem, size = 0x4, offset = 0x4, fixed_abs, tag = 'smem constant byte address 0x4 - core index']
  #allocation1 [shape = 'u32[144,128]{1,0:T(1,128)}', space=vmem, size = 0x12000, scoped, tag = 'internal scratch']
  %s0 = inlined_call_operand.vmem [shape: f32[512,4], index: 0, kind: input, shape index: {}]
  %s1 = inlined_call_operand.vmem [shape: bf16[3,4,2], index: 1, kind: input, shape index: {}]
  %s2 = inlined_call_operand.vmem [shape: bf16[3,2,4], index: 2, kind: input, shape index: {}]
  %s3 = inlined_call_operand.vmem [shape: bf16[512,4], index: 3, kind: output, shape index: {0}]
  %s4 = inlined_call_operand.vmem [shape: f32[2,2,4], index: 4, kind: output, shape index: {1}]
  %5 = xla_tuple %s3, %s4
  %s6 = sld [smem:[#allocation0]]
  $region53: #{_lambda_.3} parent=0
    _
  %s8 = ssub.s32 1, %s6
  %s9 = scalar_select 0, %s8, %s6
  loop: start=0, step=1, limit=4
  $region2: #{_lambda_.3} parent=0 // loop_pre_header
    _
  $region3: #{_lambda_.3} parent=0 // loop_header
    %s11 = sphi 0, %s15
    %p12 = scmp.ge.s32.totalorder %s11, 4
    %s21 = sphi 0, %s23
    %s24 = sphi 0, %s21
    %s25 = sphi 0, %s24
    %s41 = sphi 0, %s25
    %s45 = sphi 0, %s45
    %s47 = sphi 0, %s45
    %s48 = sphi 0, %s47
    %s62 = sphi 0, %s48
    %s66 = sphi 0, %s66
    %s68 = sphi 0, %s66
    %s69 = sphi 0, %s68
    %s83 = sphi 0, %s69
    %s89 = sphi 0, %s91
    %s92 = sphi 0, %s89
    %s93 = sphi 0, %s92
    %s109 = sphi 0, %s93
    %s115 = sphi 0, %s117
    %s118 = sphi 0, %s115
    %s119 = sphi 0, %s118
    %s135 = sphi 0, %s119
  $region4: #{_lambda_.3} parent=0 // loop_header_branch
    %14 = sbr.rel (%p12) target = $region8
  $region5: #{_lambda_.3} parent=0 // loop_body
    %s16 = ssub.s32 %s11, 1
    %s17 = ssub.s32 %s11, 2
    %s18 = sadd.s32 %s11, 1
    %s19 = ssub.s32 %s11, %s18
    %p20 = scmp.eq.s32.totalorder %s19, 0
    %s22 = sadd.s32 %s21, 1
    %s23 = scalar_select %p20, %s21, %s22
    %p26 = pneg %p20
    %p27 = scmp.eq.s32.totalorder %s11, 1
    %p28 = por %p26, %p27
    %p29 = scmp.ne.s32.totalorder %s21, %s24
    %p30 = scmp.eq.s32.totalorder %s11, 0
    %p31 = por %p29, %p30
    %p32 = scmp.ne.s32.totalorder %s21, %s24
    %p33 = scmp.eq.s32.totalorder %s16, 1
    %p34 = por %p32, %p33
    %p35 = scmp.ne.s32.totalorder %s24, %s25
    %p36 = scmp.eq.s32.totalorder %s16, 0
    %p37 = por %p35, %p36
    %p38 = scmp.ne.s32.totalorder %s24, %s25
    %p39 = scmp.eq.s32.totalorder %s17, 1
    %p40 = por %p38, %p39
    %p42 = scmp.ne.s32.totalorder %s25, %s41
    %p43 = scmp.eq.s32.totalorder %s17, 0
    %p44 = por %p42, %p43
    %s46 = sadd.s32 %s45, 1
    %p49 = scmp.eq.s32.totalorder %s11, 1
    %p50 = scmp.ne.s32.totalorder %s45, %s47
    %p51 = scmp.eq.s32.totalorder %s11, 0
    %p52 = por %p50, %p51
    %p53 = scmp.ne.s32.totalorder %s45, %s47
    %p54 = scmp.eq.s32.totalorder %s16, 1
    %p55 = por %p53, %p54
    %p56 = scmp.ne.s32.totalorder %s47, %s48
    %p57 = scmp.eq.s32.totalorder %s16, 0
    %p58 = por %p56, %p57
    %p59 = scmp.ne.s32.totalorder %s47, %s48
    %p60 = scmp.eq.s32.totalorder %s17, 1
    %p61 = por %p59, %p60
    %p63 = scmp.ne.s32.totalorder %s48, %s62
    %p64 = scmp.eq.s32.totalorder %s17, 0
    %p65 = por %p63, %p64
    %s67 = sadd.s32 %s66, 1
    %p70 = scmp.eq.s32.totalorder %s11, 1
    %p71 = scmp.ne.s32.totalorder %s66, %s68
    %p72 = scmp.eq.s32.totalorder %s11, 0
    %p73 = por %p71, %p72
    %p74 = scmp.ne.s32.totalorder %s66, %s68
    %p75 = scmp.eq.s32.totalorder %s16, 1
    %p76 = por %p74, %p75
    %p77 = scmp.ne.s32.totalorder %s68, %s69
    %p78 = scmp.eq.s32.totalorder %s16, 0
    %p79 = por %p77, %p78
    %p80 = scmp.ne.s32.totalorder %s68, %s69
    %p81 = scmp.eq.s32.totalorder %s17, 1
    %p82 = por %p80, %p81
    %p84 = scmp.ne.s32.totalorder %s69, %s83
    %p85 = scmp.eq.s32.totalorder %s17, 0
    %p86 = por %p84, %p85
    %s87 = ssub.s32 %s11, %s18
    %p88 = scmp.eq.s32.totalorder %s87, 0
    %s90 = sadd.s32 %s89, 1
    %s91 = scalar_select %p88, %s89, %s90
    %p94 = pneg %p88
    %p95 = scmp.eq.s32.totalorder %s11, 1
    %p96 = por %p94, %p95
    %p97 = scmp.ne.s32.totalorder %s89, %s92
    %p98 = scmp.eq.s32.totalorder %s11, 0
    %p99 = por %p97, %p98
    %p100 = scmp.ne.s32.totalorder %s89, %s92
    %p101 = scmp.eq.s32.totalorder %s16, 1
    %p102 = por %p100, %p101
    %p103 = scmp.ne.s32.totalorder %s92, %s93
    %p104 = scmp.eq.s32.totalorder %s16, 0
    %p105 = por %p103, %p104
    %p106 = scmp.ne.s32.totalorder %s92, %s93
    %p107 = scmp.eq.s32.totalorder %s17, 1
    %p108 = por %p106, %p107
    %p110 = scmp.ne.s32.totalorder %s93, %s109
    %p111 = scmp.eq.s32.totalorder %s17, 0
    %p112 = por %p110, %p111
    %s113 = ssub.s32 %s11, %s18
    %p114 = scmp.eq.s32.totalorder %s113, 0
    %s116 = sadd.s32 %s115, 1
    %s117 = scalar_select %p114, %s115, %s116
    %p120 = pneg %p114
    %p121 = scmp.eq.s32.totalorder %s11, 1
    %p122 = por %p120, %p121
    %p123 = scmp.ne.s32.totalorder %s115, %s118
    %p124 = scmp.eq.s32.totalorder %s11, 0
    %p125 = por %p123, %p124
    %p126 = scmp.ne.s32.totalorder %s115, %s118
    %p127 = scmp.eq.s32.totalorder %s16, 1
    %p128 = por %p126, %p127
    %p129 = scmp.ne.s32.totalorder %s118, %s119
    %p130 = scmp.eq.s32.totalorder %s16, 0
    %p131 = por %p129, %p130
    %p132 = scmp.ne.s32.totalorder %s118, %s119
    %p133 = scmp.eq.s32.totalorder %s17, 1
    %p134 = por %p132, %p133
    %p136 = scmp.ne.s32.totalorder %s119, %s135
    %p137 = scmp.eq.s32.totalorder %s17, 0
    %p138 = por %p136, %p137
    %p139 = scmp.le.s32.totalorder 1, %s11
    %p140 = scmp.lt.s32.totalorder %s11, 3
    %p141 = pnand %p139, %p140
    %p142 = pneg %p141
    // Predicated region
    $region9: #{_lambda_.3} parent=5 // pred_check
      _
    $region10: #{_lambda_.3} parent=5 // pred_check_branch
      %144 = sbr.rel (%p141) target = $region12
    $region11: #{_lambda_.3} parent=5 // pred_region
      %s145 = ssub.s32 %s11, 1
      // Predicated region
      $region13: #{_lambda_.3} parent=11 // pred_check
        %p146 = pneg %p58
      $region14: #{_lambda_.3} parent=11 // pred_check_branch
        %148 = sbr.rel (%p146) target = $region16
      $region15: #{_lambda_.3} parent=11 // pred_region
        _
      $region16: #{_lambda_.3} parent=11 // pred_fallthru
        _
      // Predicated region
      $region17: #{_lambda_.3} parent=11 // pred_check
        %p149 = pneg %p79
      $region18: #{_lambda_.3} parent=11 // pred_check_branch
        %151 = sbr.rel (%p149) target = $region20
      $region19: #{_lambda_.3} parent=11 // pred_region
        _
      $region20: #{_lambda_.3} parent=11 // pred_fallthru
        _
    $region12: #{_lambda_.3} parent=5 // pred_fallthru
      _
    %p152 = scmp.lt.s32.totalorder %s11, 2
    // Predicated region
    $region21: #{_lambda_.3} parent=5 // pred_check
      %p153 = pneg %p152
    $region22: #{_lambda_.3} parent=5 // pred_check_branch
      %155 = sbr.rel (%p153) target = $region24
    $region23: #{_lambda_.3} parent=5 // pred_region
      // Predicated region
      $region25: #{_lambda_.3} parent=23 // pred_check
        %p156 = pneg %p31
      $region26: #{_lambda_.3} parent=23 // pred_check_branch
        %158 = sbr.rel (%p156) target = $region28
      $region27: #{_lambda_.3} parent=23 // pred_region
        %s159 = smul.u32 32, %s11
        %p160 = scmp.lt.s32.totalorder %s159, 63
        %s161 = scalar_select %p160, %s159, 63
        %s162 = smul.addr %s161, 8
        %s163 = scalar_lea.vmem %s0, %s162
        %s164 = smul.u32 32, %s11
      $region28: #{_lambda_.3} parent=23 // pred_fallthru
        _
    $region24: #{_lambda_.3} parent=5 // pred_fallthru
      _
    %p165 = scmp.le.s32.totalorder 1, %s11
    %p166 = scmp.lt.s32.totalorder %s11, 3
    %p167 = pnand %p165, %p166
    %p168 = pneg %p167
    // Predicated region
    $region29: #{_lambda_.3} parent=5 // pred_check
      _
    $region30: #{_lambda_.3} parent=5 // pred_check_branch
      %170 = sbr.rel (%p167) target = $region32
    $region31: #{_lambda_.3} parent=5 // pred_region
      %s171 = ssub.s32 %s11, 1
      %s172 = smul.u32 32, %s16
      %p173 = scmp.lt.s32.totalorder %s172, 63
      %s174 = scalar_select %p173, %s172, 63
      %s175 = smul.addr %s174, 8
      %s176 = scalar_lea.vmem %s0, %s175
      %p177 = pneg %p37
      %p178 = pneg %p34
      %p179 = pneg %p58
      %p180 = pneg %p55
      %p181 = pneg %p79
      %p182 = pneg %p76
      %p183 = pneg %p105
      %p184 = pneg %p102
      %s185 = smul.u32 32, %s16
      %p186 = scmp.lt.s32.totalorder %s185, 63
      %s187 = scalar_select %p186, %s185, 63
      %s188 = smul.addr %s187, 4
      %s189 = scalar_lea.vmem %s3, %s188
      %p190 = pneg %p131
      %p191 = pneg %p128
      %p192 = scmp.lt.s32.totalorder %s16, 1
      %s193 = scalar_select %p192, %s16, 1
      %s194 = smul.addr %s193, 2
      %s195 = scalar_lea.vmem %s4, %s194
      %s196 = smul.u32 32, %s16
      %p197 = scmp.lt.s32.totalorder %s196, 63
      %s198 = scalar_select %p197, %s196, 63
      %s199 = smul.addr %s198, 8
      %s200 = scalar_lea.vmem %s0, %s199
      %s201 = smul.u32 32, %s16
      %s202 = smul.u32 32, %s16
      %p203 = scmp.lt.s32.totalorder %s202, 63
      %s204 = scalar_select %p203, %s202, 63
      %s205 = smul.addr %s204, 4
      %s206 = scalar_lea.vmem %s3, %s205
      %s207 = smul.u32 32, %s16
      %p208 = scmp.lt.s32.totalorder %s16, 1
      %s209 = scalar_select %p208, %s16, 1
      %s210 = smul.addr %s209, 2
      %s211 = scalar_lea.vmem %s4, %s210
      %v213 = vld [vmem:[%s200] sm:$0xff]
      %v214 = vld [vmem:[%s200 + $0x8] sm:$0xff]
      %v215 = vld [vmem:[%s200 + $0x10] sm:$0xff]
      %v216 = vld [vmem:[%s200 + $0x18] sm:$0xff]
      %v217 = vld [vmem:[%s200 + $0x20] sm:$0xff]
      %v218 = vld [vmem:[%s200 + $0x28] sm:$0xff]
      %v219 = vld [vmem:[%s200 + $0x30] sm:$0xff]
      %v220 = vld [vmem:[%s200 + $0x38] sm:$0xff]
      %v221 = vld [vmem:[%s200 + $0x40] sm:$0xff]
      %v222 = vld [vmem:[%s200 + $0x48] sm:$0xff]
      %v223 = vld [vmem:[%s200 + $0x50] sm:$0xff]
      %v224 = vld [vmem:[%s200 + $0x58] sm:$0xff]
      %v225 = vld [vmem:[%s200 + $0x60] sm:$0xff]
      %v226 = vld [vmem:[%s200 + $0x68] sm:$0xff]
      %v227 = vld [vmem:[%s200 + $0x70] sm:$0xff]
      %v228 = vld [vmem:[%s200 + $0x78] sm:$0xff]
      %v229 = vld [vmem:[%s200 + $0x80] sm:$0xff]
      %v230 = vld [vmem:[%s200 + $0x88] sm:$0xff]
      %v231 = vld [vmem:[%s200 + $0x90] sm:$0xff]
      %v232 = vld [vmem:[%s200 + $0x98] sm:$0xff]
      %v233 = vld [vmem:[%s200 + $0xa0] sm:$0xff]
      %v234 = vld [vmem:[%s200 + $0xa8] sm:$0xff]
      %v235 = vld [vmem:[%s200 + $0xb0] sm:$0xff]
      %v236 = vld [vmem:[%s200 + $0xb8] sm:$0xff]
      %v237 = vld [vmem:[%s200 + $0xc0] sm:$0xff]
      %v238 = vld [vmem:[%s200 + $0xc8] sm:$0xff]
      %v239 = vld [vmem:[%s200 + $0xd0] sm:$0xff]
      %v240 = vld [vmem:[%s200 + $0xd8] sm:$0xff]
      %v241 = vld [vmem:[%s200 + $0xe0] sm:$0xff]
      %v242 = vld [vmem:[%s200 + $0xe8] sm:$0xff]
      %v243 = vld [vmem:[%s200 + $0xf0] sm:$0xff]
      %v244 = vld [vmem:[%s200 + $0xf8] sm:$0xff]
      %v245 = vld [vmem:[%s1] sm:$0x3]
      %v246 = vld [vmem:[%s1 + $0x2] sm:$0x3]
      %v247 = vld [vmem:[%s1 + $0x4] sm:$0x3]
      %v248 = vld [vmem:[%s2] sm:$0x1]
      %v249 = vld [vmem:[%s2 + $0x1] sm:$0x1]
      %v250 = vld [vmem:[%s2 + $0x2] sm:$0x1]
      %v251 = vlaneseq
      %v252 = vshrl.u32 %v251, 7
      %v253 = vadd.s32 %v252, 8
      %vm254 = vcmp.gt.s32.totalorder %v252, 0
      %vm255 = vcmp.gt.s32.totalorder %v253, 0
      %v256 = vrot.slane %v213, 7
      %v257 = vrot.slane %v214, 7
      %v258 = vrot.slane %v215, 7
      %v259 = vrot.slane %v216, 7
      %v260 = vrot.slane %v217, 7
      %v261 = vrot.slane %v218, 7
      %v262 = vrot.slane %v219, 7
      %v263 = vrot.slane %v220, 7
      %v264 = vrot.slane %v221, 7
      %v265 = vrot.slane %v222, 7
      %v266 = vrot.slane %v223, 7
      %v267 = vrot.slane %v224, 7
      %v268 = vrot.slane %v225, 7
      %v269 = vrot.slane %v226, 7
      %v270 = vrot.slane %v227, 7
      %v271 = vrot.slane %v228, 7
      %v272 = vrot.slane %v229, 7
      %v273 = vrot.slane %v230, 7
      %v274 = vrot.slane %v231, 7
      %v275 = vrot.slane %v232, 7
      %v276 = vrot.slane %v233, 7
      %v277 = vrot.slane %v234, 7
      %v278 = vrot.slane %v235, 7
      %v279 = vrot.slane %v236, 7
      %v280 = vrot.slane %v237, 7
      %v281 = vrot.slane %v238, 7
      %v282 = vrot.slane %v239, 7
      %v283 = vrot.slane %v240, 7
      %v284 = vrot.slane %v241, 7
      %v285 = vrot.slane %v242, 7
      %v286 = vrot.slane %v243, 7
      %v287 = vrot.slane %v244, 7
      %vm288 = vcmp.lt.s32.totalorder %v252, 1
      %v289 = vsel %vm288, %v286, %v287
      %v290 = vsel %vm288, %v285, %v286
      %v291 = vsel %vm288, %v284, %v285
      %v292 = vsel %vm288, %v283, %v284
      %v293 = vsel %vm288, %v282, %v283
      %v294 = vsel %vm288, %v281, %v282
      %v295 = vsel %vm288, %v280, %v281
      %v296 = vsel %vm288, %v279, %v280
      %v297 = vsel %vm288, %v278, %v279
      %v298 = vsel %vm288, %v277, %v278
      %v299 = vsel %vm288, %v276, %v277
      %v300 = vsel %vm288, %v275, %v276
      %v301 = vsel %vm288, %v274, %v275
      %v302 = vsel %vm288, %v273, %v274
      %v303 = vsel %vm288, %v272, %v273
      %v304 = vsel %vm288, %v271, %v272
      %v305 = vsel %vm288, %v270, %v271
      %v306 = vsel %vm288, %v269, %v270
      %v307 = vsel %vm288, %v268, %v269
      %v308 = vsel %vm288, %v267, %v268
      %v309 = vsel %vm288, %v266, %v267
      %v310 = vsel %vm288, %v265, %v266
      %v311 = vsel %vm288, %v264, %v265
      %v312 = vsel %vm288, %v263, %v264
      %v313 = vsel %vm288, %v262, %v263
      %v314 = vsel %vm288, %v261, %v262
      %v315 = vsel %vm288, %v260, %v261
      %v316 = vsel %vm288, %v259, %v260
      %v317 = vsel %vm288, %v258, %v259
      %v318 = vsel %vm288, %v257, %v258
      %v319 = vsel %vm288, %v256, %v257
      %v320 = vsel %vm288, %v287, %v256
      %v321 = vsel %vm254, %v320, 0.0
      %v322 = vsel %vm255, %v319, 0.0
      %v323 = vsel %vm254, %v318, 0.0
      %v324 = vsel %vm255, %v317, 0.0
      %v325 = vsel %vm254, %v316, 0.0
      %v326 = vsel %vm255, %v315, 0.0
      %v327 = vsel %vm254, %v314, 0.0
      %v328 = vsel %vm255, %v313, 0.0
      %v329 = vsel %vm254, %v312, 0.0
      %v330 = vsel %vm255, %v311, 0.0
      %v331 = vsel %vm254, %v310, 0.0
      %v332 = vsel %vm255, %v309, 0.0
      %v333 = vsel %vm254, %v308, 0.0
      %v334 = vsel %vm255, %v307, 0.0
      %v335 = vsel %vm254, %v306, 0.0
      %v336 = vsel %vm255, %v305, 0.0
      %v337 = vsel %vm254, %v304, 0.0
      %v338 = vsel %vm255, %v303, 0.0
      %v339 = vsel %vm254, %v302, 0.0
      %v340 = vsel %vm255, %v301, 0.0
      %v341 = vsel %vm254, %v300, 0.0
      %v342 = vsel %vm255, %v299, 0.0
      %v343 = vsel %vm254, %v298, 0.0
      %v344 = vsel %vm255, %v297, 0.0
      %v345 = vsel %vm254, %v296, 0.0
      %v346 = vsel %vm255, %v295, 0.0
      %v347 = vsel %vm254, %v294, 0.0
      %v348 = vsel %vm255, %v293, 0.0
      %v349 = vsel %vm254, %v292, 0.0
      %v350 = vsel %vm255, %v291, 0.0
      %v351 = vsel %vm254, %v290, 0.0
      %v352 = vsel %vm255, %v289, 0.0
      %vm353 = vcmp.lt.s32.totalorder %v252, 15
      %vm354 = vcmp.lt.s32.totalorder %v253, 15
      %v355 = vrot.slane %v213, 1
      %v356 = vrot.slane %v214, 1
      %v357 = vrot.slane %v215, 1
      %v358 = vrot.slane %v216, 1
      %v359 = vrot.slane %v217, 1
      %v360 = vrot.slane %v218, 1
      %v361 = vrot.slane %v219, 1
      %v362 = vrot.slane %v220, 1
      %v363 = vrot.slane %v221, 1
      %v364 = vrot.slane %v222, 1
      %v365 = vrot.slane %v223, 1
      %v366 = vrot.slane %v224, 1
      %v367 = vrot.slane %v225, 1
      %v368 = vrot.slane %v226, 1
      %v369 = vrot.slane %v227, 1
      %v370 = vrot.slane %v228, 1
      %v371 = vrot.slane %v229, 1
      %v372 = vrot.slane %v230, 1
      %v373 = vrot.slane %v231, 1
      %v374 = vrot.slane %v232, 1
      %v375 = vrot.slane %v233, 1
      %v376 = vrot.slane %v234, 1
      %v377 = vrot.slane %v235, 1
      %v378 = vrot.slane %v236, 1
      %v379 = vrot.slane %v237, 1
      %v380 = vrot.slane %v238, 1
      %v381 = vrot.slane %v239, 1
      %v382 = vrot.slane %v240, 1
      %v383 = vrot.slane %v241, 1
      %v384 = vrot.slane %v242, 1
      %v385 = vrot.slane %v243, 1
      %v386 = vrot.slane %v244, 1
      %vm387 = vcmp.lt.s32.totalorder %v252, 7
      %v388 = vsel %vm387, %v385, %v386
      %v389 = vsel %vm387, %v384, %v385
      %v390 = vsel %vm387, %v383, %v384
      %v391 = vsel %vm387, %v382, %v383
      %v392 = vsel %vm387, %v381, %v382
      %v393 = vsel %vm387, %v380, %v381
      %v394 = vsel %vm387, %v379, %v380
      %v395 = vsel %vm387, %v378, %v379
      %v396 = vsel %vm387, %v377, %v378
      %v397 = vsel %vm387, %v376, %v377
      %v398 = vsel %vm387, %v375, %v376
      %v399 = vsel %vm387, %v374, %v375
      %v400 = vsel %vm387, %v373, %v374
      %v401 = vsel %vm387, %v372, %v373
      %v402 = vsel %vm387, %v371, %v372
      %v403 = vsel %vm387, %v370, %v371
      %v404 = vsel %vm387, %v369, %v370
      %v405 = vsel %vm387, %v368, %v369
      %v406 = vsel %vm387, %v367, %v368
      %v407 = vsel %vm387, %v366, %v367
      %v408 = vsel %vm387, %v365, %v366
      %v409 = vsel %vm387, %v364, %v365
      %v410 = vsel %vm387, %v363, %v364
      %v411 = vsel %vm387, %v362, %v363
      %v412 = vsel %vm387, %v361, %v362
      %v413 = vsel %vm387, %v360, %v361
      %v414 = vsel %vm387, %v359, %v360
      %v415 = vsel %vm387, %v358, %v359
      %v416 = vsel %vm387, %v357, %v358
      %v417 = vsel %vm387, %v356, %v357
      %v418 = vsel %vm387, %v355, %v356
      %v419 = vsel %vm387, %v386, %v355
      %v420 = vsel %vm353, %v418, 0.0
      %v421 = vsel %vm354, %v417, 0.0
      %v422 = vsel %vm353, %v416, 0.0
      %v423 = vsel %vm354, %v415, 0.0
      %v424 = vsel %vm353, %v414, 0.0
      %v425 = vsel %vm354, %v413, 0.0
      %v426 = vsel %vm353, %v412, 0.0
      %v427 = vsel %vm354, %v411, 0.0
      %v428 = vsel %vm353, %v410, 0.0
      %v429 = vsel %vm354, %v409, 0.0
      %v430 = vsel %vm353, %v408, 0.0
      %v431 = vsel %vm354, %v407, 0.0
      %v432 = vsel %vm353, %v406, 0.0
      %v433 = vsel %vm354, %v405, 0.0
      %v434 = vsel %vm353, %v404, 0.0
      %v435 = vsel %vm354, %v403, 0.0
      %v436 = vsel %vm353, %v402, 0.0
      %v437 = vsel %vm354, %v401, 0.0
      %v438 = vsel %vm353, %v400, 0.0
      %v439 = vsel %vm354, %v399, 0.0
      %v440 = vsel %vm353, %v398, 0.0
      %v441 = vsel %vm354, %v397, 0.0
      %v442 = vsel %vm353, %v396, 0.0
      %v443 = vsel %vm354, %v395, 0.0
      %v444 = vsel %vm353, %v394, 0.0
      %v445 = vsel %vm354, %v393, 0.0
      %v446 = vsel %vm353, %v392, 0.0
      %v447 = vsel %vm354, %v391, 0.0
      %v448 = vsel %vm353, %v390, 0.0
      %v449 = vsel %vm354, %v389, 0.0
      %v450 = vsel %vm353, %v388, 0.0
      %v451 = vsel %vm354, %v419, 0.0
      %v452 = vpack.c.bf16 %v322, %v321
      %v453 = vpack.c.bf16 %v324, %v323
      %v454 = vpack.c.bf16 %v326, %v325
      %v455 = vpack.c.bf16 %v328, %v327
      %v456 = vpack.c.bf16 %v330, %v329
      %v457 = vpack.c.bf16 %v332, %v331
      %v458 = vpack.c.bf16 %v334, %v333
      %v459 = vpack.c.bf16 %v336, %v335
      %v460 = vpack.c.bf16 %v338, %v337
      %v461 = vpack.c.bf16 %v340, %v339
      %v462 = vpack.c.bf16 %v342, %v341
      %v463 = vpack.c.bf16 %v344, %v343
      %v464 = vpack.c.bf16 %v346, %v345
      %v465 = vpack.c.bf16 %v348, %v347
      %v466 = vpack.c.bf16 %v350, %v349
      %v467 = vpack.c.bf16 %v352, %v351
      %v468 = vpack.c.bf16 %v214, %v213
      %v469 = vpack.c.bf16 %v216, %v215
      %v470 = vpack.c.bf16 %v218, %v217
      %v471 = vpack.c.bf16 %v220, %v219
      %v472 = vpack.c.bf16 %v222, %v221
      %v473 = vpack.c.bf16 %v224, %v223
      %v474 = vpack.c.bf16 %v226, %v225
      %v475 = vpack.c.bf16 %v228, %v227
      %v476 = vpack.c.bf16 %v230, %v229
      %v477 = vpack.c.bf16 %v232, %v231
      %v478 = vpack.c.bf16 %v234, %v233
      %v479 = vpack.c.bf16 %v236, %v235
      %v480 = vpack.c.bf16 %v238, %v237
      %v481 = vpack.c.bf16 %v240, %v239
      %v482 = vpack.c.bf16 %v242, %v241
      %v483 = vpack.c.bf16 %v244, %v243
      %vm484 = vcmask 31744
      %v486 = vsel %vm484, %v468, 0
      %v489 = vsel %vm484, %v469, 0
      %v492 = vsel %vm484, %v470, 0
      %v495 = vsel %vm484, %v471, 0
      %v498 = vsel %vm484, %v472, 0
      %v501 = vsel %vm484, %v473, 0
      %v504 = vsel %vm484, %v474, 0
      %v507 = vsel %vm484, %v475, 0
      %v510 = vsel %vm484, %v476, 0
      %v513 = vsel %vm484, %v477, 0
      %v516 = vsel %vm484, %v478, 0
      %v519 = vsel %vm484, %v479, 0
      %v522 = vsel %vm484, %v480, 0
      %v525 = vsel %vm484, %v481, 0
      %v528 = vsel %vm484, %v482, 0
      %v531 = vsel %vm484, %v483, 0
      %vm533 = vcmask 1041408
      %v535 = vsel %vm533, %v246, 0
      %537 = vmatprep.subr.bf16.mxu0 0
      %538 = vmatpush1.bf16.msra.mxu0 %v535
      %539 = vmatprep.subr.bf16.mxu0 0
      %540 = vmatpush1.bf16.msra.mxu0 0
      %541 = vmatprep.subr.bf16.mxu0 0
      %542 = vmatpush1.bf16.msra.mxu0 0
      %543 = vmatprep.subr.bf16.mxu0 0
      %544 = vmatpush1.bf16.msra.mxu0 0
      %545 = vmatprep.subr.bf16.mxu0 0
      %546 = vmatpush1.bf16.msra.mxu0 0
      %547 = vmatprep.subr.bf16.mxu0 0
      %548 = vmatpush1.bf16.msra.mxu0 0
      %549 = vmatprep.subr.bf16.mxu0 0
      %550 = vmatpush1.bf16.msra.mxu0 0
      %551 = vmatprep.subr.bf16.mxu0 0
      %552 = vmatpush1.bf16.msra.mxu0 0
      %553 = vmatprep.subr.bf16.mxu0 0
      %554 = vmatpush1.bf16.msra.mxu0 0
      %555 = vmatprep.subr.bf16.mxu0 0
      %556 = vmatpush1.bf16.msra.mxu0 0
      %557 = vmatprep.subr.bf16.mxu0 0
      %558 = vmatpush1.bf16.msra.mxu0 0
      %559 = vmatprep.subr.bf16.mxu0 0
      %560 = vmatpush1.bf16.msra.mxu0 0
      %561 = vmatprep.subr.bf16.mxu0 0
      %562 = vmatpush1.bf16.msra.mxu0 0
      %563 = vmatprep.subr.bf16.mxu0 0
      %564 = vmatpush1.bf16.msra.mxu0 0
      %565 = vmatprep.subr.bf16.mxu0 0
      %566 = vmatpush1.bf16.msra.mxu0 0
      %567 = vmatprep.subr.bf16.mxu0 0
      %568 = vmatpush1.bf16.msra.mxu0 0
      %569 = vmatprep.mubr.bf16.mxu0 0
      %570 = vmatmul.mubr.bf16.gmra.mrb[0].mxu0 %v486
      %v571 = vpop.f32.mrb[0].mxu0
      %v572 = vadd.f32 0.0, %v571
      %v573 = vpop.f32.mrb[0].mxu0
      %v574 = vpop.f32.mrb[0].mxu0
      %v575 = vadd.f32 0.0, %v574
      %v576 = vpop.f32.mrb[0].mxu0
      %577 = vmatprep.mubr.bf16.mxu0 0
      %578 = vmatmul.mubr.bf16.gmra.mrb[0].mxu0 %v489
      %v579 = vpop.f32.mrb[0].mxu0
      %v580 = vadd.f32 0.0, %v579
      %v581 = vpop.f32.mrb[0].mxu0
      %v582 = vpop.f32.mrb[0].mxu0
      %v583 = vadd.f32 0.0, %v582
      %v584 = vpop.f32.mrb[0].mxu0
      %585 = vmatprep.mubr.bf16.mxu0 0
      %586 = vmatmul.mubr.bf16.gmra.mrb[0].mxu0 %v492
      %v587 = vpop.f32.mrb[0].mxu0
      %v588 = vadd.f32 0.0, %v587
      %v589 = vpop.f32.mrb[0].mxu0
      %v590 = vpop.f32.mrb[0].mxu0
      %v591 = vadd.f32 0.0, %v590
      %v592 = vpop.f32.mrb[0].mxu0
      %593 = vmatprep.mubr.bf16.mxu0 0
      %594 = vmatmul.mubr.bf16.gmra.mrb[0].mxu0 %v495
      %v595 = vpop.f32.mrb[0].mxu0
      %v596 = vadd.f32 0.0, %v595
      %v597 = vpop.f32.mrb[0].mxu0
      %v598 = vpop.f32.mrb[0].mxu0
      %v599 = vadd.f32 0.0, %v598
      %v600 = vpop.f32.mrb[0].mxu0
      %601 = vmatprep.mubr.bf16.mxu0 0
      %602 = vmatmul.mubr.bf16.gmra.mrb[0].mxu0 %v498
      %v603 = vpop.f32.mrb[0].mxu0
      %v604 = vadd.f32 0.0, %v603
      %v605 = vpop.f32.mrb[0].mxu0
      %v606 = vpop.f32.mrb[0].mxu0
      %v607 = vadd.f32 0.0, %v606
      %v608 = vpop.f32.mrb[0].mxu0
      %609 = vmatprep.mubr.bf16.mxu0 0
      %610 = vmatmul.mubr.bf16.gmra.mrb[0].mxu0 %v501
      %v611 = vpop.f32.mrb[0].mxu0
      %v612 = vadd.f32 0.0, %v611
      %v613 = vpop.f32.mrb[0].mxu0
      %v614 = vpop.f32.mrb[0].mxu0
      %v615 = vadd.f32 0.0, %v614
      %v616 = vpop.f32.mrb[0].mxu0
      %617 = vmatprep.mubr.bf16.mxu0 0
      %618 = vmatmul.mubr.bf16.gmra.mrb[0].mxu0 %v504
      %v619 = vpop.f32.mrb[0].mxu0
      %v620 = vadd.f32 0.0, %v619
      %v621 = vpop.f32.mrb[0].mxu0
      %v622 = vpop.f32.mrb[0].mxu0
      %v623 = vadd.f32 0.0, %v622
      %v624 = vpop.f32.mrb[0].mxu0
      %625 = vmatprep.mubr.bf16.mxu0 0
      %626 = vmatmul.mubr.bf16.gmra.mrb[0].mxu0 %v507
      %v627 = vpop.f32.mrb[0].mxu0
      %v628 = vadd.f32 0.0, %v627
      %v629 = vpop.f32.mrb[0].mxu0
      %v630 = vpop.f32.mrb[0].mxu0
      %v631 = vadd.f32 0.0, %v630
      %v632 = vpop.f32.mrb[0].mxu0
      %633 = vmatprep.mubr.bf16.mxu0 0
      %634 = vmatmul.mubr.bf16.gmra.mrb[0].mxu0 %v510
      %v635 = vpop.f32.mrb[0].mxu0
      %v636 = vadd.f32 0.0, %v635
      %v637 = vpop.f32.mrb[0].mxu0
      %v638 = vpop.f32.mrb[0].mxu0
      %v639 = vadd.f32 0.0, %v638
      %v640 = vpop.f32.mrb[0].mxu0
      %641 = vmatprep.mubr.bf16.mxu0 0
      %642 = vmatmul.mubr.bf16.gmra.mrb[0].mxu0 %v513
      %v643 = vpop.f32.mrb[0].mxu0
      %v644 = vadd.f32 0.0, %v643
      %v645 = vpop.f32.mrb[0].mxu0
      %v646 = vpop.f32.mrb[0].mxu0
      %v647 = vadd.f32 0.0, %v646
      %v648 = vpop.f32.mrb[0].mxu0
      %649 = vmatprep.mubr.bf16.mxu0 0
      %650 = vmatmul.mubr.bf16.gmra.mrb[0].mxu0 %v516
      %v651 = vpop.f32.mrb[0].mxu0
      %v652 = vadd.f32 0.0, %v651
      %v653 = vpop.f32.mrb[0].mxu0
      %v654 = vpop.f32.mrb[0].mxu0
      %v655 = vadd.f32 0.0, %v654
      %v656 = vpop.f32.mrb[0].mxu0
      %657 = vmatprep.mubr.bf16.mxu0 0
      %658 = vmatmul.mubr.bf16.gmra.mrb[0].mxu0 %v519
      %v659 = vpop.f32.mrb[0].mxu0
      %v660 = vadd.f32 0.0, %v659
      %v661 = vpop.f32.mrb[0].mxu0
      %v662 = vpop.f32.mrb[0].mxu0
      %v663 = vadd.f32 0.0, %v662
      %v664 = vpop.f32.mrb[0].mxu0
      %665 = vmatprep.mubr.bf16.mxu0 0
      %666 = vmatmul.mubr.bf16.gmra.mrb[0].mxu0 %v522
      %v667 = vpop.f32.mrb[0].mxu0
      %v668 = vadd.f32 0.0, %v667
      %v669 = vpop.f32.mrb[0].mxu0
      %v670 = vpop.f32.mrb[0].mxu0
      %v671 = vadd.f32 0.0, %v670
      %v672 = vpop.f32.mrb[0].mxu0
      %673 = vmatprep.mubr.bf16.mxu0 0
      %674 = vmatmul.mubr.bf16.gmra.mrb[0].mxu0 %v525
      %v675 = vpop.f32.mrb[0].mxu0
      %v676 = vadd.f32 0.0, %v675
      %v677 = vpop.f32.mrb[0].mxu0
      %v678 = vpop.f32.mrb[0].mxu0
      %v679 = vadd.f32 0.0, %v678
      %v680 = vpop.f32.mrb[0].mxu0
      %681 = vmatprep.mubr.bf16.mxu0 0
      %682 = vmatmul.mubr.bf16.gmra.mrb[0].mxu0 %v528
      %v683 = vpop.f32.mrb[0].mxu0
      %v684 = vadd.f32 0.0, %v683
      %v685 = vpop.f32.mrb[0].mxu0
      %v686 = vpop.f32.mrb[0].mxu0
      %v687 = vadd.f32 0.0, %v686
      %v688 = vpop.f32.mrb[0].mxu0
      %689 = vmatprep.mubr.bf16.mxu0 0
      %690 = vmatmul.mubr.bf16.gmra.mrb[0].mxu0 %v531
      %v691 = vpop.f32.mrb[0].mxu0
      %v692 = vadd.f32 0.0, %v691
      %v693 = vpop.f32.mrb[0].mxu0
      %v694 = vpop.f32.mrb[0].mxu0
      %v695 = vadd.f32 0.0, %v694
      %v696 = vpop.f32.mrb[0].mxu0
      %697 = vdwg.mxu0
      %v699 = vsel %vm484, %v452, 0
      %v702 = vsel %vm484, %v453, 0
      %v705 = vsel %vm484, %v454, 0
      %v708 = vsel %vm484, %v455, 0
      %v711 = vsel %vm484, %v456, 0
      %v714 = vsel %vm484, %v457, 0
      %v717 = vsel %vm484, %v458, 0
      %v720 = vsel %vm484, %v459, 0
      %v723 = vsel %vm484, %v460, 0
      %v726 = vsel %vm484, %v461, 0
      %v729 = vsel %vm484, %v462, 0
      %v732 = vsel %vm484, %v463, 0
      %v735 = vsel %vm484, %v464, 0
      %v738 = vsel %vm484, %v465, 0
      %v741 = vsel %vm484, %v466, 0
      %v744 = vsel %vm484, %v467, 0
      %v747 = vsel %vm533, %v245, 0
      %749 = vmatprep.subr.bf16.mxu0 0
      %750 = vmatpush1.bf16.msra.mxu0 %v747
      %751 = vmatprep.subr.bf16.mxu0 0
      %752 = vmatpush1.bf16.msra.mxu0 0
      %753 = vmatprep.subr.bf16.mxu0 0
      %754 = vmatpush1.bf16.msra.mxu0 0
      %755 = vmatprep.subr.bf16.mxu0 0
      %756 = vmatpush1.bf16.msra.mxu0 0
      %757 = vmatprep.subr.bf16.mxu0 0
      %758 = vmatpush1.bf16.msra.mxu0 0
      %759 = vmatprep.subr.bf16.mxu0 0
      %760 = vmatpush1.bf16.msra.mxu0 0
      %761 = vmatprep.subr.bf16.mxu0 0
      %762 = vmatpush1.bf16.msra.mxu0 0
      %763 = vmatprep.subr.bf16.mxu0 0
      %764 = vmatpush1.bf16.msra.mxu0 0
      %765 = vmatprep.subr.bf16.mxu0 0
      %766 = vmatpush1.bf16.msra.mxu0 0
      %767 = vmatprep.subr.bf16.mxu0 0
      %768 = vmatpush1.bf16.msra.mxu0 0
      %769 = vmatprep.subr.bf16.mxu0 0
      %770 = vmatpush1.bf16.msra.mxu0 0
      %771 = vmatprep.subr.bf16.mxu0 0
      %772 = vmatpush1.bf16.msra.mxu0 0
      %773 = vmatprep.subr.bf16.mxu0 0
      %774 = vmatpush1.bf16.msra.mxu0 0
      %775 = vmatprep.subr.bf16.mxu0 0
      %776 = vmatpush1.bf16.msra.mxu0 0
      %777 = vmatprep.subr.bf16.mxu0 0
      %778 = vmatpush1.bf16.msra.mxu0 0
      %779 = vmatprep.subr.bf16.mxu0 0
      %780 = vmatpush1.bf16.msra.mxu0 0
      %781 = vmatprep.mubr.bf16.mxu0 0
      %782 = vmatmul.mubr.bf16.gmra.mrb[0].mxu0 %v699
      %v783 = vpop.f32.mrb[0].mxu0
      %v784 = vadd.f32 %v572, %v783
      %v785 = vpop.f32.mrb[0].mxu0
      %v786 = vpop.f32.mrb[0].mxu0
      %v787 = vadd.f32 %v575, %v786
      %v788 = vpop.f32.mrb[0].mxu0
      %789 = vmatprep.mubr.bf16.mxu0 0
      %790 = vmatmul.mubr.bf16.gmra.mrb[0].mxu0 %v702
      %v791 = vpop.f32.mrb[0].mxu0
      %v792 = vadd.f32 %v580, %v791
      %v793 = vpop.f32.mrb[0].mxu0
      %v794 = vpop.f32.mrb[0].mxu0
      %v795 = vadd.f32 %v583, %v794
      %v796 = vpop.f32.mrb[0].mxu0
      %797 = vmatprep.mubr.bf16.mxu0 0
      %798 = vmatmul.mubr.bf16.gmra.mrb[0].mxu0 %v705
      %v799 = vpop.f32.mrb[0].mxu0
      %v800 = vadd.f32 %v588, %v799
      %v801 = vpop.f32.mrb[0].mxu0
      %v802 = vpop.f32.mrb[0].mxu0
      %v803 = vadd.f32 %v591, %v802
      %v804 = vpop.f32.mrb[0].mxu0
      %805 = vmatprep.mubr.bf16.mxu0 0
      %806 = vmatmul.mubr.bf16.gmra.mrb[0].mxu0 %v708
      %v807 = vpop.f32.mrb[0].mxu0
      %v808 = vadd.f32 %v596, %v807
      %v809 = vpop.f32.mrb[0].mxu0
      %v810 = vpop.f32.mrb[0].mxu0
      %v811 = vadd.f32 %v599, %v810
      %v812 = vpop.f32.mrb[0].mxu0
      %813 = vmatprep.mubr.bf16.mxu0 0
      %814 = vmatmul.mubr.bf16.gmra.mrb[0].mxu0 %v711
      %v815 = vpop.f32.mrb[0].mxu0
      %v816 = vadd.f32 %v604, %v815
      %v817 = vpop.f32.mrb[0].mxu0
      %v818 = vpop.f32.mrb[0].mxu0
      %v819 = vadd.f32 %v607, %v818
      %v820 = vpop.f32.mrb[0].mxu0
      %821 = vmatprep.mubr.bf16.mxu0 0
      %822 = vmatmul.mubr.bf16.gmra.mrb[0].mxu0 %v714
      %v823 = vpop.f32.mrb[0].mxu0
      %v824 = vadd.f32 %v612, %v823
      %v825 = vpop.f32.mrb[0].mxu0
      %v826 = vpop.f32.mrb[0].mxu0
      %v827 = vadd.f32 %v615, %v826
      %v828 = vpop.f32.mrb[0].mxu0
      %829 = vmatprep.mubr.bf16.mxu0 0
      %830 = vmatmul.mubr.bf16.gmra.mrb[0].mxu0 %v717
      %v831 = vpop.f32.mrb[0].mxu0
      %v832 = vadd.f32 %v620, %v831
      %v833 = vpop.f32.mrb[0].mxu0
      %v834 = vpop.f32.mrb[0].mxu0
      %v835 = vadd.f32 %v623, %v834
      %v836 = vpop.f32.mrb[0].mxu0
      %837 = vmatprep.mubr.bf16.mxu0 0
      %838 = vmatmul.mubr.bf16.gmra.mrb[0].mxu0 %v720
      %v839 = vpop.f32.mrb[0].mxu0
      %v840 = vadd.f32 %v628, %v839
      %v841 = vpop.f32.mrb[0].mxu0
      %v842 = vpop.f32.mrb[0].mxu0
      %v843 = vadd.f32 %v631, %v842
      %v844 = vpop.f32.mrb[0].mxu0
      %845 = vmatprep.mubr.bf16.mxu0 0
      %846 = vmatmul.mubr.bf16.gmra.mrb[0].mxu0 %v723
      %v847 = vpop.f32.mrb[0].mxu0
      %v848 = vadd.f32 %v636, %v847
      %v849 = vpop.f32.mrb[0].mxu0
      %v850 = vpop.f32.mrb[0].mxu0
      %v851 = vadd.f32 %v639, %v850
      %v852 = vpop.f32.mrb[0].mxu0
      %853 = vmatprep.mubr.bf16.mxu0 0
      %854 = vmatmul.mubr.bf16.gmra.mrb[0].mxu0 %v726
      %v855 = vpop.f32.mrb[0].mxu0
      %v856 = vadd.f32 %v644, %v855
      %v857 = vpop.f32.mrb[0].mxu0
      %v858 = vpop.f32.mrb[0].mxu0
      %v859 = vadd.f32 %v647, %v858
      %v860 = vpop.f32.mrb[0].mxu0
      %861 = vmatprep.mubr.bf16.mxu0 0
      %862 = vmatmul.mubr.bf16.gmra.mrb[0].mxu0 %v729
      %v863 = vpop.f32.mrb[0].mxu0
      %v864 = vadd.f32 %v652, %v863
      %v865 = vpop.f32.mrb[0].mxu0
      %v866 = vpop.f32.mrb[0].mxu0
      %v867 = vadd.f32 %v655, %v866
      %v868 = vpop.f32.mrb[0].mxu0
      %869 = vmatprep.mubr.bf16.mxu0 0
      %870 = vmatmul.mubr.bf16.gmra.mrb[0].mxu0 %v732
      %v871 = vpop.f32.mrb[0].mxu0
      %v872 = vadd.f32 %v660, %v871
      %v873 = vpop.f32.mrb[0].mxu0
      %v874 = vpop.f32.mrb[0].mxu0
      %v875 = vadd.f32 %v663, %v874
      %v876 = vpop.f32.mrb[0].mxu0
      %877 = vmatprep.mubr.bf16.mxu0 0
      %878 = vmatmul.mubr.bf16.gmra.mrb[0].mxu0 %v735
      %v879 = vpop.f32.mrb[0].mxu0
      %v880 = vadd.f32 %v668, %v879
      %v881 = vpop.f32.mrb[0].mxu0
      %v882 = vpop.f32.mrb[0].mxu0
      %v883 = vadd.f32 %v671, %v882
      %v884 = vpop.f32.mrb[0].mxu0
      %885 = vmatprep.mubr.bf16.mxu0 0
      %886 = vmatmul.mubr.bf16.gmra.mrb[0].mxu0 %v738
      %v887 = vpop.f32.mrb[0].mxu0
      %v888 = vadd.f32 %v676, %v887
      %v889 = vpop.f32.mrb[0].mxu0
      %v890 = vpop.f32.mrb[0].mxu0
      %v891 = vadd.f32 %v679, %v890
      %v892 = vpop.f32.mrb[0].mxu0
      %893 = vmatprep.mubr.bf16.mxu0 0
      %894 = vmatmul.mubr.bf16.gmra.mrb[0].mxu0 %v741
      %v895 = vpop.f32.mrb[0].mxu0
      %v896 = vadd.f32 %v684, %v895
      %v897 = vpop.f32.mrb[0].mxu0
      %v898 = vpop.f32.mrb[0].mxu0
      %v899 = vadd.f32 %v687, %v898
      %v900 = vpop.f32.mrb[0].mxu0
      %901 = vmatprep.mubr.bf16.mxu0 0
      %902 = vmatmul.mubr.bf16.gmra.mrb[0].mxu0 %v744
      %v903 = vpop.f32.mrb[0].mxu0
      %v904 = vadd.f32 %v692, %v903
      %v905 = vpop.f32.mrb[0].mxu0
      %v906 = vpop.f32.mrb[0].mxu0
      %v907 = vadd.f32 %v695, %v906
      %v908 = vpop.f32.mrb[0].mxu0
      %909 = vdwg.mxu0
      %v910 = vpack.c.bf16 %v421, %v420
      %v911 = vpack.c.bf16 %v423, %v422
      %v912 = vpack.c.bf16 %v425, %v424
      %v913 = vpack.c.bf16 %v427, %v426
      %v914 = vpack.c.bf16 %v429, %v428
      %v915 = vpack.c.bf16 %v431, %v430
      %v916 = vpack.c.bf16 %v433, %v432
      %v917 = vpack.c.bf16 %v435, %v434
      %v918 = vpack.c.bf16 %v437, %v436
      %v919 = vpack.c.bf16 %v439, %v438
      %v920 = vpack.c.bf16 %v441, %v440
      %v921 = vpack.c.bf16 %v443, %v442
      %v922 = vpack.c.bf16 %v445, %v444
      %v923 = vpack.c.bf16 %v447, %v446
      %v924 = vpack.c.bf16 %v449, %v448
      %v925 = vpack.c.bf16 %v451, %v450
      %v927 = vsel %vm484, %v910, 0
      %v930 = vsel %vm484, %v911, 0
      %v933 = vsel %vm484, %v912, 0
      %v936 = vsel %vm484, %v913, 0
      %v939 = vsel %vm484, %v914, 0
      %v942 = vsel %vm484, %v915, 0
      %v945 = vsel %vm484, %v916, 0
      %v948 = vsel %vm484, %v917, 0
      %v951 = vsel %vm484, %v918, 0
      %v954 = vsel %vm484, %v919, 0
      %v957 = vsel %vm484, %v920, 0
      %v960 = vsel %vm484, %v921, 0
      %v963 = vsel %vm484, %v922, 0
      %v966 = vsel %vm484, %v923, 0
      %v969 = vsel %vm484, %v924, 0
      %v972 = vsel %vm484, %v925, 0
      %v975 = vsel %vm533, %v247, 0
      %977 = vmatprep.subr.bf16.mxu0 0
      %978 = vmatpush1.bf16.msra.mxu0 %v975
      %979 = vmatprep.subr.bf16.mxu0 0
      %980 = vmatpush1.bf16.msra.mxu0 0
      %981 = vmatprep.subr.bf16.mxu0 0
      %982 = vmatpush1.bf16.msra.mxu0 0
      %983 = vmatprep.subr.bf16.mxu0 0
      %984 = vmatpush1.bf16.msra.mxu0 0
      %985 = vmatprep.subr.bf16.mxu0 0
      %986 = vmatpush1.bf16.msra.mxu0 0
      %987 = vmatprep.subr.bf16.mxu0 0
      %988 = vmatpush1.bf16.msra.mxu0 0
      %989 = vmatprep.subr.bf16.mxu0 0
      %990 = vmatpush1.bf16.msra.mxu0 0
      %991 = vmatprep.subr.bf16.mxu0 0
      %992 = vmatpush1.bf16.msra.mxu0 0
      %993 = vmatprep.subr.bf16.mxu0 0
      %994 = vmatpush1.bf16.msra.mxu0 0
      %995 = vmatprep.subr.bf16.mxu0 0
      %996 = vmatpush1.bf16.msra.mxu0 0
      %997 = vmatprep.subr.bf16.mxu0 0
      %998 = vmatpush1.bf16.msra.mxu0 0
      %999 = vmatprep.subr.bf16.mxu0 0
      %1000 = vmatpush1.bf16.msra.mxu0 0
      %1001 = vmatprep.subr.bf16.mxu0 0
      %1002 = vmatpush1.bf16.msra.mxu0 0
      %1003 = vmatprep.subr.bf16.mxu0 0
      %1004 = vmatpush1.bf16.msra.mxu0 0
      %1005 = vmatprep.subr.bf16.mxu0 0
      %1006 = vmatpush1.bf16.msra.mxu0 0
      %1007 = vmatprep.subr.bf16.mxu0 0
      %1008 = vmatpush1.bf16.msra.mxu0 0
      %1009 = vmatprep.mubr.bf16.mxu0 0
      %1010 = vmatmul.mubr.bf16.gmra.mrb[0].mxu0 %v927
      %v1011 = vpop.f32.mrb[0].mxu0
      %v1012 = vadd.f32 0.0, %v1011
      %v1013 = vpop.f32.mrb[0].mxu0
      %v1014 = vpop.f32.mrb[0].mxu0
      %v1015 = vadd.f32 0.0, %v1014
      %v1016 = vpop.f32.mrb[0].mxu0
      %1017 = vmatprep.mubr.bf16.mxu0 0
      %1018 = vmatmul.mubr.bf16.gmra.mrb[0].mxu0 %v930
      %v1019 = vpop.f32.mrb[0].mxu0
      %v1020 = vadd.f32 0.0, %v1019
      %v1021 = vpop.f32.mrb[0].mxu0
      %v1022 = vpop.f32.mrb[0].mxu0
      %v1023 = vadd.f32 0.0, %v1022
      %v1024 = vpop.f32.mrb[0].mxu0
      %1025 = vmatprep.mubr.bf16.mxu0 0
      %1026 = vmatmul.mubr.bf16.gmra.mrb[0].mxu0 %v933
      %v1027 = vpop.f32.mrb[0].mxu0
      %v1028 = vadd.f32 0.0, %v1027
      %v1029 = vpop.f32.mrb[0].mxu0
      %v1030 = vpop.f32.mrb[0].mxu0
      %v1031 = vadd.f32 0.0, %v1030
      %v1032 = vpop.f32.mrb[0].mxu0
      %1033 = vmatprep.mubr.bf16.mxu0 0
      %1034 = vmatmul.mubr.bf16.gmra.mrb[0].mxu0 %v936
      %v1035 = vpop.f32.mrb[0].mxu0
      %v1036 = vadd.f32 0.0, %v1035
      %v1037 = vpop.f32.mrb[0].mxu0
      %v1038 = vpop.f32.mrb[0].mxu0
      %v1039 = vadd.f32 0.0, %v1038
      %v1040 = vpop.f32.mrb[0].mxu0
      %1041 = vmatprep.mubr.bf16.mxu0 0
      %1042 = vmatmul.mubr.bf16.gmra.mrb[0].mxu0 %v939
      %v1043 = vpop.f32.mrb[0].mxu0
      %v1044 = vadd.f32 0.0, %v1043
      %v1045 = vpop.f32.mrb[0].mxu0
      %v1046 = vpop.f32.mrb[0].mxu0
      %v1047 = vadd.f32 0.0, %v1046
      %v1048 = vpop.f32.mrb[0].mxu0
      %1049 = vmatprep.mubr.bf16.mxu0 0
      %1050 = vmatmul.mubr.bf16.gmra.mrb[0].mxu0 %v942
      %v1051 = vpop.f32.mrb[0].mxu0
      %v1052 = vadd.f32 0.0, %v1051
      %v1053 = vpop.f32.mrb[0].mxu0
      %v1054 = vpop.f32.mrb[0].mxu0
      %v1055 = vadd.f32 0.0, %v1054
      %v1056 = vpop.f32.mrb[0].mxu0
      %1057 = vmatprep.mubr.bf16.mxu0 0
      %1058 = vmatmul.mubr.bf16.gmra.mrb[0].mxu0 %v945
      %v1059 = vpop.f32.mrb[0].mxu0
      %v1060 = vadd.f32 0.0, %v1059
      %v1061 = vpop.f32.mrb[0].mxu0
      %v1062 = vpop.f32.mrb[0].mxu0
      %v1063 = vadd.f32 0.0, %v1062
      %v1064 = vpop.f32.mrb[0].mxu0
      %1065 = vmatprep.mubr.bf16.mxu0 0
      %1066 = vmatmul.mubr.bf16.gmra.mrb[0].mxu0 %v948
      %v1067 = vpop.f32.mrb[0].mxu0
      %v1068 = vadd.f32 0.0, %v1067
      %v1069 = vpop.f32.mrb[0].mxu0
      %v1070 = vpop.f32.mrb[0].mxu0
      %v1071 = vadd.f32 0.0, %v1070
      %v1072 = vpop.f32.mrb[0].mxu0
      %1073 = vmatprep.mubr.bf16.mxu0 0
      %1074 = vmatmul.mubr.bf16.gmra.mrb[0].mxu0 %v951
      %v1075 = vpop.f32.mrb[0].mxu0
      %v1076 = vadd.f32 0.0, %v1075
      %v1077 = vpop.f32.mrb[0].mxu0
      %v1078 = vpop.f32.mrb[0].mxu0
      %v1079 = vadd.f32 0.0, %v1078
      %v1080 = vpop.f32.mrb[0].mxu0
      %1081 = vmatprep.mubr.bf16.mxu0 0
      %1082 = vmatmul.mubr.bf16.gmra.mrb[0].mxu0 %v954
      %v1083 = vpop.f32.mrb[0].mxu0
      %v1084 = vadd.f32 0.0, %v1083
      %v1085 = vpop.f32.mrb[0].mxu0
      %v1086 = vpop.f32.mrb[0].mxu0
      %v1087 = vadd.f32 0.0, %v1086
      %v1088 = vpop.f32.mrb[0].mxu0
      %1089 = vmatprep.mubr.bf16.mxu0 0
      %1090 = vmatmul.mubr.bf16.gmra.mrb[0].mxu0 %v957
      %v1091 = vpop.f32.mrb[0].mxu0
      %v1092 = vadd.f32 0.0, %v1091
      %v1093 = vpop.f32.mrb[0].mxu0
      %v1094 = vpop.f32.mrb[0].mxu0
      %v1095 = vadd.f32 0.0, %v1094
      %v1096 = vpop.f32.mrb[0].mxu0
      %1097 = vmatprep.mubr.bf16.mxu0 0
      %1098 = vmatmul.mubr.bf16.gmra.mrb[0].mxu0 %v960
      %v1099 = vpop.f32.mrb[0].mxu0
      %v1100 = vadd.f32 0.0, %v1099
      %v1101 = vpop.f32.mrb[0].mxu0
      %v1102 = vpop.f32.mrb[0].mxu0
      %v1103 = vadd.f32 0.0, %v1102
      %v1104 = vpop.f32.mrb[0].mxu0
      %1105 = vmatprep.mubr.bf16.mxu0 0
      %1106 = vmatmul.mubr.bf16.gmra.mrb[0].mxu0 %v963
      %v1107 = vpop.f32.mrb[0].mxu0
      %v1108 = vadd.f32 0.0, %v1107
      %v1109 = vpop.f32.mrb[0].mxu0
      %v1110 = vpop.f32.mrb[0].mxu0
      %v1111 = vadd.f32 0.0, %v1110
      %v1112 = vpop.f32.mrb[0].mxu0
      %1113 = vmatprep.mubr.bf16.mxu0 0
      %1114 = vmatmul.mubr.bf16.gmra.mrb[0].mxu0 %v966
      %v1115 = vpop.f32.mrb[0].mxu0
      %v1116 = vadd.f32 0.0, %v1115
      %v1117 = vpop.f32.mrb[0].mxu0
      %v1118 = vpop.f32.mrb[0].mxu0
      %v1119 = vadd.f32 0.0, %v1118
      %v1120 = vpop.f32.mrb[0].mxu0
      %1121 = vmatprep.mubr.bf16.mxu0 0
      %1122 = vmatmul.mubr.bf16.gmra.mrb[0].mxu0 %v969
      %v1123 = vpop.f32.mrb[0].mxu0
      %v1124 = vadd.f32 0.0, %v1123
      %v1125 = vpop.f32.mrb[0].mxu0
      %v1126 = vpop.f32.mrb[0].mxu0
      %v1127 = vadd.f32 0.0, %v1126
      %v1128 = vpop.f32.mrb[0].mxu0
      %1129 = vmatprep.mubr.bf16.mxu0 0
      %1130 = vmatmul.mubr.bf16.gmra.mrb[0].mxu0 %v972
      %v1131 = vpop.f32.mrb[0].mxu0
      %v1132 = vadd.f32 0.0, %v1131
      %v1133 = vpop.f32.mrb[0].mxu0
      %v1134 = vpop.f32.mrb[0].mxu0
      %v1135 = vadd.f32 0.0, %v1134
      %v1136 = vpop.f32.mrb[0].mxu0
      %1137 = vdwg.mxu0
      %v1138 = vadd.f32 %v784, %v1012
      %v1139 = vadd.f32 %v787, %v1015
      %v1140 = vadd.f32 %v792, %v1020
      %v1141 = vadd.f32 %v795, %v1023
      %v1142 = vadd.f32 %v800, %v1028
      %v1143 = vadd.f32 %v803, %v1031
      %v1144 = vadd.f32 %v808, %v1036
      %v1145 = vadd.f32 %v811, %v1039
      %v1146 = vadd.f32 %v816, %v1044
      %v1147 = vadd.f32 %v819, %v1047
      %v1148 = vadd.f32 %v824, %v1052
      %v1149 = vadd.f32 %v827, %v1055
      %v1150 = vadd.f32 %v832, %v1060
      %v1151 = vadd.f32 %v835, %v1063
      %v1152 = vadd.f32 %v840, %v1068
      %v1153 = vadd.f32 %v843, %v1071
      %v1154 = vadd.f32 %v848, %v1076
      %v1155 = vadd.f32 %v851, %v1079
      %v1156 = vadd.f32 %v856, %v1084
      %v1157 = vadd.f32 %v859, %v1087
      %v1158 = vadd.f32 %v864, %v1092
      %v1159 = vadd.f32 %v867, %v1095
      %v1160 = vadd.f32 %v872, %v1100
      %v1161 = vadd.f32 %v875, %v1103
      %v1162 = vadd.f32 %v880, %v1108
      %v1163 = vadd.f32 %v883, %v1111
      %v1164 = vadd.f32 %v888, %v1116
      %v1165 = vadd.f32 %v891, %v1119
      %v1166 = vadd.f32 %v896, %v1124
      %v1167 = vadd.f32 %v899, %v1127
      %v1168 = vadd.f32 %v904, %v1132
      %v1169 = vadd.f32 %v907, %v1135
      %v1170 = vpack.c.bf16 0.0, 0.0
      %v1171 = vpack.c.bf16 %v1139, %v1138
      %v1172 = vpack.c.bf16 %v1141, %v1140
      %v1173 = vpack.c.bf16 %v1143, %v1142
      %v1174 = vpack.c.bf16 %v1145, %v1144
      %v1175 = vpack.c.bf16 %v1147, %v1146
      %v1176 = vpack.c.bf16 %v1149, %v1148
      %v1177 = vpack.c.bf16 %v1151, %v1150
      %v1178 = vpack.c.bf16 %v1153, %v1152
      %v1179 = vpack.c.bf16 %v1155, %v1154
      %v1180 = vpack.c.bf16 %v1157, %v1156
      %v1181 = vpack.c.bf16 %v1159, %v1158
      %v1182 = vpack.c.bf16 %v1161, %v1160
      %v1183 = vpack.c.bf16 %v1163, %v1162
      %v1184 = vpack.c.bf16 %v1165, %v1164
      %v1185 = vpack.c.bf16 %v1167, %v1166
      %v1186 = vpack.c.bf16 %v1169, %v1168
      %vm1187 = vcmask 15360
      %v1189 = vsel %vm1187, %v1171, 0
      %v1192 = vsel %vm1187, %v1172, 0
      %v1195 = vsel %vm1187, %v1173, 0
      %v1198 = vsel %vm1187, %v1174, 0
      %v1201 = vsel %vm1187, %v1175, 0
      %v1204 = vsel %vm1187, %v1176, 0
      %v1207 = vsel %vm1187, %v1177, 0
      %v1210 = vsel %vm1187, %v1178, 0
      %v1213 = vsel %vm1187, %v1179, 0
      %v1216 = vsel %vm1187, %v1180, 0
      %v1219 = vsel %vm1187, %v1181, 0
      %v1222 = vsel %vm1187, %v1182, 0
      %v1225 = vsel %vm1187, %v1183, 0
      %v1228 = vsel %vm1187, %v1184, 0
      %v1231 = vsel %vm1187, %v1185, 0
      %v1234 = vsel %vm1187, %v1186, 0
      %vm1236 = vcmask 1040384
      %v1238 = vsel %vm1236, %v249, 0
      %1240 = vmatprep.subr.bf16.mxu0 0
      %1241 = vmatpush1.bf16.msra.mxu0 %v1238
      %1242 = vmatprep.subr.bf16.mxu0 0
      %1243 = vmatpush1.bf16.msra.mxu0 0
      %1244 = vmatprep.subr.bf16.mxu0 0
      %1245 = vmatpush1.bf16.msra.mxu0 0
      %1246 = vmatprep.subr.bf16.mxu0 0
      %1247 = vmatpush1.bf16.msra.mxu0 0
      %1248 = vmatprep.subr.bf16.mxu0 0
      %1249 = vmatpush1.bf16.msra.mxu0 0
      %1250 = vmatprep.subr.bf16.mxu0 0
      %1251 = vmatpush1.bf16.msra.mxu0 0
      %1252 = vmatprep.subr.bf16.mxu0 0
      %1253 = vmatpush1.bf16.msra.mxu0 0
      %1254 = vmatprep.subr.bf16.mxu0 0
      %1255 = vmatpush1.bf16.msra.mxu0 0
      %1256 = vmatprep.subr.bf16.mxu0 0
      %1257 = vmatpush1.bf16.msra.mxu0 0
      %1258 = vmatprep.subr.bf16.mxu0 0
      %1259 = vmatpush1.bf16.msra.mxu0 0
      %1260 = vmatprep.subr.bf16.mxu0 0
      %1261 = vmatpush1.bf16.msra.mxu0 0
      %1262 = vmatprep.subr.bf16.mxu0 0
      %1263 = vmatpush1.bf16.msra.mxu0 0
      %1264 = vmatprep.subr.bf16.mxu0 0
      %1265 = vmatpush1.bf16.msra.mxu0 0
      %1266 = vmatprep.subr.bf16.mxu0 0
      %1267 = vmatpush1.bf16.msra.mxu0 0
      %1268 = vmatprep.subr.bf16.mxu0 0
      %1269 = vmatpush1.bf16.msra.mxu0 0
      %1270 = vmatprep.subr.bf16.mxu0 0
      %1271 = vmatpush1.bf16.msra.mxu0 0
      %1272 = vmatprep.mubr.bf16.mxu0 0
      %1273 = vmatmul.mubr.bf16.gmra.mrb[0].mxu0 %v1189
      %v1274 = vpop.f32.mrb[0].mxu0
      %v1275 = vadd.f32 0.0, %v1274
      %v1276 = vpop.f32.mrb[0].mxu0
      %v1277 = vpop.f32.mrb[0].mxu0
      %v1278 = vadd.f32 0.0, %v1277
      %v1279 = vpop.f32.mrb[0].mxu0
      %1280 = vmatprep.mubr.bf16.mxu0 0
      %1281 = vmatmul.mubr.bf16.gmra.mrb[0].mxu0 %v1192
      %v1282 = vpop.f32.mrb[0].mxu0
      %v1283 = vadd.f32 0.0, %v1282
      %v1284 = vpop.f32.mrb[0].mxu0
      %v1285 = vpop.f32.mrb[0].mxu0
      %v1286 = vadd.f32 0.0, %v1285
      %v1287 = vpop.f32.mrb[0].mxu0
      %1288 = vmatprep.mubr.bf16.mxu0 0
      %1289 = vmatmul.mubr.bf16.gmra.mrb[0].mxu0 %v1195
      %v1290 = vpop.f32.mrb[0].mxu0
      %v1291 = vadd.f32 0.0, %v1290
      %v1292 = vpop.f32.mrb[0].mxu0
      %v1293 = vpop.f32.mrb[0].mxu0
      %v1294 = vadd.f32 0.0, %v1293
      %v1295 = vpop.f32.mrb[0].mxu0
      %1296 = vmatprep.mubr.bf16.mxu0 0
      %1297 = vmatmul.mubr.bf16.gmra.mrb[0].mxu0 %v1198
      %v1298 = vpop.f32.mrb[0].mxu0
      %v1299 = vadd.f32 0.0, %v1298
      %v1300 = vpop.f32.mrb[0].mxu0
      %v1301 = vpop.f32.mrb[0].mxu0
      %v1302 = vadd.f32 0.0, %v1301
      %v1303 = vpop.f32.mrb[0].mxu0
      %1304 = vmatprep.mubr.bf16.mxu0 0
      %1305 = vmatmul.mubr.bf16.gmra.mrb[0].mxu0 %v1201
      %v1306 = vpop.f32.mrb[0].mxu0
      %v1307 = vadd.f32 0.0, %v1306
      %v1308 = vpop.f32.mrb[0].mxu0
      %v1309 = vpop.f32.mrb[0].mxu0
      %v1310 = vadd.f32 0.0, %v1309
      %v1311 = vpop.f32.mrb[0].mxu0
      %1312 = vmatprep.mubr.bf16.mxu0 0
      %1313 = vmatmul.mubr.bf16.gmra.mrb[0].mxu0 %v1204
      %v1314 = vpop.f32.mrb[0].mxu0
      %v1315 = vadd.f32 0.0, %v1314
      %v1316 = vpop.f32.mrb[0].mxu0
      %v1317 = vpop.f32.mrb[0].mxu0
      %v1318 = vadd.f32 0.0, %v1317
      %v1319 = vpop.f32.mrb[0].mxu0
      %1320 = vmatprep.mubr.bf16.mxu0 0
      %1321 = vmatmul.mubr.bf16.gmra.mrb[0].mxu0 %v1207
      %v1322 = vpop.f32.mrb[0].mxu0
      %v1323 = vadd.f32 0.0, %v1322
      %v1324 = vpop.f32.mrb[0].mxu0
      %v1325 = vpop.f32.mrb[0].mxu0
      %v1326 = vadd.f32 0.0, %v1325
      %v1327 = vpop.f32.mrb[0].mxu0
      %1328 = vmatprep.mubr.bf16.mxu0 0
      %1329 = vmatmul.mubr.bf16.gmra.mrb[0].mxu0 %v1210
      %v1330 = vpop.f32.mrb[0].mxu0
      %v1331 = vadd.f32 0.0, %v1330
      %v1332 = vpop.f32.mrb[0].mxu0
      %v1333 = vpop.f32.mrb[0].mxu0
      %v1334 = vadd.f32 0.0, %v1333
      %v1335 = vpop.f32.mrb[0].mxu0
      %1336 = vmatprep.mubr.bf16.mxu0 0
      %1337 = vmatmul.mubr.bf16.gmra.mrb[0].mxu0 %v1213
      %v1338 = vpop.f32.mrb[0].mxu0
      %v1339 = vadd.f32 0.0, %v1338
      %v1340 = vpop.f32.mrb[0].mxu0
      %v1341 = vpop.f32.mrb[0].mxu0
      %v1342 = vadd.f32 0.0, %v1341
      %v1343 = vpop.f32.mrb[0].mxu0
      %1344 = vmatprep.mubr.bf16.mxu0 0
      %1345 = vmatmul.mubr.bf16.gmra.mrb[0].mxu0 %v1216
      %v1346 = vpop.f32.mrb[0].mxu0
      %v1347 = vadd.f32 0.0, %v1346
      %v1348 = vpop.f32.mrb[0].mxu0
      %v1349 = vpop.f32.mrb[0].mxu0
      %v1350 = vadd.f32 0.0, %v1349
      %v1351 = vpop.f32.mrb[0].mxu0
      %1352 = vmatprep.mubr.bf16.mxu0 0
      %1353 = vmatmul.mubr.bf16.gmra.mrb[0].mxu0 %v1219
      %v1354 = vpop.f32.mrb[0].mxu0
      %v1355 = vadd.f32 0.0, %v1354
      %v1356 = vpop.f32.mrb[0].mxu0
      %v1357 = vpop.f32.mrb[0].mxu0
      %v1358 = vadd.f32 0.0, %v1357
      %v1359 = vpop.f32.mrb[0].mxu0
      %1360 = vmatprep.mubr.bf16.mxu0 0
      %1361 = vmatmul.mubr.bf16.gmra.mrb[0].mxu0 %v1222
      %v1362 = vpop.f32.mrb[0].mxu0
      %v1363 = vadd.f32 0.0, %v1362
      %v1364 = vpop.f32.mrb[0].mxu0
      %v1365 = vpop.f32.mrb[0].mxu0
      %v1366 = vadd.f32 0.0, %v1365
      %v1367 = vpop.f32.mrb[0].mxu0
      %1368 = vmatprep.mubr.bf16.mxu0 0
      %1369 = vmatmul.mubr.bf16.gmra.mrb[0].mxu0 %v1225
      %v1370 = vpop.f32.mrb[0].mxu0
      %v1371 = vadd.f32 0.0, %v1370
      %v1372 = vpop.f32.mrb[0].mxu0
      %v1373 = vpop.f32.mrb[0].mxu0
      %v1374 = vadd.f32 0.0, %v1373
      %v1375 = vpop.f32.mrb[0].mxu0
      %1376 = vmatprep.mubr.bf16.mxu0 0
      %1377 = vmatmul.mubr.bf16.gmra.mrb[0].mxu0 %v1228
      %v1378 = vpop.f32.mrb[0].mxu0
      %v1379 = vadd.f32 0.0, %v1378
      %v1380 = vpop.f32.mrb[0].mxu0
      %v1381 = vpop.f32.mrb[0].mxu0
      %v1382 = vadd.f32 0.0, %v1381
      %v1383 = vpop.f32.mrb[0].mxu0
      %1384 = vmatprep.mubr.bf16.mxu0 0
      %1385 = vmatmul.mubr.bf16.gmra.mrb[0].mxu0 %v1231
      %v1386 = vpop.f32.mrb[0].mxu0
      %v1387 = vadd.f32 0.0, %v1386
      %v1388 = vpop.f32.mrb[0].mxu0
      %v1389 = vpop.f32.mrb[0].mxu0
      %v1390 = vadd.f32 0.0, %v1389
      %v1391 = vpop.f32.mrb[0].mxu0
      %1392 = vmatprep.mubr.bf16.mxu0 0
      %1393 = vmatmul.mubr.bf16.gmra.mrb[0].mxu0 %v1234
      %v1394 = vpop.f32.mrb[0].mxu0
      %v1395 = vadd.f32 0.0, %v1394
      %v1396 = vpop.f32.mrb[0].mxu0
      %v1397 = vpop.f32.mrb[0].mxu0
      %v1398 = vadd.f32 0.0, %v1397
      %v1399 = vpop.f32.mrb[0].mxu0
      %1400 = vdwg.mxu0
      %v1402 = vsel %vm1187, %v1170, 0
      %v1405 = vsel %vm1236, %v248, 0
      %1407 = vmatprep.subr.bf16.mxu0 0
      %1408 = vmatpush1.bf16.msra.mxu0 %v1405
      %1409 = vmatprep.subr.bf16.mxu0 0
      %1410 = vmatpush1.bf16.msra.mxu0 0
      %1411 = vmatprep.subr.bf16.mxu0 0
      %1412 = vmatpush1.bf16.msra.mxu0 0
      %1413 = vmatprep.subr.bf16.mxu0 0
      %1414 = vmatpush1.bf16.msra.mxu0 0
      %1415 = vmatprep.subr.bf16.mxu0 0
      %1416 = vmatpush1.bf16.msra.mxu0 0
      %1417 = vmatprep.subr.bf16.mxu0 0
      %1418 = vmatpush1.bf16.msra.mxu0 0
      %1419 = vmatprep.subr.bf16.mxu0 0
      %1420 = vmatpush1.bf16.msra.mxu0 0
      %1421 = vmatprep.subr.bf16.mxu0 0
      %1422 = vmatpush1.bf16.msra.mxu0 0
      %1423 = vmatprep.subr.bf16.mxu0 0
      %1424 = vmatpush1.bf16.msra.mxu0 0
      %1425 = vmatprep.subr.bf16.mxu0 0
      %1426 = vmatpush1.bf16.msra.mxu0 0
      %1427 = vmatprep.subr.bf16.mxu0 0
      %1428 = vmatpush1.bf16.msra.mxu0 0
      %1429 = vmatprep.subr.bf16.mxu0 0
      %1430 = vmatpush1.bf16.msra.mxu0 0
      %1431 = vmatprep.subr.bf16.mxu0 0
      %1432 = vmatpush1.bf16.msra.mxu0 0
      %1433 = vmatprep.subr.bf16.mxu0 0
      %1434 = vmatpush1.bf16.msra.mxu0 0
      %1435 = vmatprep.subr.bf16.mxu0 0
      %1436 = vmatpush1.bf16.msra.mxu0 0
      %1437 = vmatprep.subr.bf16.mxu0 0
      %1438 = vmatpush1.bf16.msra.mxu0 0
      %1439 = vmatprep.mubr.bf16.mxu0 0
      %1440 = vmatmul.mubr.bf16.gmra.mrb[0].mxu0 %v1402
      %v1441 = vpop.f32.mrb[0].mxu0
      %v1442 = vadd.f32 %v1275, %v1441
      %v1443 = vpop.f32.mrb[0].mxu0
      %v1444 = vpop.f32.mrb[0].mxu0
      %v1445 = vadd.f32 %v1278, %v1444
      %v1446 = vpop.f32.mrb[0].mxu0
      %1447 = vmatprep.mubr.bf16.mxu0 0
      %1448 = vmatmul.mubr.bf16.gmra.mrb[0].mxu0 %v1189
      %v1449 = vpop.f32.mrb[0].mxu0
      %v1450 = vadd.f32 %v1283, %v1449
      %v1451 = vpop.f32.mrb[0].mxu0
      %v1452 = vpop.f32.mrb[0].mxu0
      %v1453 = vadd.f32 %v1286, %v1452
      %v1454 = vpop.f32.mrb[0].mxu0
      %1455 = vmatprep.mubr.bf16.mxu0 0
      %1456 = vmatmul.mubr.bf16.gmra.mrb[0].mxu0 %v1192
      %v1457 = vpop.f32.mrb[0].mxu0
      %v1458 = vadd.f32 %v1291, %v1457
      %v1459 = vpop.f32.mrb[0].mxu0
      %v1460 = vpop.f32.mrb[0].mxu0
      %v1461 = vadd.f32 %v1294, %v1460
      %v1462 = vpop.f32.mrb[0].mxu0
      %1463 = vmatprep.mubr.bf16.mxu0 0
      %1464 = vmatmul.mubr.bf16.gmra.mrb[0].mxu0 %v1195
      %v1465 = vpop.f32.mrb[0].mxu0
      %v1466 = vadd.f32 %v1299, %v1465
      %v1467 = vpop.f32.mrb[0].mxu0
      %v1468 = vpop.f32.mrb[0].mxu0
      %v1469 = vadd.f32 %v1302, %v1468
      %v1470 = vpop.f32.mrb[0].mxu0
      %1471 = vmatprep.mubr.bf16.mxu0 0
      %1472 = vmatmul.mubr.bf16.gmra.mrb[0].mxu0 %v1198
      %v1473 = vpop.f32.mrb[0].mxu0
      %v1474 = vadd.f32 %v1307, %v1473
      %v1475 = vpop.f32.mrb[0].mxu0
      %v1476 = vpop.f32.mrb[0].mxu0
      %v1477 = vadd.f32 %v1310, %v1476
      %v1478 = vpop.f32.mrb[0].mxu0
      %1479 = vmatprep.mubr.bf16.mxu0 0
      %1480 = vmatmul.mubr.bf16.gmra.mrb[0].mxu0 %v1201
      %v1481 = vpop.f32.mrb[0].mxu0
      %v1482 = vadd.f32 %v1315, %v1481
      %v1483 = vpop.f32.mrb[0].mxu0
      %v1484 = vpop.f32.mrb[0].mxu0
      %v1485 = vadd.f32 %v1318, %v1484
      %v1486 = vpop.f32.mrb[0].mxu0
      %1487 = vmatprep.mubr.bf16.mxu0 0
      %1488 = vmatmul.mubr.bf16.gmra.mrb[0].mxu0 %v1204
      %v1489 = vpop.f32.mrb[0].mxu0
      %v1490 = vadd.f32 %v1323, %v1489
      %v1491 = vpop.f32.mrb[0].mxu0
      %v1492 = vpop.f32.mrb[0].mxu0
      %v1493 = vadd.f32 %v1326, %v1492
      %v1494 = vpop.f32.mrb[0].mxu0
      %1495 = vmatprep.mubr.bf16.mxu0 0
      %1496 = vmatmul.mubr.bf16.gmra.mrb[0].mxu0 %v1207
      %v1497 = vpop.f32.mrb[0].mxu0
      %v1498 = vadd.f32 %v1331, %v1497
      %v1499 = vpop.f32.mrb[0].mxu0
      %v1500 = vpop.f32.mrb[0].mxu0
      %v1501 = vadd.f32 %v1334, %v1500
      %v1502 = vpop.f32.mrb[0].mxu0
      %1503 = vmatprep.mubr.bf16.mxu0 0
      %1504 = vmatmul.mubr.bf16.gmra.mrb[0].mxu0 %v1210
      %v1505 = vpop.f32.mrb[0].mxu0
      %v1506 = vadd.f32 %v1339, %v1505
      %v1507 = vpop.f32.mrb[0].mxu0
      %v1508 = vpop.f32.mrb[0].mxu0
      %v1509 = vadd.f32 %v1342, %v1508
      %v1510 = vpop.f32.mrb[0].mxu0
      %1511 = vmatprep.mubr.bf16.mxu0 0
      %1512 = vmatmul.mubr.bf16.gmra.mrb[0].mxu0 %v1213
      %v1513 = vpop.f32.mrb[0].mxu0
      %v1514 = vadd.f32 %v1347, %v1513
      %v1515 = vpop.f32.mrb[0].mxu0
      %v1516 = vpop.f32.mrb[0].mxu0
      %v1517 = vadd.f32 %v1350, %v1516
      %v1518 = vpop.f32.mrb[0].mxu0
      %1519 = vmatprep.mubr.bf16.mxu0 0
      %1520 = vmatmul.mubr.bf16.gmra.mrb[0].mxu0 %v1216
      %v1521 = vpop.f32.mrb[0].mxu0
      %v1522 = vadd.f32 %v1355, %v1521
      %v1523 = vpop.f32.mrb[0].mxu0
      %v1524 = vpop.f32.mrb[0].mxu0
      %v1525 = vadd.f32 %v1358, %v1524
      %v1526 = vpop.f32.mrb[0].mxu0
      %1527 = vmatprep.mubr.bf16.mxu0 0
      %1528 = vmatmul.mubr.bf16.gmra.mrb[0].mxu0 %v1219
      %v1529 = vpop.f32.mrb[0].mxu0
      %v1530 = vadd.f32 %v1363, %v1529
      %v1531 = vpop.f32.mrb[0].mxu0
      %v1532 = vpop.f32.mrb[0].mxu0
      %v1533 = vadd.f32 %v1366, %v1532
      %v1534 = vpop.f32.mrb[0].mxu0
      %1535 = vmatprep.mubr.bf16.mxu0 0
      %1536 = vmatmul.mubr.bf16.gmra.mrb[0].mxu0 %v1222
      %v1537 = vpop.f32.mrb[0].mxu0
      %v1538 = vadd.f32 %v1371, %v1537
      %v1539 = vpop.f32.mrb[0].mxu0
      %v1540 = vpop.f32.mrb[0].mxu0
      %v1541 = vadd.f32 %v1374, %v1540
      %v1542 = vpop.f32.mrb[0].mxu0
      %1543 = vmatprep.mubr.bf16.mxu0 0
      %1544 = vmatmul.mubr.bf16.gmra.mrb[0].mxu0 %v1225
      %v1545 = vpop.f32.mrb[0].mxu0
      %v1546 = vadd.f32 %v1379, %v1545
      %v1547 = vpop.f32.mrb[0].mxu0
      %v1548 = vpop.f32.mrb[0].mxu0
      %v1549 = vadd.f32 %v1382, %v1548
      %v1550 = vpop.f32.mrb[0].mxu0
      %1551 = vmatprep.mubr.bf16.mxu0 0
      %1552 = vmatmul.mubr.bf16.gmra.mrb[0].mxu0 %v1228
      %v1553 = vpop.f32.mrb[0].mxu0
      %v1554 = vadd.f32 %v1387, %v1553
      %v1555 = vpop.f32.mrb[0].mxu0
      %v1556 = vpop.f32.mrb[0].mxu0
      %v1557 = vadd.f32 %v1390, %v1556
      %v1558 = vpop.f32.mrb[0].mxu0
      %1559 = vmatprep.mubr.bf16.mxu0 0
      %1560 = vmatmul.mubr.bf16.gmra.mrb[0].mxu0 %v1231
      %v1561 = vpop.f32.mrb[0].mxu0
      %v1562 = vadd.f32 %v1395, %v1561
      %v1563 = vpop.f32.mrb[0].mxu0
      %v1564 = vpop.f32.mrb[0].mxu0
      %v1565 = vadd.f32 %v1398, %v1564
      %v1566 = vpop.f32.mrb[0].mxu0
      %1567 = vdwg.mxu0
      %v1569 = vsel %vm1236, %v250, 0
      %1571 = vmatprep.subr.bf16.mxu0 0
      %1572 = vmatpush1.bf16.msra.mxu0 %v1569
      %1573 = vmatprep.subr.bf16.mxu0 0
      %1574 = vmatpush1.bf16.msra.mxu0 0
      %1575 = vmatprep.subr.bf16.mxu0 0
      %1576 = vmatpush1.bf16.msra.mxu0 0
      %1577 = vmatprep.subr.bf16.mxu0 0
      %1578 = vmatpush1.bf16.msra.mxu0 0
      %1579 = vmatprep.subr.bf16.mxu0 0
      %1580 = vmatpush1.bf16.msra.mxu0 0
      %1581 = vmatprep.subr.bf16.mxu0 0
      %1582 = vmatpush1.bf16.msra.mxu0 0
      %1583 = vmatprep.subr.bf16.mxu0 0
      %1584 = vmatpush1.bf16.msra.mxu0 0
      %1585 = vmatprep.subr.bf16.mxu0 0
      %1586 = vmatpush1.bf16.msra.mxu0 0
      %1587 = vmatprep.subr.bf16.mxu0 0
      %1588 = vmatpush1.bf16.msra.mxu0 0
      %1589 = vmatprep.subr.bf16.mxu0 0
      %1590 = vmatpush1.bf16.msra.mxu0 0
      %1591 = vmatprep.subr.bf16.mxu0 0
      %1592 = vmatpush1.bf16.msra.mxu0 0
      %1593 = vmatprep.subr.bf16.mxu0 0
      %1594 = vmatpush1.bf16.msra.mxu0 0
      %1595 = vmatprep.subr.bf16.mxu0 0
      %1596 = vmatpush1.bf16.msra.mxu0 0
      %1597 = vmatprep.subr.bf16.mxu0 0
      %1598 = vmatpush1.bf16.msra.mxu0 0
      %1599 = vmatprep.subr.bf16.mxu0 0
      %1600 = vmatpush1.bf16.msra.mxu0 0
      %1601 = vmatprep.subr.bf16.mxu0 0
      %1602 = vmatpush1.bf16.msra.mxu0 0
      %1603 = vmatprep.mubr.bf16.mxu0 0
      %1604 = vmatmul.mubr.bf16.gmra.mrb[0].mxu0 %v1192
      %v1605 = vpop.f32.mrb[0].mxu0
      %v1606 = vadd.f32 0.0, %v1605
      %v1607 = vpop.f32.mrb[0].mxu0
      %v1608 = vpop.f32.mrb[0].mxu0
      %v1609 = vadd.f32 0.0, %v1608
      %v1610 = vpop.f32.mrb[0].mxu0
      %1611 = vmatprep.mubr.bf16.mxu0 0
      %1612 = vmatmul.mubr.bf16.gmra.mrb[0].mxu0 %v1195
      %v1613 = vpop.f32.mrb[0].mxu0
      %v1614 = vadd.f32 0.0, %v1613
      %v1615 = vpop.f32.mrb[0].mxu0
      %v1616 = vpop.f32.mrb[0].mxu0
      %v1617 = vadd.f32 0.0, %v1616
      %v1618 = vpop.f32.mrb[0].mxu0
      %1619 = vmatprep.mubr.bf16.mxu0 0
      %1620 = vmatmul.mubr.bf16.gmra.mrb[0].mxu0 %v1198
      %v1621 = vpop.f32.mrb[0].mxu0
      %v1622 = vadd.f32 0.0, %v1621
      %v1623 = vpop.f32.mrb[0].mxu0
      %v1624 = vpop.f32.mrb[0].mxu0
      %v1625 = vadd.f32 0.0, %v1624
      %v1626 = vpop.f32.mrb[0].mxu0
      %1627 = vmatprep.mubr.bf16.mxu0 0
      %1628 = vmatmul.mubr.bf16.gmra.mrb[0].mxu0 %v1201
      %v1629 = vpop.f32.mrb[0].mxu0
      %v1630 = vadd.f32 0.0, %v1629
      %v1631 = vpop.f32.mrb[0].mxu0
      %v1632 = vpop.f32.mrb[0].mxu0
      %v1633 = vadd.f32 0.0, %v1632
      %v1634 = vpop.f32.mrb[0].mxu0
      %1635 = vmatprep.mubr.bf16.mxu0 0
      %1636 = vmatmul.mubr.bf16.gmra.mrb[0].mxu0 %v1204
      %v1637 = vpop.f32.mrb[0].mxu0
      %v1638 = vadd.f32 0.0, %v1637
      %v1639 = vpop.f32.mrb[0].mxu0
      %v1640 = vpop.f32.mrb[0].mxu0
      %v1641 = vadd.f32 0.0, %v1640
      %v1642 = vpop.f32.mrb[0].mxu0
      %1643 = vmatprep.mubr.bf16.mxu0 0
      %1644 = vmatmul.mubr.bf16.gmra.mrb[0].mxu0 %v1207
      %v1645 = vpop.f32.mrb[0].mxu0
      %v1646 = vadd.f32 0.0, %v1645
      %v1647 = vpop.f32.mrb[0].mxu0
      %v1648 = vpop.f32.mrb[0].mxu0
      %v1649 = vadd.f32 0.0, %v1648
      %v1650 = vpop.f32.mrb[0].mxu0
      %1651 = vmatprep.mubr.bf16.mxu0 0
      %1652 = vmatmul.mubr.bf16.gmra.mrb[0].mxu0 %v1210
      %v1653 = vpop.f32.mrb[0].mxu0
      %v1654 = vadd.f32 0.0, %v1653
      %v1655 = vpop.f32.mrb[0].mxu0
      %v1656 = vpop.f32.mrb[0].mxu0
      %v1657 = vadd.f32 0.0, %v1656
      %v1658 = vpop.f32.mrb[0].mxu0
      %1659 = vmatprep.mubr.bf16.mxu0 0
      %1660 = vmatmul.mubr.bf16.gmra.mrb[0].mxu0 %v1213
      %v1661 = vpop.f32.mrb[0].mxu0
      %v1662 = vadd.f32 0.0, %v1661
      %v1663 = vpop.f32.mrb[0].mxu0
      %v1664 = vpop.f32.mrb[0].mxu0
      %v1665 = vadd.f32 0.0, %v1664
      %v1666 = vpop.f32.mrb[0].mxu0
      %1667 = vmatprep.mubr.bf16.mxu0 0
      %1668 = vmatmul.mubr.bf16.gmra.mrb[0].mxu0 %v1216
      %v1669 = vpop.f32.mrb[0].mxu0
      %v1670 = vadd.f32 0.0, %v1669
      %v1671 = vpop.f32.mrb[0].mxu0
      %v1672 = vpop.f32.mrb[0].mxu0
      %v1673 = vadd.f32 0.0, %v1672
      %v1674 = vpop.f32.mrb[0].mxu0
      %1675 = vmatprep.mubr.bf16.mxu0 0
      %1676 = vmatmul.mubr.bf16.gmra.mrb[0].mxu0 %v1219
      %v1677 = vpop.f32.mrb[0].mxu0
      %v1678 = vadd.f32 0.0, %v1677
      %v1679 = vpop.f32.mrb[0].mxu0
      %v1680 = vpop.f32.mrb[0].mxu0
      %v1681 = vadd.f32 0.0, %v1680
      %v1682 = vpop.f32.mrb[0].mxu0
      %1683 = vmatprep.mubr.bf16.mxu0 0
      %1684 = vmatmul.mubr.bf16.gmra.mrb[0].mxu0 %v1222
      %v1685 = vpop.f32.mrb[0].mxu0
      %v1686 = vadd.f32 0.0, %v1685
      %v1687 = vpop.f32.mrb[0].mxu0
      %v1688 = vpop.f32.mrb[0].mxu0
      %v1689 = vadd.f32 0.0, %v1688
      %v1690 = vpop.f32.mrb[0].mxu0
      %1691 = vmatprep.mubr.bf16.mxu0 0
      %1692 = vmatmul.mubr.bf16.gmra.mrb[0].mxu0 %v1225
      %v1693 = vpop.f32.mrb[0].mxu0
      %v1694 = vadd.f32 0.0, %v1693
      %v1695 = vpop.f32.mrb[0].mxu0
      %v1696 = vpop.f32.mrb[0].mxu0
      %v1697 = vadd.f32 0.0, %v1696
      %v1698 = vpop.f32.mrb[0].mxu0
      %1699 = vmatprep.mubr.bf16.mxu0 0
      %1700 = vmatmul.mubr.bf16.gmra.mrb[0].mxu0 %v1228
      %v1701 = vpop.f32.mrb[0].mxu0
      %v1702 = vadd.f32 0.0, %v1701
      %v1703 = vpop.f32.mrb[0].mxu0
      %v1704 = vpop.f32.mrb[0].mxu0
      %v1705 = vadd.f32 0.0, %v1704
      %v1706 = vpop.f32.mrb[0].mxu0
      %1707 = vmatprep.mubr.bf16.mxu0 0
      %1708 = vmatmul.mubr.bf16.gmra.mrb[0].mxu0 %v1231
      %v1709 = vpop.f32.mrb[0].mxu0
      %v1710 = vadd.f32 0.0, %v1709
      %v1711 = vpop.f32.mrb[0].mxu0
      %v1712 = vpop.f32.mrb[0].mxu0
      %v1713 = vadd.f32 0.0, %v1712
      %v1714 = vpop.f32.mrb[0].mxu0
      %1715 = vmatprep.mubr.bf16.mxu0 0
      %1716 = vmatmul.mubr.bf16.gmra.mrb[0].mxu0 %v1234
      %v1717 = vpop.f32.mrb[0].mxu0
      %v1718 = vadd.f32 0.0, %v1717
      %v1719 = vpop.f32.mrb[0].mxu0
      %v1720 = vpop.f32.mrb[0].mxu0
      %v1721 = vadd.f32 0.0, %v1720
      %v1722 = vpop.f32.mrb[0].mxu0
      %1723 = vmatprep.mubr.bf16.mxu0 0
      %1724 = vmatmul.mubr.bf16.gmra.mrb[0].mxu0 %v1402
      %v1725 = vpop.f32.mrb[0].mxu0
      %v1726 = vadd.f32 0.0, %v1725
      %v1727 = vpop.f32.mrb[0].mxu0
      %v1728 = vpop.f32.mrb[0].mxu0
      %v1729 = vadd.f32 0.0, %v1728
      %v1730 = vpop.f32.mrb[0].mxu0
      %1731 = vdwg.mxu0
      %v1732 = vadd.f32 %v1442, %v1606
      %v1733 = vadd.f32 %v1445, %v1609
      %v1734 = vadd.f32 %v1450, %v1614
      %v1735 = vadd.f32 %v1453, %v1617
      %v1736 = vadd.f32 %v1458, %v1622
      %v1737 = vadd.f32 %v1461, %v1625
      %v1738 = vadd.f32 %v1466, %v1630
      %v1739 = vadd.f32 %v1469, %v1633
      %v1740 = vadd.f32 %v1474, %v1638
      %v1741 = vadd.f32 %v1477, %v1641
      %v1742 = vadd.f32 %v1482, %v1646
      %v1743 = vadd.f32 %v1485, %v1649
      %v1744 = vadd.f32 %v1490, %v1654
      %v1745 = vadd.f32 %v1493, %v1657
      %v1746 = vadd.f32 %v1498, %v1662
      %v1747 = vadd.f32 %v1501, %v1665
      %v1748 = vadd.f32 %v1506, %v1670
      %v1749 = vadd.f32 %v1509, %v1673
      %v1750 = vadd.f32 %v1514, %v1678
      %v1751 = vadd.f32 %v1517, %v1681
      %v1752 = vadd.f32 %v1522, %v1686
      %v1753 = vadd.f32 %v1525, %v1689
      %v1754 = vadd.f32 %v1530, %v1694
      %v1755 = vadd.f32 %v1533, %v1697
      %v1756 = vadd.f32 %v1538, %v1702
      %v1757 = vadd.f32 %v1541, %v1705
      %v1758 = vadd.f32 %v1546, %v1710
      %v1759 = vadd.f32 %v1549, %v1713
      %v1760 = vadd.f32 %v1554, %v1718
      %v1761 = vadd.f32 %v1557, %v1721
      %v1762 = vadd.f32 %v1562, %v1726
      %v1763 = vadd.f32 %v1565, %v1729
      %v1764 = vsel %vm484, %v1732, 0.0
      %v1765 = vsel %vm484, %v1733, 0.0
      %v1766 = vadd.f32 %v1764, %v1765
      %v1767 = vsel %vm484, %v1734, 0.0
      %v1768 = vadd.f32 %v1766, %v1767
      %v1769 = vsel %vm484, %v1735, 0.0
      %v1770 = vadd.f32 %v1768, %v1769
      %v1771 = vsel %vm484, %v1736, 0.0
      %v1772 = vadd.f32 %v1770, %v1771
      %v1773 = vsel %vm484, %v1737, 0.0
      %v1774 = vadd.f32 %v1772, %v1773
      %v1775 = vsel %vm484, %v1738, 0.0
      %v1776 = vadd.f32 %v1774, %v1775
      %v1777 = vsel %vm484, %v1739, 0.0
      %v1778 = vadd.f32 %v1776, %v1777
      %v1779 = vsel %vm484, %v1740, 0.0
      %v1780 = vadd.f32 %v1778, %v1779
      %v1781 = vsel %vm484, %v1741, 0.0
      %v1782 = vadd.f32 %v1780, %v1781
      %v1783 = vsel %vm484, %v1742, 0.0
      %v1784 = vadd.f32 %v1782, %v1783
      %v1785 = vsel %vm484, %v1743, 0.0
      %v1786 = vadd.f32 %v1784, %v1785
      %v1787 = vsel %vm484, %v1744, 0.0
      %v1788 = vadd.f32 %v1786, %v1787
      %v1789 = vsel %vm484, %v1745, 0.0
      %v1790 = vadd.f32 %v1788, %v1789
      %v1791 = vsel %vm484, %v1746, 0.0
      %v1792 = vadd.f32 %v1790, %v1791
      %v1793 = vsel %vm484, %v1747, 0.0
      %v1794 = vadd.f32 %v1792, %v1793
      %v1795 = vsel %vm484, %v1748, 0.0
      %v1796 = vadd.f32 %v1794, %v1795
      %v1797 = vsel %vm484, %v1749, 0.0
      %v1798 = vadd.f32 %v1796, %v1797
      %v1799 = vsel %vm484, %v1750, 0.0
      %v1800 = vadd.f32 %v1798, %v1799
      %v1801 = vsel %vm484, %v1751, 0.0
      %v1802 = vadd.f32 %v1800, %v1801
      %v1803 = vsel %vm484, %v1752, 0.0
      %v1804 = vadd.f32 %v1802, %v1803
      %v1805 = vsel %vm484, %v1753, 0.0
      %v1806 = vadd.f32 %v1804, %v1805
      %v1807 = vsel %vm484, %v1754, 0.0
      %v1808 = vadd.f32 %v1806, %v1807
      %v1809 = vsel %vm484, %v1755, 0.0
      %v1810 = vadd.f32 %v1808, %v1809
      %v1811 = vsel %vm484, %v1756, 0.0
      %v1812 = vadd.f32 %v1810, %v1811
      %v1813 = vsel %vm484, %v1757, 0.0
      %v1814 = vadd.f32 %v1812, %v1813
      %v1815 = vsel %vm484, %v1758, 0.0
      %v1816 = vadd.f32 %v1814, %v1815
      %v1817 = vsel %vm484, %v1759, 0.0
      %v1818 = vadd.f32 %v1816, %v1817
      %v1819 = vsel %vm484, %v1760, 0.0
      %v1820 = vadd.f32 %v1818, %v1819
      %v1821 = vsel %vm484, %v1761, 0.0
      %v1822 = vadd.f32 %v1820, %v1821
      %v1823 = vsel %vm484, %v1762, 0.0
      %v1824 = vadd.f32 %v1822, %v1823
      %v1825 = vsel %vm484, %v1763, 0.0
      %v1826 = vadd.f32 %v1824, %v1825
      %v1827 = vrot.slane %v1826, 4
      %v1828 = vadd.f32 %v1826, %v1827
      %v1829 = vrot.slane %v1828, 2
      %v1830 = vadd.f32 %v1828, %v1829
      %v1831 = vrot.slane %v1830, 1
      %v1832 = vadd.f32 %v1830, %v1831
      %v1833 = vmul.f32 %v1732, %v1732
      %v1834 = vmul.f32 %v1733, %v1733
      %v1835 = vmul.f32 %v1734, %v1734
      %v1836 = vmul.f32 %v1735, %v1735
      %v1837 = vmul.f32 %v1736, %v1736
      %v1838 = vmul.f32 %v1737, %v1737
      %v1839 = vmul.f32 %v1738, %v1738
      %v1840 = vmul.f32 %v1739, %v1739
      %v1841 = vmul.f32 %v1740, %v1740
      %v1842 = vmul.f32 %v1741, %v1741
      %v1843 = vmul.f32 %v1742, %v1742
      %v1844 = vmul.f32 %v1743, %v1743
      %v1845 = vmul.f32 %v1744, %v1744
      %v1846 = vmul.f32 %v1745, %v1745
      %v1847 = vmul.f32 %v1746, %v1746
      %v1848 = vmul.f32 %v1747, %v1747
      %v1849 = vmul.f32 %v1748, %v1748
      %v1850 = vmul.f32 %v1749, %v1749
      %v1851 = vmul.f32 %v1750, %v1750
      %v1852 = vmul.f32 %v1751, %v1751
      %v1853 = vmul.f32 %v1752, %v1752
      %v1854 = vmul.f32 %v1753, %v1753
      %v1855 = vmul.f32 %v1754, %v1754
      %v1856 = vmul.f32 %v1755, %v1755
      %v1857 = vmul.f32 %v1756, %v1756
      %v1858 = vmul.f32 %v1757, %v1757
      %v1859 = vmul.f32 %v1758, %v1758
      %v1860 = vmul.f32 %v1759, %v1759
      %v1861 = vmul.f32 %v1760, %v1760
      %v1862 = vmul.f32 %v1761, %v1761
      %v1863 = vmul.f32 %v1762, %v1762
      %v1864 = vmul.f32 %v1763, %v1763
      %v1865 = vsel %vm484, %v1833, 0.0
      %v1866 = vsel %vm484, %v1834, 0.0
      %v1867 = vadd.f32 %v1865, %v1866
      %v1868 = vsel %vm484, %v1835, 0.0
      %v1869 = vadd.f32 %v1867, %v1868
      %v1870 = vsel %vm484, %v1836, 0.0
      %v1871 = vadd.f32 %v1869, %v1870
      %v1872 = vsel %vm484, %v1837, 0.0
      %v1873 = vadd.f32 %v1871, %v1872
      %v1874 = vsel %vm484, %v1838, 0.0
      %v1875 = vadd.f32 %v1873, %v1874
      %v1876 = vsel %vm484, %v1839, 0.0
      %v1877 = vadd.f32 %v1875, %v1876
      %v1878 = vsel %vm484, %v1840, 0.0
      %v1879 = vadd.f32 %v1877, %v1878
      %v1880 = vsel %vm484, %v1841, 0.0
      %v1881 = vadd.f32 %v1879, %v1880
      %v1882 = vsel %vm484, %v1842, 0.0
      %v1883 = vadd.f32 %v1881, %v1882
      %v1884 = vsel %vm484, %v1843, 0.0
      %v1885 = vadd.f32 %v1883, %v1884
      %v1886 = vsel %vm484, %v1844, 0.0
      %v1887 = vadd.f32 %v1885, %v1886
      %v1888 = vsel %vm484, %v1845, 0.0
      %v1889 = vadd.f32 %v1887, %v1888
      %v1890 = vsel %vm484, %v1846, 0.0
      %v1891 = vadd.f32 %v1889, %v1890
      %v1892 = vsel %vm484, %v1847, 0.0
      %v1893 = vadd.f32 %v1891, %v1892
      %v1894 = vsel %vm484, %v1848, 0.0
      %v1895 = vadd.f32 %v1893, %v1894
      %v1896 = vsel %vm484, %v1849, 0.0
      %v1897 = vadd.f32 %v1895, %v1896
      %v1898 = vsel %vm484, %v1850, 0.0
      %v1899 = vadd.f32 %v1897, %v1898
      %v1900 = vsel %vm484, %v1851, 0.0
      %v1901 = vadd.f32 %v1899, %v1900
      %v1902 = vsel %vm484, %v1852, 0.0
      %v1903 = vadd.f32 %v1901, %v1902
      %v1904 = vsel %vm484, %v1853, 0.0
      %v1905 = vadd.f32 %v1903, %v1904
      %v1906 = vsel %vm484, %v1854, 0.0
      %v1907 = vadd.f32 %v1905, %v1906
      %v1908 = vsel %vm484, %v1855, 0.0
      %v1909 = vadd.f32 %v1907, %v1908
      %v1910 = vsel %vm484, %v1856, 0.0
      %v1911 = vadd.f32 %v1909, %v1910
      %v1912 = vsel %vm484, %v1857, 0.0
      %v1913 = vadd.f32 %v1911, %v1912
      %v1914 = vsel %vm484, %v1858, 0.0
      %v1915 = vadd.f32 %v1913, %v1914
      %v1916 = vsel %vm484, %v1859, 0.0
      %v1917 = vadd.f32 %v1915, %v1916
      %v1918 = vsel %vm484, %v1860, 0.0
      %v1919 = vadd.f32 %v1917, %v1918
      %v1920 = vsel %vm484, %v1861, 0.0
      %v1921 = vadd.f32 %v1919, %v1920
      %v1922 = vsel %vm484, %v1862, 0.0
      %v1923 = vadd.f32 %v1921, %v1922
      %v1924 = vsel %vm484, %v1863, 0.0
      %v1925 = vadd.f32 %v1923, %v1924
      %v1926 = vsel %vm484, %v1864, 0.0
      %v1927 = vadd.f32 %v1925, %v1926
      %v1928 = vrot.slane %v1927, 4
      %v1929 = vadd.f32 %v1927, %v1928
      %v1930 = vrot.slane %v1929, 2
      %v1931 = vadd.f32 %v1929, %v1930
      %v1932 = vrot.slane %v1931, 1
      %v1933 = vadd.f32 %v1931, %v1932
      %v1934 = vsel %vm1236, %v1832, %v1933
      %vm1935 = vcmask 25600
      %1936 = vst.msk [vmem:[%s211] sm:$0x3] %vm1935, %v1934
      %v1937 = vpack.c.bf16 %v1733, %v1732
      %v1938 = vpack.c.bf16 %v1735, %v1734
      %v1939 = vpack.c.bf16 %v1737, %v1736
      %v1940 = vpack.c.bf16 %v1739, %v1738
      %v1941 = vpack.c.bf16 %v1741, %v1740
      %v1942 = vpack.c.bf16 %v1743, %v1742
      %v1943 = vpack.c.bf16 %v1745, %v1744
      %v1944 = vpack.c.bf16 %v1747, %v1746
      %v1945 = vpack.c.bf16 %v1749, %v1748
      %v1946 = vpack.c.bf16 %v1751, %v1750
      %v1947 = vpack.c.bf16 %v1753, %v1752
      %v1948 = vpack.c.bf16 %v1755, %v1754
      %v1949 = vpack.c.bf16 %v1757, %v1756
      %v1950 = vpack.c.bf16 %v1759, %v1758
      %v1951 = vpack.c.bf16 %v1761, %v1760
      %v1952 = vpack.c.bf16 %v1763, %v1762
      %v1969 = vunpack.c.l.b16 %v1937
      %v1970 = vunpack.c.h.b16 %v1937
      %v1971 = vunpack.c.l.b16 %v1938
      %v1972 = vunpack.c.h.b16 %v1938
      %v1973 = vunpack.c.l.b16 %v1939
      %v1974 = vunpack.c.h.b16 %v1939
      %v1975 = vunpack.c.l.b16 %v1940
      %v1976 = vunpack.c.h.b16 %v1940
      %v1977 = vunpack.c.l.b16 %v1941
      %v1978 = vunpack.c.h.b16 %v1941
      %v1979 = vunpack.c.l.b16 %v1942
      %v1980 = vunpack.c.h.b16 %v1942
      %v1981 = vunpack.c.l.b16 %v1943
      %v1982 = vunpack.c.h.b16 %v1943
      %v1983 = vunpack.c.l.b16 %v1944
      %v1984 = vunpack.c.h.b16 %v1944
      %v1985 = vunpack.c.l.b16 %v1945
      %v1986 = vunpack.c.h.b16 %v1945
      %v1987 = vunpack.c.l.b16 %v1946
      %v1988 = vunpack.c.h.b16 %v1946
      %v1989 = vunpack.c.l.b16 %v1947
      %v1990 = vunpack.c.h.b16 %v1947
      %v1991 = vunpack.c.l.b16 %v1948
      %v1992 = vunpack.c.h.b16 %v1948
      %v1993 = vunpack.c.l.b16 %v1949
      %v1994 = vunpack.c.h.b16 %v1949
      %v1995 = vunpack.c.l.b16 %v1950
      %v1996 = vunpack.c.h.b16 %v1950
      %v1997 = vunpack.c.l.b16 %v1951
      %v1998 = vunpack.c.h.b16 %v1951
      %v1999 = vunpack.c.l.b16 %v1952
      %v2000 = vunpack.c.h.b16 %v1952
      %v2001 = vpack.c.b16 %v1969, %v1969
      %v2002 = vpack.c.b16 %v1970, %v1970
      %v2003 = vpack.c.b16 %v1971, %v1971
      %v2004 = vpack.c.b16 %v1972, %v1972
      %v2005 = vpack.c.b16 %v1973, %v1973
      %v2006 = vpack.c.b16 %v1974, %v1974
      %v2007 = vpack.c.b16 %v1975, %v1975
      %v2008 = vpack.c.b16 %v1976, %v1976
      %v2009 = vpack.c.b16 %v1977, %v1977
      %v2010 = vpack.c.b16 %v1978, %v1978
      %v2011 = vpack.c.b16 %v1979, %v1979
      %v2012 = vpack.c.b16 %v1980, %v1980
      %v2013 = vpack.c.b16 %v1981, %v1981
      %v2014 = vpack.c.b16 %v1982, %v1982
      %v2015 = vpack.c.b16 %v1983, %v1983
      %v2016 = vpack.c.b16 %v1984, %v1984
      %v2017 = vpack.c.b16 %v1985, %v1985
      %v2018 = vpack.c.b16 %v1986, %v1986
      %v2019 = vpack.c.b16 %v1987, %v1987
      %v2020 = vpack.c.b16 %v1988, %v1988
      %v2021 = vpack.c.b16 %v1989, %v1989
      %v2022 = vpack.c.b16 %v1990, %v1990
      %v2023 = vpack.c.b16 %v1991, %v1991
      %v2024 = vpack.c.b16 %v1992, %v1992
      %v2025 = vpack.c.b16 %v1993, %v1993
      %v2026 = vpack.c.b16 %v1994, %v1994
      %v2027 = vpack.c.b16 %v1995, %v1995
      %v2028 = vpack.c.b16 %v1996, %v1996
      %v2029 = vpack.c.b16 %v1997, %v1997
      %v2030 = vpack.c.b16 %v1998, %v1998
      %v2031 = vpack.c.b16 %v1999, %v1999
      %v2032 = vpack.c.b16 %v2000, %v2000
      %vm2065 = vcmask 27648
      %2066 = vst.msk [vmem:[%s206] sm:$0xf] %vm2065, %v2001
      %2067 = vst.msk [vmem:[%s206 + $0x4] sm:$0xf] %vm2065, %v2002
      %2068 = vst.msk [vmem:[%s206 + $0x8] sm:$0xf] %vm2065, %v2003
      %2069 = vst.msk [vmem:[%s206 + $0xc] sm:$0xf] %vm2065, %v2004
      %2070 = vst.msk [vmem:[%s206 + $0x10] sm:$0xf] %vm2065, %v2005
      %2071 = vst.msk [vmem:[%s206 + $0x14] sm:$0xf] %vm2065, %v2006
      %2072 = vst.msk [vmem:[%s206 + $0x18] sm:$0xf] %vm2065, %v2007
      %2073 = vst.msk [vmem:[%s206 + $0x1c] sm:$0xf] %vm2065, %v2008
      %2074 = vst.msk [vmem:[%s206 + $0x20] sm:$0xf] %vm2065, %v2009
      %2075 = vst.msk [vmem:[%s206 + $0x24] sm:$0xf] %vm2065, %v2010
      %2076 = vst.msk [vmem:[%s206 + $0x28] sm:$0xf] %vm2065, %v2011
      %2077 = vst.msk [vmem:[%s206 + $0x2c] sm:$0xf] %vm2065, %v2012
      %2078 = vst.msk [vmem:[%s206 + $0x30] sm:$0xf] %vm2065, %v2013
      %2079 = vst.msk [vmem:[%s206 + $0x34] sm:$0xf] %vm2065, %v2014
      %2080 = vst.msk [vmem:[%s206 + $0x38] sm:$0xf] %vm2065, %v2015
      %2081 = vst.msk [vmem:[%s206 + $0x3c] sm:$0xf] %vm2065, %v2016
      %2082 = vst.msk [vmem:[%s206 + $0x40] sm:$0xf] %vm2065, %v2017
      %2083 = vst.msk [vmem:[%s206 + $0x44] sm:$0xf] %vm2065, %v2018
      %2084 = vst.msk [vmem:[%s206 + $0x48] sm:$0xf] %vm2065, %v2019
      %2085 = vst.msk [vmem:[%s206 + $0x4c] sm:$0xf] %vm2065, %v2020
      %2086 = vst.msk [vmem:[%s206 + $0x50] sm:$0xf] %vm2065, %v2021
      %2087 = vst.msk [vmem:[%s206 + $0x54] sm:$0xf] %vm2065, %v2022
      %2088 = vst.msk [vmem:[%s206 + $0x58] sm:$0xf] %vm2065, %v2023
      %2089 = vst.msk [vmem:[%s206 + $0x5c] sm:$0xf] %vm2065, %v2024
      %2090 = vst.msk [vmem:[%s206 + $0x60] sm:$0xf] %vm2065, %v2025
      %2091 = vst.msk [vmem:[%s206 + $0x64] sm:$0xf] %vm2065, %v2026
      %2092 = vst.msk [vmem:[%s206 + $0x68] sm:$0xf] %vm2065, %v2027
      %2093 = vst.msk [vmem:[%s206 + $0x6c] sm:$0xf] %vm2065, %v2028
      %2094 = vst.msk [vmem:[%s206 + $0x70] sm:$0xf] %vm2065, %v2029
      %2095 = vst.msk [vmem:[%s206 + $0x74] sm:$0xf] %vm2065, %v2030
      %2096 = vst.msk [vmem:[%s206 + $0x78] sm:$0xf] %vm2065, %v2031
      %2097 = vst.msk [vmem:[%s206 + $0x7c] sm:$0xf] %vm2065, %v2032
      %s2098 = smul.u32 32, %s16
      %p2099 = scmp.lt.s32.totalorder %s2098, 63
      %s2100 = scalar_select %p2099, %s2098, 63
      %s2101 = smul.addr %s2100, 4
      %s2102 = scalar_lea.vmem %s3, %s2101
      %p2103 = scmp.lt.s32.totalorder %s16, 1
      %s2104 = scalar_select %p2103, %s16, 1
      %s2105 = smul.addr %s2104, 2
      %s2106 = scalar_lea.vmem %s4, %s2105
      // Predicated region
      $region33: #{_lambda_.3} parent=31 // pred_check
        %p2107 = pneg %p102
      $region34: #{_lambda_.3} parent=31 // pred_check_branch
        %2109 = sbr.rel (%p2107) target = $region36
      $region35: #{_lambda_.3} parent=31 // pred_region
        %s2110 = smul.u32 32, %s16
      $region36: #{_lambda_.3} parent=31 // pred_fallthru
        _
      // Predicated region
      $region37: #{_lambda_.3} parent=31 // pred_check
        %p2111 = pneg %p128
      $region38: #{_lambda_.3} parent=31 // pred_check_branch
        %2113 = sbr.rel (%p2111) target = $region40
      $region39: #{_lambda_.3} parent=31 // pred_region
        _
      $region40: #{_lambda_.3} parent=31 // pred_fallthru
        _
    $region32: #{_lambda_.3} parent=5 // pred_fallthru
      _
    %p2114 = scmp.le.s32.totalorder 2, %s11
    // Predicated region
    $region41: #{_lambda_.3} parent=5 // pred_check
      %p2115 = pneg %p2114
    $region42: #{_lambda_.3} parent=5 // pred_check_branch
      %2117 = sbr.rel (%p2115) target = $region44
    $region43: #{_lambda_.3} parent=5 // pred_region
      %s2118 = ssub.s32 %s11, 2
      // Predicated region
      $region45: #{_lambda_.3} parent=43 // pred_check
        %p2119 = pneg %p108
      $region46: #{_lambda_.3} parent=43 // pred_check_branch
        %2121 = sbr.rel (%p2119) target = $region48
      $region47: #{_lambda_.3} parent=43 // pred_region
        %s2122 = smul.u32 32, %s17
        %p2123 = scmp.lt.s32.totalorder %s2122, 63
        %s2124 = scalar_select %p2123, %s2122, 63
        %s2125 = smul.addr %s2124, 4
        %s2126 = scalar_lea.vmem %s3, %s2125
      $region48: #{_lambda_.3} parent=43 // pred_fallthru
        _
      // Predicated region
      $region49: #{_lambda_.3} parent=43 // pred_check
        %p2127 = pneg %p134
      $region50: #{_lambda_.3} parent=43 // pred_check_branch
        %2129 = sbr.rel (%p2127) target = $region52
      $region51: #{_lambda_.3} parent=43 // pred_region
        %p2130 = scmp.lt.s32.totalorder %s17, 1
        %s2131 = scalar_select %p2130, %s17, 1
        %s2132 = smul.addr %s2131, 2
        %s2133 = scalar_lea.vmem %s4, %s2132
      $region52: #{_lambda_.3} parent=43 // pred_fallthru
        _
    $region44: #{_lambda_.3} parent=5 // pred_fallthru
      _
  $region6: #{_lambda_.3} parent=0 // loop_footer
    %s15 = sadd.s32 1, %s11
  $region7: #{_lambda_.3} parent=0 // loop_footer_branch
    %10 = sbr.rel target = $region3
  $region8: #{_lambda_.3} parent=0 // loop_exit
    _

// kernel: _lambda_.4
$region0: #{_lambda_.4}
  #allocation0 [shape = 'u32[]', space=smem, size = 0x4, offset = 0x4, fixed_abs, tag = 'smem constant byte address 0x4 - core index']
  #allocation1 [shape = 'u32[144,128]{1,0:T(1,128)}', space=vmem, size = 0x12000, scoped, tag = 'internal scratch']
  %s0 = inlined_call_operand.vmem [shape: bf16[512,4], index: 0, kind: input, shape index: {}, may-alias: {0,5}]
  %s1 = inlined_call_operand.vmem [shape: f32[1,4], index: 1, kind: input, shape index: {}]
  %s2 = inlined_call_operand.vmem [shape: f32[1,4], index: 2, kind: input, shape index: {}]
  %s3 = inlined_call_operand.vmem [shape: bf16[3,4,2], index: 3, kind: input, shape index: {}]
  %s4 = inlined_call_operand.vmem [shape: bf16[3,2,4], index: 4, kind: input, shape index: {}]
  %s5 = inlined_call_operand.vmem [shape: bf16[512,4], index: 5, kind: output, shape index: {0}, may-alias: {0,5}]
  %s6 = inlined_call_operand.vmem [shape: f32[2,2,4], index: 6, kind: output, shape index: {1}]
  %7 = xla_tuple %s5, %s6
  %s8 = sld [smem:[#allocation0]]
  $region61: #{_lambda_.4} parent=0
    _
  %s10 = ssub.s32 1, %s8
  %s11 = scalar_select 0, %s10, %s8
  loop: start=0, step=1, limit=4
  $region2: #{_lambda_.4} parent=0 // loop_pre_header
    _
  $region3: #{_lambda_.4} parent=0 // loop_header
    %s13 = sphi 0, %s17
    %p14 = scmp.ge.s32.totalorder %s13, 4
    %s23 = sphi 0, %s25
    %s26 = sphi 0, %s23
    %s27 = sphi 0, %s26
    %s43 = sphi 0, %s27
    %s47 = sphi 0, %s47
    %s49 = sphi 0, %s47
    %s50 = sphi 0, %s49
    %s64 = sphi 0, %s50
    %s68 = sphi 0, %s68
    %s70 = sphi 0, %s68
    %s71 = sphi 0, %s70
    %s85 = sphi 0, %s71
    %s89 = sphi 0, %s89
    %s91 = sphi 0, %s89
    %s92 = sphi 0, %s91
    %s106 = sphi 0, %s92
    %s110 = sphi 0, %s110
    %s112 = sphi 0, %s110
    %s113 = sphi 0, %s112
    %s127 = sphi 0, %s113
    %s133 = sphi 0, %s135
    %s136 = sphi 0, %s133
    %s137 = sphi 0, %s136
    %s153 = sphi 0, %s137
    %s159 = sphi 0, %s161
    %s162 = sphi 0, %s159
    %s163 = sphi 0, %s162
    %s179 = sphi 0, %s163
  $region4: #{_lambda_.4} parent=0 // loop_header_branch
    %16 = sbr.rel (%p14) target = $region8
  $region5: #{_lambda_.4} parent=0 // loop_body
    %s18 = ssub.s32 %s13, 1
    %s19 = ssub.s32 %s13, 2
    %s20 = sadd.s32 %s13, 1
    %s21 = ssub.s32 %s13, %s20
    %p22 = scmp.eq.s32.totalorder %s21, 0
    %s24 = sadd.s32 %s23, 1
    %s25 = scalar_select %p22, %s23, %s24
    %p28 = pneg %p22
    %p29 = scmp.eq.s32.totalorder %s13, 1
    %p30 = por %p28, %p29
    %p31 = scmp.ne.s32.totalorder %s23, %s26
    %p32 = scmp.eq.s32.totalorder %s13, 0
    %p33 = por %p31, %p32
    %p34 = scmp.ne.s32.totalorder %s23, %s26
    %p35 = scmp.eq.s32.totalorder %s18, 1
    %p36 = por %p34, %p35
    %p37 = scmp.ne.s32.totalorder %s26, %s27
    %p38 = scmp.eq.s32.totalorder %s18, 0
    %p39 = por %p37, %p38
    %p40 = scmp.ne.s32.totalorder %s26, %s27
    %p41 = scmp.eq.s32.totalorder %s19, 1
    %p42 = por %p40, %p41
    %p44 = scmp.ne.s32.totalorder %s27, %s43
    %p45 = scmp.eq.s32.totalorder %s19, 0
    %p46 = por %p44, %p45
    %s48 = sadd.s32 %s47, 1
    %p51 = scmp.eq.s32.totalorder %s13, 1
    %p52 = scmp.ne.s32.totalorder %s47, %s49
    %p53 = scmp.eq.s32.totalorder %s13, 0
    %p54 = por %p52, %p53
    %p55 = scmp.ne.s32.totalorder %s47, %s49
    %p56 = scmp.eq.s32.totalorder %s18, 1
    %p57 = por %p55, %p56
    %p58 = scmp.ne.s32.totalorder %s49, %s50
    %p59 = scmp.eq.s32.totalorder %s18, 0
    %p60 = por %p58, %p59
    %p61 = scmp.ne.s32.totalorder %s49, %s50
    %p62 = scmp.eq.s32.totalorder %s19, 1
    %p63 = por %p61, %p62
    %p65 = scmp.ne.s32.totalorder %s50, %s64
    %p66 = scmp.eq.s32.totalorder %s19, 0
    %p67 = por %p65, %p66
    %s69 = sadd.s32 %s68, 1
    %p72 = scmp.eq.s32.totalorder %s13, 1
    %p73 = scmp.ne.s32.totalorder %s68, %s70
    %p74 = scmp.eq.s32.totalorder %s13, 0
    %p75 = por %p73, %p74
    %p76 = scmp.ne.s32.totalorder %s68, %s70
    %p77 = scmp.eq.s32.totalorder %s18, 1
    %p78 = por %p76, %p77
    %p79 = scmp.ne.s32.totalorder %s70, %s71
    %p80 = scmp.eq.s32.totalorder %s18, 0
    %p81 = por %p79, %p80
    %p82 = scmp.ne.s32.totalorder %s70, %s71
    %p83 = scmp.eq.s32.totalorder %s19, 1
    %p84 = por %p82, %p83
    %p86 = scmp.ne.s32.totalorder %s71, %s85
    %p87 = scmp.eq.s32.totalorder %s19, 0
    %p88 = por %p86, %p87
    %s90 = sadd.s32 %s89, 1
    %p93 = scmp.eq.s32.totalorder %s13, 1
    %p94 = scmp.ne.s32.totalorder %s89, %s91
    %p95 = scmp.eq.s32.totalorder %s13, 0
    %p96 = por %p94, %p95
    %p97 = scmp.ne.s32.totalorder %s89, %s91
    %p98 = scmp.eq.s32.totalorder %s18, 1
    %p99 = por %p97, %p98
    %p100 = scmp.ne.s32.totalorder %s91, %s92
    %p101 = scmp.eq.s32.totalorder %s18, 0
    %p102 = por %p100, %p101
    %p103 = scmp.ne.s32.totalorder %s91, %s92
    %p104 = scmp.eq.s32.totalorder %s19, 1
    %p105 = por %p103, %p104
    %p107 = scmp.ne.s32.totalorder %s92, %s106
    %p108 = scmp.eq.s32.totalorder %s19, 0
    %p109 = por %p107, %p108
    %s111 = sadd.s32 %s110, 1
    %p114 = scmp.eq.s32.totalorder %s13, 1
    %p115 = scmp.ne.s32.totalorder %s110, %s112
    %p116 = scmp.eq.s32.totalorder %s13, 0
    %p117 = por %p115, %p116
    %p118 = scmp.ne.s32.totalorder %s110, %s112
    %p119 = scmp.eq.s32.totalorder %s18, 1
    %p120 = por %p118, %p119
    %p121 = scmp.ne.s32.totalorder %s112, %s113
    %p122 = scmp.eq.s32.totalorder %s18, 0
    %p123 = por %p121, %p122
    %p124 = scmp.ne.s32.totalorder %s112, %s113
    %p125 = scmp.eq.s32.totalorder %s19, 1
    %p126 = por %p124, %p125
    %p128 = scmp.ne.s32.totalorder %s113, %s127
    %p129 = scmp.eq.s32.totalorder %s19, 0
    %p130 = por %p128, %p129
    %s131 = ssub.s32 %s13, %s20
    %p132 = scmp.eq.s32.totalorder %s131, 0
    %s134 = sadd.s32 %s133, 1
    %s135 = scalar_select %p132, %s133, %s134
    %p138 = pneg %p132
    %p139 = scmp.eq.s32.totalorder %s13, 1
    %p140 = por %p138, %p139
    %p141 = scmp.ne.s32.totalorder %s133, %s136
    %p142 = scmp.eq.s32.totalorder %s13, 0
    %p143 = por %p141, %p142
    %p144 = scmp.ne.s32.totalorder %s133, %s136
    %p145 = scmp.eq.s32.totalorder %s18, 1
    %p146 = por %p144, %p145
    %p147 = scmp.ne.s32.totalorder %s136, %s137
    %p148 = scmp.eq.s32.totalorder %s18, 0
    %p149 = por %p147, %p148
    %p150 = scmp.ne.s32.totalorder %s136, %s137
    %p151 = scmp.eq.s32.totalorder %s19, 1
    %p152 = por %p150, %p151
    %p154 = scmp.ne.s32.totalorder %s137, %s153
    %p155 = scmp.eq.s32.totalorder %s19, 0
    %p156 = por %p154, %p155
    %s157 = ssub.s32 %s13, %s20
    %p158 = scmp.eq.s32.totalorder %s157, 0
    %s160 = sadd.s32 %s159, 1
    %s161 = scalar_select %p158, %s159, %s160
    %p164 = pneg %p158
    %p165 = scmp.eq.s32.totalorder %s13, 1
    %p166 = por %p164, %p165
    %p167 = scmp.ne.s32.totalorder %s159, %s162
    %p168 = scmp.eq.s32.totalorder %s13, 0
    %p169 = por %p167, %p168
    %p170 = scmp.ne.s32.totalorder %s159, %s162
    %p171 = scmp.eq.s32.totalorder %s18, 1
    %p172 = por %p170, %p171
    %p173 = scmp.ne.s32.totalorder %s162, %s163
    %p174 = scmp.eq.s32.totalorder %s18, 0
    %p175 = por %p173, %p174
    %p176 = scmp.ne.s32.totalorder %s162, %s163
    %p177 = scmp.eq.s32.totalorder %s19, 1
    %p178 = por %p176, %p177
    %p180 = scmp.ne.s32.totalorder %s163, %s179
    %p181 = scmp.eq.s32.totalorder %s19, 0
    %p182 = por %p180, %p181
    %p183 = scmp.le.s32.totalorder 1, %s13
    %p184 = scmp.lt.s32.totalorder %s13, 3
    %p185 = pnand %p183, %p184
    %p186 = pneg %p185
    // Predicated region
    $region9: #{_lambda_.4} parent=5 // pred_check
      _
    $region10: #{_lambda_.4} parent=5 // pred_check_branch
      %188 = sbr.rel (%p185) target = $region12
    $region11: #{_lambda_.4} parent=5 // pred_region
      %s189 = ssub.s32 %s13, 1
      // Predicated region
      $region13: #{_lambda_.4} parent=11 // pred_check
        %p190 = pneg %p60
      $region14: #{_lambda_.4} parent=11 // pred_check_branch
        %192 = sbr.rel (%p190) target = $region16
      $region15: #{_lambda_.4} parent=11 // pred_region
        _
      $region16: #{_lambda_.4} parent=11 // pred_fallthru
        _
      // Predicated region
      $region17: #{_lambda_.4} parent=11 // pred_check
        %p193 = pneg %p81
      $region18: #{_lambda_.4} parent=11 // pred_check_branch
        %195 = sbr.rel (%p193) target = $region20
      $region19: #{_lambda_.4} parent=11 // pred_region
        _
      $region20: #{_lambda_.4} parent=11 // pred_fallthru
        _
      // Predicated region
      $region21: #{_lambda_.4} parent=11 // pred_check
        %p196 = pneg %p102
      $region22: #{_lambda_.4} parent=11 // pred_check_branch
        %198 = sbr.rel (%p196) target = $region24
      $region23: #{_lambda_.4} parent=11 // pred_region
        _
      $region24: #{_lambda_.4} parent=11 // pred_fallthru
        _
      // Predicated region
      $region25: #{_lambda_.4} parent=11 // pred_check
        %p199 = pneg %p123
      $region26: #{_lambda_.4} parent=11 // pred_check_branch
        %201 = sbr.rel (%p199) target = $region28
      $region27: #{_lambda_.4} parent=11 // pred_region
        _
      $region28: #{_lambda_.4} parent=11 // pred_fallthru
        _
    $region12: #{_lambda_.4} parent=5 // pred_fallthru
      _
    %p202 = scmp.lt.s32.totalorder %s13, 2
    // Predicated region
    $region29: #{_lambda_.4} parent=5 // pred_check
      %p203 = pneg %p202
    $region30: #{_lambda_.4} parent=5 // pred_check_branch
      %205 = sbr.rel (%p203) target = $region32
    $region31: #{_lambda_.4} parent=5 // pred_region
      // Predicated region
      $region33: #{_lambda_.4} parent=31 // pred_check
        %p206 = pneg %p33
      $region34: #{_lambda_.4} parent=31 // pred_check_branch
        %208 = sbr.rel (%p206) target = $region36
      $region35: #{_lambda_.4} parent=31 // pred_region
        %s209 = smul.u32 32, %s13
        %p210 = scmp.lt.s32.totalorder %s209, 63
        %s211 = scalar_select %p210, %s209, 63
        %s212 = smul.addr %s211, 4
        %s213 = scalar_lea.vmem %s0, %s212
        %s214 = smul.u32 32, %s13
      $region36: #{_lambda_.4} parent=31 // pred_fallthru
        _
    $region32: #{_lambda_.4} parent=5 // pred_fallthru
      _
    %p215 = scmp.le.s32.totalorder 1, %s13
    %p216 = scmp.lt.s32.totalorder %s13, 3
    %p217 = pnand %p215, %p216
    %p218 = pneg %p217
    // Predicated region
    $region37: #{_lambda_.4} parent=5 // pred_check
      _
    $region38: #{_lambda_.4} parent=5 // pred_check_branch
      %220 = sbr.rel (%p217) target = $region40
    $region39: #{_lambda_.4} parent=5 // pred_region
      %s221 = ssub.s32 %s13, 1
      %s222 = smul.u32 32, %s18
      %p223 = scmp.lt.s32.totalorder %s222, 63
      %s224 = scalar_select %p223, %s222, 63
      %s225 = smul.addr %s224, 4
      %s226 = scalar_lea.vmem %s0, %s225
      %p227 = pneg %p39
      %p228 = pneg %p36
      %p229 = pneg %p60
      %p230 = pneg %p57
      %p231 = pneg %p81
      %p232 = pneg %p78
      %p233 = pneg %p102
      %p234 = pneg %p99
      %p235 = pneg %p123
      %p236 = pneg %p120
      %p237 = pneg %p149
      %p238 = pneg %p146
      %s239 = smul.u32 32, %s18
      %p240 = scmp.lt.s32.totalorder %s239, 63
      %s241 = scalar_select %p240, %s239, 63
      %s242 = smul.addr %s241, 4
      %s243 = scalar_lea.vmem %s5, %s242
      %p244 = pneg %p175
      %p245 = pneg %p172
      %p246 = scmp.lt.s32.totalorder %s18, 1
      %s247 = scalar_select %p246, %s18, 1
      %s248 = smul.addr %s247, 2
      %s249 = scalar_lea.vmem %s6, %s248
      %s250 = smul.u32 32, %s18
      %p251 = scmp.lt.s32.totalorder %s250, 63
      %s252 = scalar_select %p251, %s250, 63
      %s253 = smul.addr %s252, 4
      %s254 = scalar_lea.vmem %s0, %s253
      %s255 = smul.u32 32, %s18
      %s256 = smul.u32 32, %s18
      %p257 = scmp.lt.s32.totalorder %s256, 63
      %s258 = scalar_select %p257, %s256, 63
      %s259 = smul.addr %s258, 4
      %s260 = scalar_lea.vmem %s5, %s259
      %s261 = smul.u32 32, %s18
      %p262 = scmp.lt.s32.totalorder %s18, 1
      %s263 = scalar_select %p262, %s18, 1
      %s264 = smul.addr %s263, 2
      %s265 = scalar_lea.vmem %s6, %s264
      %v267 = vld [vmem:[%s254] sm:$0xf]
      %v268 = vld [vmem:[%s254 + $0x4] sm:$0xf]
      %v269 = vld [vmem:[%s254 + $0x8] sm:$0xf]
      %v270 = vld [vmem:[%s254 + $0xc] sm:$0xf]
      %v271 = vld [vmem:[%s254 + $0x10] sm:$0xf]
      %v272 = vld [vmem:[%s254 + $0x14] sm:$0xf]
      %v273 = vld [vmem:[%s254 + $0x18] sm:$0xf]
      %v274 = vld [vmem:[%s254 + $0x1c] sm:$0xf]
      %v275 = vld [vmem:[%s254 + $0x20] sm:$0xf]
      %v276 = vld [vmem:[%s254 + $0x24] sm:$0xf]
      %v277 = vld [vmem:[%s254 + $0x28] sm:$0xf]
      %v278 = vld [vmem:[%s254 + $0x2c] sm:$0xf]
      %v279 = vld [vmem:[%s254 + $0x30] sm:$0xf]
      %v280 = vld [vmem:[%s254 + $0x34] sm:$0xf]
      %v281 = vld [vmem:[%s254 + $0x38] sm:$0xf]
      %v282 = vld [vmem:[%s254 + $0x3c] sm:$0xf]
      %v283 = vld [vmem:[%s254 + $0x40] sm:$0xf]
      %v284 = vld [vmem:[%s254 + $0x44] sm:$0xf]
      %v285 = vld [vmem:[%s254 + $0x48] sm:$0xf]
      %v286 = vld [vmem:[%s254 + $0x4c] sm:$0xf]
      %v287 = vld [vmem:[%s254 + $0x50] sm:$0xf]
      %v288 = vld [vmem:[%s254 + $0x54] sm:$0xf]
      %v289 = vld [vmem:[%s254 + $0x58] sm:$0xf]
      %v290 = vld [vmem:[%s254 + $0x5c] sm:$0xf]
      %v291 = vld [vmem:[%s254 + $0x60] sm:$0xf]
      %v292 = vld [vmem:[%s254 + $0x64] sm:$0xf]
      %v293 = vld [vmem:[%s254 + $0x68] sm:$0xf]
      %v294 = vld [vmem:[%s254 + $0x6c] sm:$0xf]
      %v295 = vld [vmem:[%s254 + $0x70] sm:$0xf]
      %v296 = vld [vmem:[%s254 + $0x74] sm:$0xf]
      %v297 = vld [vmem:[%s254 + $0x78] sm:$0xf]
      %v298 = vld [vmem:[%s254 + $0x7c] sm:$0xf]
      %v299 = vunpack.c.l.bf16 %v267
      %v300 = vunpack.c.l.bf16 %v268
      %v301 = vunpack.c.l.bf16 %v269
      %v302 = vunpack.c.l.bf16 %v270
      %v303 = vunpack.c.l.bf16 %v271
      %v304 = vunpack.c.l.bf16 %v272
      %v305 = vunpack.c.l.bf16 %v273
      %v306 = vunpack.c.l.bf16 %v274
      %v307 = vunpack.c.l.bf16 %v275
      %v308 = vunpack.c.l.bf16 %v276
      %v309 = vunpack.c.l.bf16 %v277
      %v310 = vunpack.c.l.bf16 %v278
      %v311 = vunpack.c.l.bf16 %v279
      %v312 = vunpack.c.l.bf16 %v280
      %v313 = vunpack.c.l.bf16 %v281
      %v314 = vunpack.c.l.bf16 %v282
      %v315 = vunpack.c.l.bf16 %v283
      %v316 = vunpack.c.l.bf16 %v284
      %v317 = vunpack.c.l.bf16 %v285
      %v318 = vunpack.c.l.bf16 %v286
      %v319 = vunpack.c.l.bf16 %v287
      %v320 = vunpack.c.l.bf16 %v288
      %v321 = vunpack.c.l.bf16 %v289
      %v322 = vunpack.c.l.bf16 %v290
      %v323 = vunpack.c.l.bf16 %v291
      %v324 = vunpack.c.l.bf16 %v292
      %v325 = vunpack.c.l.bf16 %v293
      %v326 = vunpack.c.l.bf16 %v294
      %v327 = vunpack.c.l.bf16 %v295
      %v328 = vunpack.c.l.bf16 %v296
      %v329 = vunpack.c.l.bf16 %v297
      %v330 = vunpack.c.l.bf16 %v298
      %v331 = vld [vmem:[%s1] sm:$0x1]
      %v333 = vlaneseq
      %v334 = vshrl.u32 %v333, 7
      %v335 = vsub.s32 0, %v334
      %v336 = vrot.slane %v331, %v335
      %v338 = vmul.f32 %v299, %v336
      %v339 = vmul.f32 %v300, %v336
      %v340 = vmul.f32 %v301, %v336
      %v341 = vmul.f32 %v302, %v336
      %v342 = vmul.f32 %v303, %v336
      %v343 = vmul.f32 %v304, %v336
      %v344 = vmul.f32 %v305, %v336
      %v345 = vmul.f32 %v306, %v336
      %v346 = vmul.f32 %v307, %v336
      %v347 = vmul.f32 %v308, %v336
      %v348 = vmul.f32 %v309, %v336
      %v349 = vmul.f32 %v310, %v336
      %v350 = vmul.f32 %v311, %v336
      %v351 = vmul.f32 %v312, %v336
      %v352 = vmul.f32 %v313, %v336
      %v353 = vmul.f32 %v314, %v336
      %v354 = vmul.f32 %v315, %v336
      %v355 = vmul.f32 %v316, %v336
      %v356 = vmul.f32 %v317, %v336
      %v357 = vmul.f32 %v318, %v336
      %v358 = vmul.f32 %v319, %v336
      %v359 = vmul.f32 %v320, %v336
      %v360 = vmul.f32 %v321, %v336
      %v361 = vmul.f32 %v322, %v336
      %v362 = vmul.f32 %v323, %v336
      %v363 = vmul.f32 %v324, %v336
      %v364 = vmul.f32 %v325, %v336
      %v365 = vmul.f32 %v326, %v336
      %v366 = vmul.f32 %v327, %v336
      %v367 = vmul.f32 %v328, %v336
      %v368 = vmul.f32 %v329, %v336
      %v369 = vmul.f32 %v330, %v336
      %v370 = vld [vmem:[%s2] sm:$0x1]
      %v372 = vlaneseq
      %v373 = vshrl.u32 %v372, 7
      %v374 = vsub.s32 0, %v373
      %v375 = vrot.slane %v370, %v374
      %v377 = vadd.f32 %v338, %v375
      %v378 = vadd.f32 %v339, %v375
      %v379 = vadd.f32 %v340, %v375
      %v380 = vadd.f32 %v341, %v375
      %v381 = vadd.f32 %v342, %v375
      %v382 = vadd.f32 %v343, %v375
      %v383 = vadd.f32 %v344, %v375
      %v384 = vadd.f32 %v345, %v375
      %v385 = vadd.f32 %v346, %v375
      %v386 = vadd.f32 %v347, %v375
      %v387 = vadd.f32 %v348, %v375
      %v388 = vadd.f32 %v349, %v375
      %v389 = vadd.f32 %v350, %v375
      %v390 = vadd.f32 %v351, %v375
      %v391 = vadd.f32 %v352, %v375
      %v392 = vadd.f32 %v353, %v375
      %v393 = vadd.f32 %v354, %v375
      %v394 = vadd.f32 %v355, %v375
      %v395 = vadd.f32 %v356, %v375
      %v396 = vadd.f32 %v357, %v375
      %v397 = vadd.f32 %v358, %v375
      %v398 = vadd.f32 %v359, %v375
      %v399 = vadd.f32 %v360, %v375
      %v400 = vadd.f32 %v361, %v375
      %v401 = vadd.f32 %v362, %v375
      %v402 = vadd.f32 %v363, %v375
      %v403 = vadd.f32 %v364, %v375
      %v404 = vadd.f32 %v365, %v375
      %v405 = vadd.f32 %v366, %v375
      %v406 = vadd.f32 %v367, %v375
      %v407 = vadd.f32 %v368, %v375
      %v408 = vadd.f32 %v369, %v375
      %v409 = vmax.f32 %v377, 0.0
      %v410 = vmax.f32 %v378, 0.0
      %v411 = vmax.f32 %v379, 0.0
      %v412 = vmax.f32 %v380, 0.0
      %v413 = vmax.f32 %v381, 0.0
      %v414 = vmax.f32 %v382, 0.0
      %v415 = vmax.f32 %v383, 0.0
      %v416 = vmax.f32 %v384, 0.0
      %v417 = vmax.f32 %v385, 0.0
      %v418 = vmax.f32 %v386, 0.0
      %v419 = vmax.f32 %v387, 0.0
      %v420 = vmax.f32 %v388, 0.0
      %v421 = vmax.f32 %v389, 0.0
      %v422 = vmax.f32 %v390, 0.0
      %v423 = vmax.f32 %v391, 0.0
      %v424 = vmax.f32 %v392, 0.0
      %v425 = vmax.f32 %v393, 0.0
      %v426 = vmax.f32 %v394, 0.0
      %v427 = vmax.f32 %v395, 0.0
      %v428 = vmax.f32 %v396, 0.0
      %v429 = vmax.f32 %v397, 0.0
      %v430 = vmax.f32 %v398, 0.0
      %v431 = vmax.f32 %v399, 0.0
      %v432 = vmax.f32 %v400, 0.0
      %v433 = vmax.f32 %v401, 0.0
      %v434 = vmax.f32 %v402, 0.0
      %v435 = vmax.f32 %v403, 0.0
      %v436 = vmax.f32 %v404, 0.0
      %v437 = vmax.f32 %v405, 0.0
      %v438 = vmax.f32 %v406, 0.0
      %v439 = vmax.f32 %v407, 0.0
      %v440 = vmax.f32 %v408, 0.0
      %v441 = vld [vmem:[%s3] sm:$0x3]
      %v442 = vld [vmem:[%s3 + $0x2] sm:$0x3]
      %v443 = vld [vmem:[%s3 + $0x4] sm:$0x3]
      %v444 = vld [vmem:[%s4] sm:$0x1]
      %v445 = vld [vmem:[%s4 + $0x1] sm:$0x1]
      %v446 = vld [vmem:[%s4 + $0x2] sm:$0x1]
      %v447 = vlaneseq
      %v448 = vshrl.u32 %v447, 7
      %v449 = vadd.s32 %v448, 8
      %vm450 = vcmp.gt.s32.totalorder %v448, 0
      %vm451 = vcmp.gt.s32.totalorder %v449, 0
      %v452 = vrot.slane %v409, 7
      %v453 = vrot.slane %v410, 7
      %v454 = vrot.slane %v411, 7
      %v455 = vrot.slane %v412, 7
      %v456 = vrot.slane %v413, 7
      %v457 = vrot.slane %v414, 7
      %v458 = vrot.slane %v415, 7
      %v459 = vrot.slane %v416, 7
      %v460 = vrot.slane %v417, 7
      %v461 = vrot.slane %v418, 7
      %v462 = vrot.slane %v419, 7
      %v463 = vrot.slane %v420, 7
      %v464 = vrot.slane %v421, 7
      %v465 = vrot.slane %v422, 7
      %v466 = vrot.slane %v423, 7
      %v467 = vrot.slane %v424, 7
      %v468 = vrot.slane %v425, 7
      %v469 = vrot.slane %v426, 7
      %v470 = vrot.slane %v427, 7
      %v471 = vrot.slane %v428, 7
      %v472 = vrot.slane %v429, 7
      %v473 = vrot.slane %v430, 7
      %v474 = vrot.slane %v431, 7
      %v475 = vrot.slane %v432, 7
      %v476 = vrot.slane %v433, 7
      %v477 = vrot.slane %v434, 7
      %v478 = vrot.slane %v435, 7
      %v479 = vrot.slane %v436, 7
      %v480 = vrot.slane %v437, 7
      %v481 = vrot.slane %v438, 7
      %v482 = vrot.slane %v439, 7
      %v483 = vrot.slane %v440, 7
      %vm484 = vcmp.lt.s32.totalorder %v448, 1
      %v485 = vsel %vm484, %v482, %v483
      %v486 = vsel %vm484, %v481, %v482
      %v487 = vsel %vm484, %v480, %v481
      %v488 = vsel %vm484, %v479, %v480
      %v489 = vsel %vm484, %v478, %v479
      %v490 = vsel %vm484, %v477, %v478
      %v491 = vsel %vm484, %v476, %v477
      %v492 = vsel %vm484, %v475, %v476
      %v493 = vsel %vm484, %v474, %v475
      %v494 = vsel %vm484, %v473, %v474
      %v495 = vsel %vm484, %v472, %v473
      %v496 = vsel %vm484, %v471, %v472
      %v497 = vsel %vm484, %v470, %v471
      %v498 = vsel %vm484, %v469, %v470
      %v499 = vsel %vm484, %v468, %v469
      %v500 = vsel %vm484, %v467, %v468
      %v501 = vsel %vm484, %v466, %v467
      %v502 = vsel %vm484, %v465, %v466
      %v503 = vsel %vm484, %v464, %v465
      %v504 = vsel %vm484, %v463, %v464
      %v505 = vsel %vm484, %v462, %v463
      %v506 = vsel %vm484, %v461, %v462
      %v507 = vsel %vm484, %v460, %v461
      %v508 = vsel %vm484, %v459, %v460
      %v509 = vsel %vm484, %v458, %v459
      %v510 = vsel %vm484, %v457, %v458
      %v511 = vsel %vm484, %v456, %v457
      %v512 = vsel %vm484, %v455, %v456
      %v513 = vsel %vm484, %v454, %v455
      %v514 = vsel %vm484, %v453, %v454
      %v515 = vsel %vm484, %v452, %v453
      %v516 = vsel %vm484, %v483, %v452
      %v517 = vsel %vm450, %v516, 0.0
      %v518 = vsel %vm451, %v515, 0.0
      %v519 = vsel %vm450, %v514, 0.0
      %v520 = vsel %vm451, %v513, 0.0
      %v521 = vsel %vm450, %v512, 0.0
      %v522 = vsel %vm451, %v511, 0.0
      %v523 = vsel %vm450, %v510, 0.0
      %v524 = vsel %vm451, %v509, 0.0
      %v525 = vsel %vm450, %v508, 0.0
      %v526 = vsel %vm451, %v507, 0.0
      %v527 = vsel %vm450, %v506, 0.0
      %v528 = vsel %vm451, %v505, 0.0
      %v529 = vsel %vm450, %v504, 0.0
      %v530 = vsel %vm451, %v503, 0.0
      %v531 = vsel %vm450, %v502, 0.0
      %v532 = vsel %vm451, %v501, 0.0
      %v533 = vsel %vm450, %v500, 0.0
      %v534 = vsel %vm451, %v499, 0.0
      %v535 = vsel %vm450, %v498, 0.0
      %v536 = vsel %vm451, %v497, 0.0
      %v537 = vsel %vm450, %v496, 0.0
      %v538 = vsel %vm451, %v495, 0.0
      %v539 = vsel %vm450, %v494, 0.0
      %v540 = vsel %vm451, %v493, 0.0
      %v541 = vsel %vm450, %v492, 0.0
      %v542 = vsel %vm451, %v491, 0.0
      %v543 = vsel %vm450, %v490, 0.0
      %v544 = vsel %vm451, %v489, 0.0
      %v545 = vsel %vm450, %v488, 0.0
      %v546 = vsel %vm451, %v487, 0.0
      %v547 = vsel %vm450, %v486, 0.0
      %v548 = vsel %vm451, %v485, 0.0
      %vm549 = vcmp.lt.s32.totalorder %v448, 15
      %vm550 = vcmp.lt.s32.totalorder %v449, 15
      %v551 = vrot.slane %v409, 1
      %v552 = vrot.slane %v410, 1
      %v553 = vrot.slane %v411, 1
      %v554 = vrot.slane %v412, 1
      %v555 = vrot.slane %v413, 1
      %v556 = vrot.slane %v414, 1
      %v557 = vrot.slane %v415, 1
      %v558 = vrot.slane %v416, 1
      %v559 = vrot.slane %v417, 1
      %v560 = vrot.slane %v418, 1
      %v561 = vrot.slane %v419, 1
      %v562 = vrot.slane %v420, 1
      %v563 = vrot.slane %v421, 1
      %v564 = vrot.slane %v422, 1
      %v565 = vrot.slane %v423, 1
      %v566 = vrot.slane %v424, 1
      %v567 = vrot.slane %v425, 1
      %v568 = vrot.slane %v426, 1
      %v569 = vrot.slane %v427, 1
      %v570 = vrot.slane %v428, 1
      %v571 = vrot.slane %v429, 1
      %v572 = vrot.slane %v430, 1
      %v573 = vrot.slane %v431, 1
      %v574 = vrot.slane %v432, 1
      %v575 = vrot.slane %v433, 1
      %v576 = vrot.slane %v434, 1
      %v577 = vrot.slane %v435, 1
      %v578 = vrot.slane %v436, 1
      %v579 = vrot.slane %v437, 1
      %v580 = vrot.slane %v438, 1
      %v581 = vrot.slane %v439, 1
      %v582 = vrot.slane %v440, 1
      %vm583 = vcmp.lt.s32.totalorder %v448, 7
      %v584 = vsel %vm583, %v581, %v582
      %v585 = vsel %vm583, %v580, %v581
      %v586 = vsel %vm583, %v579, %v580
      %v587 = vsel %vm583, %v578, %v579
      %v588 = vsel %vm583, %v577, %v578
      %v589 = vsel %vm583, %v576, %v577
      %v590 = vsel %vm583, %v575, %v576
      %v591 = vsel %vm583, %v574, %v575
      %v592 = vsel %vm583, %v573, %v574
      %v593 = vsel %vm583, %v572, %v573
      %v594 = vsel %vm583, %v571, %v572
      %v595 = vsel %vm583, %v570, %v571
      %v596 = vsel %vm583, %v569, %v570
      %v597 = vsel %vm583, %v568, %v569
      %v598 = vsel %vm583, %v567, %v568
      %v599 = vsel %vm583, %v566, %v567
      %v600 = vsel %vm583, %v565, %v566
      %v601 = vsel %vm583, %v564, %v565
      %v602 = vsel %vm583, %v563, %v564
      %v603 = vsel %vm583, %v562, %v563
      %v604 = vsel %vm583, %v561, %v562
      %v605 = vsel %vm583, %v560, %v561
      %v606 = vsel %vm583, %v559, %v560
      %v607 = vsel %vm583, %v558, %v559
      %v608 = vsel %vm583, %v557, %v558
      %v609 = vsel %vm583, %v556, %v557
      %v610 = vsel %vm583, %v555, %v556
      %v611 = vsel %vm583, %v554, %v555
      %v612 = vsel %vm583, %v553, %v554
      %v613 = vsel %vm583, %v552, %v553
      %v614 = vsel %vm583, %v551, %v552
      %v615 = vsel %vm583, %v582, %v551
      %v616 = vsel %vm549, %v614, 0.0
      %v617 = vsel %vm550, %v613, 0.0
      %v618 = vsel %vm549, %v612, 0.0
      %v619 = vsel %vm550, %v611, 0.0
      %v620 = vsel %vm549, %v610, 0.0
      %v621 = vsel %vm550, %v609, 0.0
      %v622 = vsel %vm549, %v608, 0.0
      %v623 = vsel %vm550, %v607, 0.0
      %v624 = vsel %vm549, %v606, 0.0
      %v625 = vsel %vm550, %v605, 0.0
      %v626 = vsel %vm549, %v604, 0.0
      %v627 = vsel %vm550, %v603, 0.0
      %v628 = vsel %vm549, %v602, 0.0
      %v629 = vsel %vm550, %v601, 0.0
      %v630 = vsel %vm549, %v600, 0.0
      %v631 = vsel %vm550, %v599, 0.0
      %v632 = vsel %vm549, %v598, 0.0
      %v633 = vsel %vm550, %v597, 0.0
      %v634 = vsel %vm549, %v596, 0.0
      %v635 = vsel %vm550, %v595, 0.0
      %v636 = vsel %vm549, %v594, 0.0
      %v637 = vsel %vm550, %v593, 0.0
      %v638 = vsel %vm549, %v592, 0.0
      %v639 = vsel %vm550, %v591, 0.0
      %v640 = vsel %vm549, %v590, 0.0
      %v641 = vsel %vm550, %v589, 0.0
      %v642 = vsel %vm549, %v588, 0.0
      %v643 = vsel %vm550, %v587, 0.0
      %v644 = vsel %vm549, %v586, 0.0
      %v645 = vsel %vm550, %v585, 0.0
      %v646 = vsel %vm549, %v584, 0.0
      %v647 = vsel %vm550, %v615, 0.0
      %v648 = vpack.c.bf16 %v518, %v517
      %v649 = vpack.c.bf16 %v520, %v519
      %v650 = vpack.c.bf16 %v522, %v521
      %v651 = vpack.c.bf16 %v524, %v523
      %v652 = vpack.c.bf16 %v526, %v525
      %v653 = vpack.c.bf16 %v528, %v527
      %v654 = vpack.c.bf16 %v530, %v529
      %v655 = vpack.c.bf16 %v532, %v531
      %v656 = vpack.c.bf16 %v534, %v533
      %v657 = vpack.c.bf16 %v536, %v535
      %v658 = vpack.c.bf16 %v538, %v537
      %v659 = vpack.c.bf16 %v540, %v539
      %v660 = vpack.c.bf16 %v542, %v541
      %v661 = vpack.c.bf16 %v544, %v543
      %v662 = vpack.c.bf16 %v546, %v545
      %v663 = vpack.c.bf16 %v548, %v547
      %v664 = vpack.c.bf16 %v410, %v409
      %v665 = vpack.c.bf16 %v412, %v411
      %v666 = vpack.c.bf16 %v414, %v413
      %v667 = vpack.c.bf16 %v416, %v415
      %v668 = vpack.c.bf16 %v418, %v417
      %v669 = vpack.c.bf16 %v420, %v419
      %v670 = vpack.c.bf16 %v422, %v421
      %v671 = vpack.c.bf16 %v424, %v423
      %v672 = vpack.c.bf16 %v426, %v425
      %v673 = vpack.c.bf16 %v428, %v427
      %v674 = vpack.c.bf16 %v430, %v429
      %v675 = vpack.c.bf16 %v432, %v431
      %v676 = vpack.c.bf16 %v434, %v433
      %v677 = vpack.c.bf16 %v436, %v435
      %v678 = vpack.c.bf16 %v438, %v437
      %v679 = vpack.c.bf16 %v440, %v439
      %vm680 = vcmask 31744
      %v682 = vsel %vm680, %v664, 0
      %v685 = vsel %vm680, %v665, 0
      %v688 = vsel %vm680, %v666, 0
      %v691 = vsel %vm680, %v667, 0
      %v694 = vsel %vm680, %v668, 0
      %v697 = vsel %vm680, %v669, 0
      %v700 = vsel %vm680, %v670, 0
      %v703 = vsel %vm680, %v671, 0
      %v706 = vsel %vm680, %v672, 0
      %v709 = vsel %vm680, %v673, 0
      %v712 = vsel %vm680, %v674, 0
      %v715 = vsel %vm680, %v675, 0
      %v718 = vsel %vm680, %v676, 0
      %v721 = vsel %vm680, %v677, 0
      %v724 = vsel %vm680, %v678, 0
      %v727 = vsel %vm680, %v679, 0
      %vm729 = vcmask 1041408
      %v731 = vsel %vm729, %v442, 0
      %733 = vmatprep.subr.bf16.mxu0 0
      %734 = vmatpush1.bf16.msra.mxu0 %v731
      %735 = vmatprep.subr.bf16.mxu0 0
      %736 = vmatpush1.bf16.msra.mxu0 0
      %737 = vmatprep.subr.bf16.mxu0 0
      %738 = vmatpush1.bf16.msra.mxu0 0
      %739 = vmatprep.subr.bf16.mxu0 0
      %740 = vmatpush1.bf16.msra.mxu0 0
      %741 = vmatprep.subr.bf16.mxu0 0
      %742 = vmatpush1.bf16.msra.mxu0 0
      %743 = vmatprep.subr.bf16.mxu0 0
      %744 = vmatpush1.bf16.msra.mxu0 0
      %745 = vmatprep.subr.bf16.mxu0 0
      %746 = vmatpush1.bf16.msra.mxu0 0
      %747 = vmatprep.subr.bf16.mxu0 0
      %748 = vmatpush1.bf16.msra.mxu0 0
      %749 = vmatprep.subr.bf16.mxu0 0
      %750 = vmatpush1.bf16.msra.mxu0 0
      %751 = vmatprep.subr.bf16.mxu0 0
      %752 = vmatpush1.bf16.msra.mxu0 0
      %753 = vmatprep.subr.bf16.mxu0 0
      %754 = vmatpush1.bf16.msra.mxu0 0
      %755 = vmatprep.subr.bf16.mxu0 0
      %756 = vmatpush1.bf16.msra.mxu0 0
      %757 = vmatprep.subr.bf16.mxu0 0
      %758 = vmatpush1.bf16.msra.mxu0 0
      %759 = vmatprep.subr.bf16.mxu0 0
      %760 = vmatpush1.bf16.msra.mxu0 0
      %761 = vmatprep.subr.bf16.mxu0 0
      %762 = vmatpush1.bf16.msra.mxu0 0
      %763 = vmatprep.subr.bf16.mxu0 0
      %764 = vmatpush1.bf16.msra.mxu0 0
      %765 = vmatprep.mubr.bf16.mxu0 0
      %766 = vmatmul.mubr.bf16.gmra.mrb[0].mxu0 %v682
      %v767 = vpop.f32.mrb[0].mxu0
      %v768 = vadd.f32 0.0, %v767
      %v769 = vpop.f32.mrb[0].mxu0
      %v770 = vpop.f32.mrb[0].mxu0
      %v771 = vadd.f32 0.0, %v770
      %v772 = vpop.f32.mrb[0].mxu0
      %773 = vmatprep.mubr.bf16.mxu0 0
      %774 = vmatmul.mubr.bf16.gmra.mrb[0].mxu0 %v685
      %v775 = vpop.f32.mrb[0].mxu0
      %v776 = vadd.f32 0.0, %v775
      %v777 = vpop.f32.mrb[0].mxu0
      %v778 = vpop.f32.mrb[0].mxu0
      %v779 = vadd.f32 0.0, %v778
      %v780 = vpop.f32.mrb[0].mxu0
      %781 = vmatprep.mubr.bf16.mxu0 0
      %782 = vmatmul.mubr.bf16.gmra.mrb[0].mxu0 %v688
      %v783 = vpop.f32.mrb[0].mxu0
      %v784 = vadd.f32 0.0, %v783
      %v785 = vpop.f32.mrb[0].mxu0
      %v786 = vpop.f32.mrb[0].mxu0
      %v787 = vadd.f32 0.0, %v786
      %v788 = vpop.f32.mrb[0].mxu0
      %789 = vmatprep.mubr.bf16.mxu0 0
      %790 = vmatmul.mubr.bf16.gmra.mrb[0].mxu0 %v691
      %v791 = vpop.f32.mrb[0].mxu0
      %v792 = vadd.f32 0.0, %v791
      %v793 = vpop.f32.mrb[0].mxu0
      %v794 = vpop.f32.mrb[0].mxu0
      %v795 = vadd.f32 0.0, %v794
      %v796 = vpop.f32.mrb[0].mxu0
      %797 = vmatprep.mubr.bf16.mxu0 0
      %798 = vmatmul.mubr.bf16.gmra.mrb[0].mxu0 %v694
      %v799 = vpop.f32.mrb[0].mxu0
      %v800 = vadd.f32 0.0, %v799
      %v801 = vpop.f32.mrb[0].mxu0
      %v802 = vpop.f32.mrb[0].mxu0
      %v803 = vadd.f32 0.0, %v802
      %v804 = vpop.f32.mrb[0].mxu0
      %805 = vmatprep.mubr.bf16.mxu0 0
      %806 = vmatmul.mubr.bf16.gmra.mrb[0].mxu0 %v697
      %v807 = vpop.f32.mrb[0].mxu0
      %v808 = vadd.f32 0.0, %v807
      %v809 = vpop.f32.mrb[0].mxu0
      %v810 = vpop.f32.mrb[0].mxu0
      %v811 = vadd.f32 0.0, %v810
      %v812 = vpop.f32.mrb[0].mxu0
      %813 = vmatprep.mubr.bf16.mxu0 0
      %814 = vmatmul.mubr.bf16.gmra.mrb[0].mxu0 %v700
      %v815 = vpop.f32.mrb[0].mxu0
      %v816 = vadd.f32 0.0, %v815
      %v817 = vpop.f32.mrb[0].mxu0
      %v818 = vpop.f32.mrb[0].mxu0
      %v819 = vadd.f32 0.0, %v818
      %v820 = vpop.f32.mrb[0].mxu0
      %821 = vmatprep.mubr.bf16.mxu0 0
      %822 = vmatmul.mubr.bf16.gmra.mrb[0].mxu0 %v703
      %v823 = vpop.f32.mrb[0].mxu0
      %v824 = vadd.f32 0.0, %v823
      %v825 = vpop.f32.mrb[0].mxu0
      %v826 = vpop.f32.mrb[0].mxu0
      %v827 = vadd.f32 0.0, %v826
      %v828 = vpop.f32.mrb[0].mxu0
      %829 = vmatprep.mubr.bf16.mxu0 0
      %830 = vmatmul.mubr.bf16.gmra.mrb[0].mxu0 %v706
      %v831 = vpop.f32.mrb[0].mxu0
      %v832 = vadd.f32 0.0, %v831
      %v833 = vpop.f32.mrb[0].mxu0
      %v834 = vpop.f32.mrb[0].mxu0
      %v835 = vadd.f32 0.0, %v834
      %v836 = vpop.f32.mrb[0].mxu0
      %837 = vmatprep.mubr.bf16.mxu0 0
      %838 = vmatmul.mubr.bf16.gmra.mrb[0].mxu0 %v709
      %v839 = vpop.f32.mrb[0].mxu0
      %v840 = vadd.f32 0.0, %v839
      %v841 = vpop.f32.mrb[0].mxu0
      %v842 = vpop.f32.mrb[0].mxu0
      %v843 = vadd.f32 0.0, %v842
      %v844 = vpop.f32.mrb[0].mxu0
      %845 = vmatprep.mubr.bf16.mxu0 0
      %846 = vmatmul.mubr.bf16.gmra.mrb[0].mxu0 %v712
      %v847 = vpop.f32.mrb[0].mxu0
      %v848 = vadd.f32 0.0, %v847
      %v849 = vpop.f32.mrb[0].mxu0
      %v850 = vpop.f32.mrb[0].mxu0
      %v851 = vadd.f32 0.0, %v850
      %v852 = vpop.f32.mrb[0].mxu0
      %853 = vmatprep.mubr.bf16.mxu0 0
      %854 = vmatmul.mubr.bf16.gmra.mrb[0].mxu0 %v715
      %v855 = vpop.f32.mrb[0].mxu0
      %v856 = vadd.f32 0.0, %v855
      %v857 = vpop.f32.mrb[0].mxu0
      %v858 = vpop.f32.mrb[0].mxu0
      %v859 = vadd.f32 0.0, %v858
      %v860 = vpop.f32.mrb[0].mxu0
      %861 = vmatprep.mubr.bf16.mxu0 0
      %862 = vmatmul.mubr.bf16.gmra.mrb[0].mxu0 %v718
      %v863 = vpop.f32.mrb[0].mxu0
      %v864 = vadd.f32 0.0, %v863
      %v865 = vpop.f32.mrb[0].mxu0
      %v866 = vpop.f32.mrb[0].mxu0
      %v867 = vadd.f32 0.0, %v866
      %v868 = vpop.f32.mrb[0].mxu0
      %869 = vmatprep.mubr.bf16.mxu0 0
      %870 = vmatmul.mubr.bf16.gmra.mrb[0].mxu0 %v721
      %v871 = vpop.f32.mrb[0].mxu0
      %v872 = vadd.f32 0.0, %v871
      %v873 = vpop.f32.mrb[0].mxu0
      %v874 = vpop.f32.mrb[0].mxu0
      %v875 = vadd.f32 0.0, %v874
      %v876 = vpop.f32.mrb[0].mxu0
      %877 = vmatprep.mubr.bf16.mxu0 0
      %878 = vmatmul.mubr.bf16.gmra.mrb[0].mxu0 %v724
      %v879 = vpop.f32.mrb[0].mxu0
      %v880 = vadd.f32 0.0, %v879
      %v881 = vpop.f32.mrb[0].mxu0
      %v882 = vpop.f32.mrb[0].mxu0
      %v883 = vadd.f32 0.0, %v882
      %v884 = vpop.f32.mrb[0].mxu0
      %885 = vmatprep.mubr.bf16.mxu0 0
      %886 = vmatmul.mubr.bf16.gmra.mrb[0].mxu0 %v727
      %v887 = vpop.f32.mrb[0].mxu0
      %v888 = vadd.f32 0.0, %v887
      %v889 = vpop.f32.mrb[0].mxu0
      %v890 = vpop.f32.mrb[0].mxu0
      %v891 = vadd.f32 0.0, %v890
      %v892 = vpop.f32.mrb[0].mxu0
      %893 = vdwg.mxu0
      %v895 = vsel %vm680, %v648, 0
      %v898 = vsel %vm680, %v649, 0
      %v901 = vsel %vm680, %v650, 0
      %v904 = vsel %vm680, %v651, 0
      %v907 = vsel %vm680, %v652, 0
      %v910 = vsel %vm680, %v653, 0
      %v913 = vsel %vm680, %v654, 0
      %v916 = vsel %vm680, %v655, 0
      %v919 = vsel %vm680, %v656, 0
      %v922 = vsel %vm680, %v657, 0
      %v925 = vsel %vm680, %v658, 0
      %v928 = vsel %vm680, %v659, 0
      %v931 = vsel %vm680, %v660, 0
      %v934 = vsel %vm680, %v661, 0
      %v937 = vsel %vm680, %v662, 0
      %v940 = vsel %vm680, %v663, 0
      %v943 = vsel %vm729, %v441, 0
      %945 = vmatprep.subr.bf16.mxu0 0
      %946 = vmatpush1.bf16.msra.mxu0 %v943
      %947 = vmatprep.subr.bf16.mxu0 0
      %948 = vmatpush1.bf16.msra.mxu0 0
      %949 = vmatprep.subr.bf16.mxu0 0
      %950 = vmatpush1.bf16.msra.mxu0 0
      %951 = vmatprep.subr.bf16.mxu0 0
      %952 = vmatpush1.bf16.msra.mxu0 0
      %953 = vmatprep.subr.bf16.mxu0 0
      %954 = vmatpush1.bf16.msra.mxu0 0
      %955 = vmatprep.subr.bf16.mxu0 0
      %956 = vmatpush1.bf16.msra.mxu0 0
      %957 = vmatprep.subr.bf16.mxu0 0
      %958 = vmatpush1.bf16.msra.mxu0 0
      %959 = vmatprep.subr.bf16.mxu0 0
      %960 = vmatpush1.bf16.msra.mxu0 0
      %961 = vmatprep.subr.bf16.mxu0 0
      %962 = vmatpush1.bf16.msra.mxu0 0
      %963 = vmatprep.subr.bf16.mxu0 0
      %964 = vmatpush1.bf16.msra.mxu0 0
      %965 = vmatprep.subr.bf16.mxu0 0
      %966 = vmatpush1.bf16.msra.mxu0 0
      %967 = vmatprep.subr.bf16.mxu0 0
      %968 = vmatpush1.bf16.msra.mxu0 0
      %969 = vmatprep.subr.bf16.mxu0 0
      %970 = vmatpush1.bf16.msra.mxu0 0
      %971 = vmatprep.subr.bf16.mxu0 0
      %972 = vmatpush1.bf16.msra.mxu0 0
      %973 = vmatprep.subr.bf16.mxu0 0
      %974 = vmatpush1.bf16.msra.mxu0 0
      %975 = vmatprep.subr.bf16.mxu0 0
      %976 = vmatpush1.bf16.msra.mxu0 0
      %977 = vmatprep.mubr.bf16.mxu0 0
      %978 = vmatmul.mubr.bf16.gmra.mrb[0].mxu0 %v895
      %v979 = vpop.f32.mrb[0].mxu0
      %v980 = vadd.f32 %v768, %v979
      %v981 = vpop.f32.mrb[0].mxu0
      %v982 = vpop.f32.mrb[0].mxu0
      %v983 = vadd.f32 %v771, %v982
      %v984 = vpop.f32.mrb[0].mxu0
      %985 = vmatprep.mubr.bf16.mxu0 0
      %986 = vmatmul.mubr.bf16.gmra.mrb[0].mxu0 %v898
      %v987 = vpop.f32.mrb[0].mxu0
      %v988 = vadd.f32 %v776, %v987
      %v989 = vpop.f32.mrb[0].mxu0
      %v990 = vpop.f32.mrb[0].mxu0
      %v991 = vadd.f32 %v779, %v990
      %v992 = vpop.f32.mrb[0].mxu0
      %993 = vmatprep.mubr.bf16.mxu0 0
      %994 = vmatmul.mubr.bf16.gmra.mrb[0].mxu0 %v901
      %v995 = vpop.f32.mrb[0].mxu0
      %v996 = vadd.f32 %v784, %v995
      %v997 = vpop.f32.mrb[0].mxu0
      %v998 = vpop.f32.mrb[0].mxu0
      %v999 = vadd.f32 %v787, %v998
      %v1000 = vpop.f32.mrb[0].mxu0
      %1001 = vmatprep.mubr.bf16.mxu0 0
      %1002 = vmatmul.mubr.bf16.gmra.mrb[0].mxu0 %v904
      %v1003 = vpop.f32.mrb[0].mxu0
      %v1004 = vadd.f32 %v792, %v1003
      %v1005 = vpop.f32.mrb[0].mxu0
      %v1006 = vpop.f32.mrb[0].mxu0
      %v1007 = vadd.f32 %v795, %v1006
      %v1008 = vpop.f32.mrb[0].mxu0
      %1009 = vmatprep.mubr.bf16.mxu0 0
      %1010 = vmatmul.mubr.bf16.gmra.mrb[0].mxu0 %v907
      %v1011 = vpop.f32.mrb[0].mxu0
      %v1012 = vadd.f32 %v800, %v1011
      %v1013 = vpop.f32.mrb[0].mxu0
      %v1014 = vpop.f32.mrb[0].mxu0
      %v1015 = vadd.f32 %v803, %v1014
      %v1016 = vpop.f32.mrb[0].mxu0
      %1017 = vmatprep.mubr.bf16.mxu0 0
      %1018 = vmatmul.mubr.bf16.gmra.mrb[0].mxu0 %v910
      %v1019 = vpop.f32.mrb[0].mxu0
      %v1020 = vadd.f32 %v808, %v1019
      %v1021 = vpop.f32.mrb[0].mxu0
      %v1022 = vpop.f32.mrb[0].mxu0
      %v1023 = vadd.f32 %v811, %v1022
      %v1024 = vpop.f32.mrb[0].mxu0
      %1025 = vmatprep.mubr.bf16.mxu0 0
      %1026 = vmatmul.mubr.bf16.gmra.mrb[0].mxu0 %v913
      %v1027 = vpop.f32.mrb[0].mxu0
      %v1028 = vadd.f32 %v816, %v1027
      %v1029 = vpop.f32.mrb[0].mxu0
      %v1030 = vpop.f32.mrb[0].mxu0
      %v1031 = vadd.f32 %v819, %v1030
      %v1032 = vpop.f32.mrb[0].mxu0
      %1033 = vmatprep.mubr.bf16.mxu0 0
      %1034 = vmatmul.mubr.bf16.gmra.mrb[0].mxu0 %v916
      %v1035 = vpop.f32.mrb[0].mxu0
      %v1036 = vadd.f32 %v824, %v1035
      %v1037 = vpop.f32.mrb[0].mxu0
      %v1038 = vpop.f32.mrb[0].mxu0
      %v1039 = vadd.f32 %v827, %v1038
      %v1040 = vpop.f32.mrb[0].mxu0
      %1041 = vmatprep.mubr.bf16.mxu0 0
      %1042 = vmatmul.mubr.bf16.gmra.mrb[0].mxu0 %v919
      %v1043 = vpop.f32.mrb[0].mxu0
      %v1044 = vadd.f32 %v832, %v1043
      %v1045 = vpop.f32.mrb[0].mxu0
      %v1046 = vpop.f32.mrb[0].mxu0
      %v1047 = vadd.f32 %v835, %v1046
      %v1048 = vpop.f32.mrb[0].mxu0
      %1049 = vmatprep.mubr.bf16.mxu0 0
      %1050 = vmatmul.mubr.bf16.gmra.mrb[0].mxu0 %v922
      %v1051 = vpop.f32.mrb[0].mxu0
      %v1052 = vadd.f32 %v840, %v1051
      %v1053 = vpop.f32.mrb[0].mxu0
      %v1054 = vpop.f32.mrb[0].mxu0
      %v1055 = vadd.f32 %v843, %v1054
      %v1056 = vpop.f32.mrb[0].mxu0
      %1057 = vmatprep.mubr.bf16.mxu0 0
      %1058 = vmatmul.mubr.bf16.gmra.mrb[0].mxu0 %v925
      %v1059 = vpop.f32.mrb[0].mxu0
      %v1060 = vadd.f32 %v848, %v1059
      %v1061 = vpop.f32.mrb[0].mxu0
      %v1062 = vpop.f32.mrb[0].mxu0
      %v1063 = vadd.f32 %v851, %v1062
      %v1064 = vpop.f32.mrb[0].mxu0
      %1065 = vmatprep.mubr.bf16.mxu0 0
      %1066 = vmatmul.mubr.bf16.gmra.mrb[0].mxu0 %v928
      %v1067 = vpop.f32.mrb[0].mxu0
      %v1068 = vadd.f32 %v856, %v1067
      %v1069 = vpop.f32.mrb[0].mxu0
      %v1070 = vpop.f32.mrb[0].mxu0
      %v1071 = vadd.f32 %v859, %v1070
      %v1072 = vpop.f32.mrb[0].mxu0
      %1073 = vmatprep.mubr.bf16.mxu0 0
      %1074 = vmatmul.mubr.bf16.gmra.mrb[0].mxu0 %v931
      %v1075 = vpop.f32.mrb[0].mxu0
      %v1076 = vadd.f32 %v864, %v1075
      %v1077 = vpop.f32.mrb[0].mxu0
      %v1078 = vpop.f32.mrb[0].mxu0
      %v1079 = vadd.f32 %v867, %v1078
      %v1080 = vpop.f32.mrb[0].mxu0
      %1081 = vmatprep.mubr.bf16.mxu0 0
      %1082 = vmatmul.mubr.bf16.gmra.mrb[0].mxu0 %v934
      %v1083 = vpop.f32.mrb[0].mxu0
      %v1084 = vadd.f32 %v872, %v1083
      %v1085 = vpop.f32.mrb[0].mxu0
      %v1086 = vpop.f32.mrb[0].mxu0
      %v1087 = vadd.f32 %v875, %v1086
      %v1088 = vpop.f32.mrb[0].mxu0
      %1089 = vmatprep.mubr.bf16.mxu0 0
      %1090 = vmatmul.mubr.bf16.gmra.mrb[0].mxu0 %v937
      %v1091 = vpop.f32.mrb[0].mxu0
      %v1092 = vadd.f32 %v880, %v1091
      %v1093 = vpop.f32.mrb[0].mxu0
      %v1094 = vpop.f32.mrb[0].mxu0
      %v1095 = vadd.f32 %v883, %v1094
      %v1096 = vpop.f32.mrb[0].mxu0
      %1097 = vmatprep.mubr.bf16.mxu0 0
      %1098 = vmatmul.mubr.bf16.gmra.mrb[0].mxu0 %v940
      %v1099 = vpop.f32.mrb[0].mxu0
      %v1100 = vadd.f32 %v888, %v1099
      %v1101 = vpop.f32.mrb[0].mxu0
      %v1102 = vpop.f32.mrb[0].mxu0
      %v1103 = vadd.f32 %v891, %v1102
      %v1104 = vpop.f32.mrb[0].mxu0
      %1105 = vdwg.mxu0
      %v1106 = vpack.c.bf16 %v617, %v616
      %v1107 = vpack.c.bf16 %v619, %v618
      %v1108 = vpack.c.bf16 %v621, %v620
      %v1109 = vpack.c.bf16 %v623, %v622
      %v1110 = vpack.c.bf16 %v625, %v624
      %v1111 = vpack.c.bf16 %v627, %v626
      %v1112 = vpack.c.bf16 %v629, %v628
      %v1113 = vpack.c.bf16 %v631, %v630
      %v1114 = vpack.c.bf16 %v633, %v632
      %v1115 = vpack.c.bf16 %v635, %v634
      %v1116 = vpack.c.bf16 %v637, %v636
      %v1117 = vpack.c.bf16 %v639, %v638
      %v1118 = vpack.c.bf16 %v641, %v640
      %v1119 = vpack.c.bf16 %v643, %v642
      %v1120 = vpack.c.bf16 %v645, %v644
      %v1121 = vpack.c.bf16 %v647, %v646
      %v1123 = vsel %vm680, %v1106, 0
      %v1126 = vsel %vm680, %v1107, 0
      %v1129 = vsel %vm680, %v1108, 0
      %v1132 = vsel %vm680, %v1109, 0
      %v1135 = vsel %vm680, %v1110, 0
      %v1138 = vsel %vm680, %v1111, 0
      %v1141 = vsel %vm680, %v1112, 0
      %v1144 = vsel %vm680, %v1113, 0
      %v1147 = vsel %vm680, %v1114, 0
      %v1150 = vsel %vm680, %v1115, 0
      %v1153 = vsel %vm680, %v1116, 0
      %v1156 = vsel %vm680, %v1117, 0
      %v1159 = vsel %vm680, %v1118, 0
      %v1162 = vsel %vm680, %v1119, 0
      %v1165 = vsel %vm680, %v1120, 0
      %v1168 = vsel %vm680, %v1121, 0
      %v1171 = vsel %vm729, %v443, 0
      %1173 = vmatprep.subr.bf16.mxu0 0
      %1174 = vmatpush1.bf16.msra.mxu0 %v1171
      %1175 = vmatprep.subr.bf16.mxu0 0
      %1176 = vmatpush1.bf16.msra.mxu0 0
      %1177 = vmatprep.subr.bf16.mxu0 0
      %1178 = vmatpush1.bf16.msra.mxu0 0
      %1179 = vmatprep.subr.bf16.mxu0 0
      %1180 = vmatpush1.bf16.msra.mxu0 0
      %1181 = vmatprep.subr.bf16.mxu0 0
      %1182 = vmatpush1.bf16.msra.mxu0 0
      %1183 = vmatprep.subr.bf16.mxu0 0
      %1184 = vmatpush1.bf16.msra.mxu0 0
      %1185 = vmatprep.subr.bf16.mxu0 0
      %1186 = vmatpush1.bf16.msra.mxu0 0
      %1187 = vmatprep.subr.bf16.mxu0 0
      %1188 = vmatpush1.bf16.msra.mxu0 0
      %1189 = vmatprep.subr.bf16.mxu0 0
      %1190 = vmatpush1.bf16.msra.mxu0 0
      %1191 = vmatprep.subr.bf16.mxu0 0
      %1192 = vmatpush1.bf16.msra.mxu0 0
      %1193 = vmatprep.subr.bf16.mxu0 0
      %1194 = vmatpush1.bf16.msra.mxu0 0
      %1195 = vmatprep.subr.bf16.mxu0 0
      %1196 = vmatpush1.bf16.msra.mxu0 0
      %1197 = vmatprep.subr.bf16.mxu0 0
      %1198 = vmatpush1.bf16.msra.mxu0 0
      %1199 = vmatprep.subr.bf16.mxu0 0
      %1200 = vmatpush1.bf16.msra.mxu0 0
      %1201 = vmatprep.subr.bf16.mxu0 0
      %1202 = vmatpush1.bf16.msra.mxu0 0
      %1203 = vmatprep.subr.bf16.mxu0 0
      %1204 = vmatpush1.bf16.msra.mxu0 0
      %1205 = vmatprep.mubr.bf16.mxu0 0
      %1206 = vmatmul.mubr.bf16.gmra.mrb[0].mxu0 %v1123
      %v1207 = vpop.f32.mrb[0].mxu0
      %v1208 = vadd.f32 0.0, %v1207
      %v1209 = vpop.f32.mrb[0].mxu0
      %v1210 = vpop.f32.mrb[0].mxu0
      %v1211 = vadd.f32 0.0, %v1210
      %v1212 = vpop.f32.mrb[0].mxu0
      %1213 = vmatprep.mubr.bf16.mxu0 0
      %1214 = vmatmul.mubr.bf16.gmra.mrb[0].mxu0 %v1126
      %v1215 = vpop.f32.mrb[0].mxu0
      %v1216 = vadd.f32 0.0, %v1215
      %v1217 = vpop.f32.mrb[0].mxu0
      %v1218 = vpop.f32.mrb[0].mxu0
      %v1219 = vadd.f32 0.0, %v1218
      %v1220 = vpop.f32.mrb[0].mxu0
      %1221 = vmatprep.mubr.bf16.mxu0 0
      %1222 = vmatmul.mubr.bf16.gmra.mrb[0].mxu0 %v1129
      %v1223 = vpop.f32.mrb[0].mxu0
      %v1224 = vadd.f32 0.0, %v1223
      %v1225 = vpop.f32.mrb[0].mxu0
      %v1226 = vpop.f32.mrb[0].mxu0
      %v1227 = vadd.f32 0.0, %v1226
      %v1228 = vpop.f32.mrb[0].mxu0
      %1229 = vmatprep.mubr.bf16.mxu0 0
      %1230 = vmatmul.mubr.bf16.gmra.mrb[0].mxu0 %v1132
      %v1231 = vpop.f32.mrb[0].mxu0
      %v1232 = vadd.f32 0.0, %v1231
      %v1233 = vpop.f32.mrb[0].mxu0
      %v1234 = vpop.f32.mrb[0].mxu0
      %v1235 = vadd.f32 0.0, %v1234
      %v1236 = vpop.f32.mrb[0].mxu0
      %1237 = vmatprep.mubr.bf16.mxu0 0
      %1238 = vmatmul.mubr.bf16.gmra.mrb[0].mxu0 %v1135
      %v1239 = vpop.f32.mrb[0].mxu0
      %v1240 = vadd.f32 0.0, %v1239
      %v1241 = vpop.f32.mrb[0].mxu0
      %v1242 = vpop.f32.mrb[0].mxu0
      %v1243 = vadd.f32 0.0, %v1242
      %v1244 = vpop.f32.mrb[0].mxu0
      %1245 = vmatprep.mubr.bf16.mxu0 0
      %1246 = vmatmul.mubr.bf16.gmra.mrb[0].mxu0 %v1138
      %v1247 = vpop.f32.mrb[0].mxu0
      %v1248 = vadd.f32 0.0, %v1247
      %v1249 = vpop.f32.mrb[0].mxu0
      %v1250 = vpop.f32.mrb[0].mxu0
      %v1251 = vadd.f32 0.0, %v1250
      %v1252 = vpop.f32.mrb[0].mxu0
      %1253 = vmatprep.mubr.bf16.mxu0 0
      %1254 = vmatmul.mubr.bf16.gmra.mrb[0].mxu0 %v1141
      %v1255 = vpop.f32.mrb[0].mxu0
      %v1256 = vadd.f32 0.0, %v1255
      %v1257 = vpop.f32.mrb[0].mxu0
      %v1258 = vpop.f32.mrb[0].mxu0
      %v1259 = vadd.f32 0.0, %v1258
      %v1260 = vpop.f32.mrb[0].mxu0
      %1261 = vmatprep.mubr.bf16.mxu0 0
      %1262 = vmatmul.mubr.bf16.gmra.mrb[0].mxu0 %v1144
      %v1263 = vpop.f32.mrb[0].mxu0
      %v1264 = vadd.f32 0.0, %v1263
      %v1265 = vpop.f32.mrb[0].mxu0
      %v1266 = vpop.f32.mrb[0].mxu0
      %v1267 = vadd.f32 0.0, %v1266
      %v1268 = vpop.f32.mrb[0].mxu0
      %1269 = vmatprep.mubr.bf16.mxu0 0
      %1270 = vmatmul.mubr.bf16.gmra.mrb[0].mxu0 %v1147
      %v1271 = vpop.f32.mrb[0].mxu0
      %v1272 = vadd.f32 0.0, %v1271
      %v1273 = vpop.f32.mrb[0].mxu0
      %v1274 = vpop.f32.mrb[0].mxu0
      %v1275 = vadd.f32 0.0, %v1274
      %v1276 = vpop.f32.mrb[0].mxu0
      %1277 = vmatprep.mubr.bf16.mxu0 0
      %1278 = vmatmul.mubr.bf16.gmra.mrb[0].mxu0 %v1150
      %v1279 = vpop.f32.mrb[0].mxu0
      %v1280 = vadd.f32 0.0, %v1279
      %v1281 = vpop.f32.mrb[0].mxu0
      %v1282 = vpop.f32.mrb[0].mxu0
      %v1283 = vadd.f32 0.0, %v1282
      %v1284 = vpop.f32.mrb[0].mxu0
      %1285 = vmatprep.mubr.bf16.mxu0 0
      %1286 = vmatmul.mubr.bf16.gmra.mrb[0].mxu0 %v1153
      %v1287 = vpop.f32.mrb[0].mxu0
      %v1288 = vadd.f32 0.0, %v1287
      %v1289 = vpop.f32.mrb[0].mxu0
      %v1290 = vpop.f32.mrb[0].mxu0
      %v1291 = vadd.f32 0.0, %v1290
      %v1292 = vpop.f32.mrb[0].mxu0
      %1293 = vmatprep.mubr.bf16.mxu0 0
      %1294 = vmatmul.mubr.bf16.gmra.mrb[0].mxu0 %v1156
      %v1295 = vpop.f32.mrb[0].mxu0
      %v1296 = vadd.f32 0.0, %v1295
      %v1297 = vpop.f32.mrb[0].mxu0
      %v1298 = vpop.f32.mrb[0].mxu0
      %v1299 = vadd.f32 0.0, %v1298
      %v1300 = vpop.f32.mrb[0].mxu0
      %1301 = vmatprep.mubr.bf16.mxu0 0
      %1302 = vmatmul.mubr.bf16.gmra.mrb[0].mxu0 %v1159
      %v1303 = vpop.f32.mrb[0].mxu0
      %v1304 = vadd.f32 0.0, %v1303
      %v1305 = vpop.f32.mrb[0].mxu0
      %v1306 = vpop.f32.mrb[0].mxu0
      %v1307 = vadd.f32 0.0, %v1306
      %v1308 = vpop.f32.mrb[0].mxu0
      %1309 = vmatprep.mubr.bf16.mxu0 0
      %1310 = vmatmul.mubr.bf16.gmra.mrb[0].mxu0 %v1162
      %v1311 = vpop.f32.mrb[0].mxu0
      %v1312 = vadd.f32 0.0, %v1311
      %v1313 = vpop.f32.mrb[0].mxu0
      %v1314 = vpop.f32.mrb[0].mxu0
      %v1315 = vadd.f32 0.0, %v1314
      %v1316 = vpop.f32.mrb[0].mxu0
      %1317 = vmatprep.mubr.bf16.mxu0 0
      %1318 = vmatmul.mubr.bf16.gmra.mrb[0].mxu0 %v1165
      %v1319 = vpop.f32.mrb[0].mxu0
      %v1320 = vadd.f32 0.0, %v1319
      %v1321 = vpop.f32.mrb[0].mxu0
      %v1322 = vpop.f32.mrb[0].mxu0
      %v1323 = vadd.f32 0.0, %v1322
      %v1324 = vpop.f32.mrb[0].mxu0
      %1325 = vmatprep.mubr.bf16.mxu0 0
      %1326 = vmatmul.mubr.bf16.gmra.mrb[0].mxu0 %v1168
      %v1327 = vpop.f32.mrb[0].mxu0
      %v1328 = vadd.f32 0.0, %v1327
      %v1329 = vpop.f32.mrb[0].mxu0
      %v1330 = vpop.f32.mrb[0].mxu0
      %v1331 = vadd.f32 0.0, %v1330
      %v1332 = vpop.f32.mrb[0].mxu0
      %1333 = vdwg.mxu0
      %v1334 = vadd.f32 %v980, %v1208
      %v1335 = vadd.f32 %v983, %v1211
      %v1336 = vadd.f32 %v988, %v1216
      %v1337 = vadd.f32 %v991, %v1219
      %v1338 = vadd.f32 %v996, %v1224
      %v1339 = vadd.f32 %v999, %v1227
      %v1340 = vadd.f32 %v1004, %v1232
      %v1341 = vadd.f32 %v1007, %v1235
      %v1342 = vadd.f32 %v1012, %v1240
      %v1343 = vadd.f32 %v1015, %v1243
      %v1344 = vadd.f32 %v1020, %v1248
      %v1345 = vadd.f32 %v1023, %v1251
      %v1346 = vadd.f32 %v1028, %v1256
      %v1347 = vadd.f32 %v1031, %v1259
      %v1348 = vadd.f32 %v1036, %v1264
      %v1349 = vadd.f32 %v1039, %v1267
      %v1350 = vadd.f32 %v1044, %v1272
      %v1351 = vadd.f32 %v1047, %v1275
      %v1352 = vadd.f32 %v1052, %v1280
      %v1353 = vadd.f32 %v1055, %v1283
      %v1354 = vadd.f32 %v1060, %v1288
      %v1355 = vadd.f32 %v1063, %v1291
      %v1356 = vadd.f32 %v1068, %v1296
      %v1357 = vadd.f32 %v1071, %v1299
      %v1358 = vadd.f32 %v1076, %v1304
      %v1359 = vadd.f32 %v1079, %v1307
      %v1360 = vadd.f32 %v1084, %v1312
      %v1361 = vadd.f32 %v1087, %v1315
      %v1362 = vadd.f32 %v1092, %v1320
      %v1363 = vadd.f32 %v1095, %v1323
      %v1364 = vadd.f32 %v1100, %v1328
      %v1365 = vadd.f32 %v1103, %v1331
      %v1366 = vpack.c.bf16 0.0, 0.0
      %v1367 = vpack.c.bf16 %v1335, %v1334
      %v1368 = vpack.c.bf16 %v1337, %v1336
      %v1369 = vpack.c.bf16 %v1339, %v1338
      %v1370 = vpack.c.bf16 %v1341, %v1340
      %v1371 = vpack.c.bf16 %v1343, %v1342
      %v1372 = vpack.c.bf16 %v1345, %v1344
      %v1373 = vpack.c.bf16 %v1347, %v1346
      %v1374 = vpack.c.bf16 %v1349, %v1348
      %v1375 = vpack.c.bf16 %v1351, %v1350
      %v1376 = vpack.c.bf16 %v1353, %v1352
      %v1377 = vpack.c.bf16 %v1355, %v1354
      %v1378 = vpack.c.bf16 %v1357, %v1356
      %v1379 = vpack.c.bf16 %v1359, %v1358
      %v1380 = vpack.c.bf16 %v1361, %v1360
      %v1381 = vpack.c.bf16 %v1363, %v1362
      %v1382 = vpack.c.bf16 %v1365, %v1364
      %vm1383 = vcmask 15360
      %v1385 = vsel %vm1383, %v1367, 0
      %v1388 = vsel %vm1383, %v1368, 0
      %v1391 = vsel %vm1383, %v1369, 0
      %v1394 = vsel %vm1383, %v1370, 0
      %v1397 = vsel %vm1383, %v1371, 0
      %v1400 = vsel %vm1383, %v1372, 0
      %v1403 = vsel %vm1383, %v1373, 0
      %v1406 = vsel %vm1383, %v1374, 0
      %v1409 = vsel %vm1383, %v1375, 0
      %v1412 = vsel %vm1383, %v1376, 0
      %v1415 = vsel %vm1383, %v1377, 0
      %v1418 = vsel %vm1383, %v1378, 0
      %v1421 = vsel %vm1383, %v1379, 0
      %v1424 = vsel %vm1383, %v1380, 0
      %v1427 = vsel %vm1383, %v1381, 0
      %v1430 = vsel %vm1383, %v1382, 0
      %vm1432 = vcmask 1040384
      %v1434 = vsel %vm1432, %v445, 0
      %1436 = vmatprep.subr.bf16.mxu0 0
      %1437 = vmatpush1.bf16.msra.mxu0 %v1434
      %1438 = vmatprep.subr.bf16.mxu0 0
      %1439 = vmatpush1.bf16.msra.mxu0 0
      %1440 = vmatprep.subr.bf16.mxu0 0
      %1441 = vmatpush1.bf16.msra.mxu0 0
      %1442 = vmatprep.subr.bf16.mxu0 0
      %1443 = vmatpush1.bf16.msra.mxu0 0
      %1444 = vmatprep.subr.bf16.mxu0 0
      %1445 = vmatpush1.bf16.msra.mxu0 0
      %1446 = vmatprep.subr.bf16.mxu0 0
      %1447 = vmatpush1.bf16.msra.mxu0 0
      %1448 = vmatprep.subr.bf16.mxu0 0
      %1449 = vmatpush1.bf16.msra.mxu0 0
      %1450 = vmatprep.subr.bf16.mxu0 0
      %1451 = vmatpush1.bf16.msra.mxu0 0
      %1452 = vmatprep.subr.bf16.mxu0 0
      %1453 = vmatpush1.bf16.msra.mxu0 0
      %1454 = vmatprep.subr.bf16.mxu0 0
      %1455 = vmatpush1.bf16.msra.mxu0 0
      %1456 = vmatprep.subr.bf16.mxu0 0
      %1457 = vmatpush1.bf16.msra.mxu0 0
      %1458 = vmatprep.subr.bf16.mxu0 0
      %1459 = vmatpush1.bf16.msra.mxu0 0
      %1460 = vmatprep.subr.bf16.mxu0 0
      %1461 = vmatpush1.bf16.msra.mxu0 0
      %1462 = vmatprep.subr.bf16.mxu0 0
      %1463 = vmatpush1.bf16.msra.mxu0 0
      %1464 = vmatprep.subr.bf16.mxu0 0
      %1465 = vmatpush1.bf16.msra.mxu0 0
      %1466 = vmatprep.subr.bf16.mxu0 0
      %1467 = vmatpush1.bf16.msra.mxu0 0
      %1468 = vmatprep.mubr.bf16.mxu0 0
      %1469 = vmatmul.mubr.bf16.gmra.mrb[0].mxu0 %v1385
      %v1470 = vpop.f32.mrb[0].mxu0
      %v1471 = vadd.f32 0.0, %v1470
      %v1472 = vpop.f32.mrb[0].mxu0
      %v1473 = vpop.f32.mrb[0].mxu0
      %v1474 = vadd.f32 0.0, %v1473
      %v1475 = vpop.f32.mrb[0].mxu0
      %1476 = vmatprep.mubr.bf16.mxu0 0
      %1477 = vmatmul.mubr.bf16.gmra.mrb[0].mxu0 %v1388
      %v1478 = vpop.f32.mrb[0].mxu0
      %v1479 = vadd.f32 0.0, %v1478
      %v1480 = vpop.f32.mrb[0].mxu0
      %v1481 = vpop.f32.mrb[0].mxu0
      %v1482 = vadd.f32 0.0, %v1481
      %v1483 = vpop.f32.mrb[0].mxu0
      %1484 = vmatprep.mubr.bf16.mxu0 0
      %1485 = vmatmul.mubr.bf16.gmra.mrb[0].mxu0 %v1391
      %v1486 = vpop.f32.mrb[0].mxu0
      %v1487 = vadd.f32 0.0, %v1486
      %v1488 = vpop.f32.mrb[0].mxu0
      %v1489 = vpop.f32.mrb[0].mxu0
      %v1490 = vadd.f32 0.0, %v1489
      %v1491 = vpop.f32.mrb[0].mxu0
      %1492 = vmatprep.mubr.bf16.mxu0 0
      %1493 = vmatmul.mubr.bf16.gmra.mrb[0].mxu0 %v1394
      %v1494 = vpop.f32.mrb[0].mxu0
      %v1495 = vadd.f32 0.0, %v1494
      %v1496 = vpop.f32.mrb[0].mxu0
      %v1497 = vpop.f32.mrb[0].mxu0
      %v1498 = vadd.f32 0.0, %v1497
      %v1499 = vpop.f32.mrb[0].mxu0
      %1500 = vmatprep.mubr.bf16.mxu0 0
      %1501 = vmatmul.mubr.bf16.gmra.mrb[0].mxu0 %v1397
      %v1502 = vpop.f32.mrb[0].mxu0
      %v1503 = vadd.f32 0.0, %v1502
      %v1504 = vpop.f32.mrb[0].mxu0
      %v1505 = vpop.f32.mrb[0].mxu0
      %v1506 = vadd.f32 0.0, %v1505
      %v1507 = vpop.f32.mrb[0].mxu0
      %1508 = vmatprep.mubr.bf16.mxu0 0
      %1509 = vmatmul.mubr.bf16.gmra.mrb[0].mxu0 %v1400
      %v1510 = vpop.f32.mrb[0].mxu0
      %v1511 = vadd.f32 0.0, %v1510
      %v1512 = vpop.f32.mrb[0].mxu0
      %v1513 = vpop.f32.mrb[0].mxu0
      %v1514 = vadd.f32 0.0, %v1513
      %v1515 = vpop.f32.mrb[0].mxu0
      %1516 = vmatprep.mubr.bf16.mxu0 0
      %1517 = vmatmul.mubr.bf16.gmra.mrb[0].mxu0 %v1403
      %v1518 = vpop.f32.mrb[0].mxu0
      %v1519 = vadd.f32 0.0, %v1518
      %v1520 = vpop.f32.mrb[0].mxu0
      %v1521 = vpop.f32.mrb[0].mxu0
      %v1522 = vadd.f32 0.0, %v1521
      %v1523 = vpop.f32.mrb[0].mxu0
      %1524 = vmatprep.mubr.bf16.mxu0 0
      %1525 = vmatmul.mubr.bf16.gmra.mrb[0].mxu0 %v1406
      %v1526 = vpop.f32.mrb[0].mxu0
      %v1527 = vadd.f32 0.0, %v1526
      %v1528 = vpop.f32.mrb[0].mxu0
      %v1529 = vpop.f32.mrb[0].mxu0
      %v1530 = vadd.f32 0.0, %v1529
      %v1531 = vpop.f32.mrb[0].mxu0
      %1532 = vmatprep.mubr.bf16.mxu0 0
      %1533 = vmatmul.mubr.bf16.gmra.mrb[0].mxu0 %v1409
      %v1534 = vpop.f32.mrb[0].mxu0
      %v1535 = vadd.f32 0.0, %v1534
      %v1536 = vpop.f32.mrb[0].mxu0
      %v1537 = vpop.f32.mrb[0].mxu0
      %v1538 = vadd.f32 0.0, %v1537
      %v1539 = vpop.f32.mrb[0].mxu0
      %1540 = vmatprep.mubr.bf16.mxu0 0
      %1541 = vmatmul.mubr.bf16.gmra.mrb[0].mxu0 %v1412
      %v1542 = vpop.f32.mrb[0].mxu0
      %v1543 = vadd.f32 0.0, %v1542
      %v1544 = vpop.f32.mrb[0].mxu0
      %v1545 = vpop.f32.mrb[0].mxu0
      %v1546 = vadd.f32 0.0, %v1545
      %v1547 = vpop.f32.mrb[0].mxu0
      %1548 = vmatprep.mubr.bf16.mxu0 0
      %1549 = vmatmul.mubr.bf16.gmra.mrb[0].mxu0 %v1415
      %v1550 = vpop.f32.mrb[0].mxu0
      %v1551 = vadd.f32 0.0, %v1550
      %v1552 = vpop.f32.mrb[0].mxu0
      %v1553 = vpop.f32.mrb[0].mxu0
      %v1554 = vadd.f32 0.0, %v1553
      %v1555 = vpop.f32.mrb[0].mxu0
      %1556 = vmatprep.mubr.bf16.mxu0 0
      %1557 = vmatmul.mubr.bf16.gmra.mrb[0].mxu0 %v1418
      %v1558 = vpop.f32.mrb[0].mxu0
      %v1559 = vadd.f32 0.0, %v1558
      %v1560 = vpop.f32.mrb[0].mxu0
      %v1561 = vpop.f32.mrb[0].mxu0
      %v1562 = vadd.f32 0.0, %v1561
      %v1563 = vpop.f32.mrb[0].mxu0
      %1564 = vmatprep.mubr.bf16.mxu0 0
      %1565 = vmatmul.mubr.bf16.gmra.mrb[0].mxu0 %v1421
      %v1566 = vpop.f32.mrb[0].mxu0
      %v1567 = vadd.f32 0.0, %v1566
      %v1568 = vpop.f32.mrb[0].mxu0
      %v1569 = vpop.f32.mrb[0].mxu0
      %v1570 = vadd.f32 0.0, %v1569
      %v1571 = vpop.f32.mrb[0].mxu0
      %1572 = vmatprep.mubr.bf16.mxu0 0
      %1573 = vmatmul.mubr.bf16.gmra.mrb[0].mxu0 %v1424
      %v1574 = vpop.f32.mrb[0].mxu0
      %v1575 = vadd.f32 0.0, %v1574
      %v1576 = vpop.f32.mrb[0].mxu0
      %v1577 = vpop.f32.mrb[0].mxu0
      %v1578 = vadd.f32 0.0, %v1577
      %v1579 = vpop.f32.mrb[0].mxu0
      %1580 = vmatprep.mubr.bf16.mxu0 0
      %1581 = vmatmul.mubr.bf16.gmra.mrb[0].mxu0 %v1427
      %v1582 = vpop.f32.mrb[0].mxu0
      %v1583 = vadd.f32 0.0, %v1582
      %v1584 = vpop.f32.mrb[0].mxu0
      %v1585 = vpop.f32.mrb[0].mxu0
      %v1586 = vadd.f32 0.0, %v1585
      %v1587 = vpop.f32.mrb[0].mxu0
      %1588 = vmatprep.mubr.bf16.mxu0 0
      %1589 = vmatmul.mubr.bf16.gmra.mrb[0].mxu0 %v1430
      %v1590 = vpop.f32.mrb[0].mxu0
      %v1591 = vadd.f32 0.0, %v1590
      %v1592 = vpop.f32.mrb[0].mxu0
      %v1593 = vpop.f32.mrb[0].mxu0
      %v1594 = vadd.f32 0.0, %v1593
      %v1595 = vpop.f32.mrb[0].mxu0
      %1596 = vdwg.mxu0
      %v1598 = vsel %vm1383, %v1366, 0
      %v1601 = vsel %vm1432, %v444, 0
      %1603 = vmatprep.subr.bf16.mxu0 0
      %1604 = vmatpush1.bf16.msra.mxu0 %v1601
      %1605 = vmatprep.subr.bf16.mxu0 0
      %1606 = vmatpush1.bf16.msra.mxu0 0
      %1607 = vmatprep.subr.bf16.mxu0 0
      %1608 = vmatpush1.bf16.msra.mxu0 0
      %1609 = vmatprep.subr.bf16.mxu0 0
      %1610 = vmatpush1.bf16.msra.mxu0 0
      %1611 = vmatprep.subr.bf16.mxu0 0
      %1612 = vmatpush1.bf16.msra.mxu0 0
      %1613 = vmatprep.subr.bf16.mxu0 0
      %1614 = vmatpush1.bf16.msra.mxu0 0
      %1615 = vmatprep.subr.bf16.mxu0 0
      %1616 = vmatpush1.bf16.msra.mxu0 0
      %1617 = vmatprep.subr.bf16.mxu0 0
      %1618 = vmatpush1.bf16.msra.mxu0 0
      %1619 = vmatprep.subr.bf16.mxu0 0
      %1620 = vmatpush1.bf16.msra.mxu0 0
      %1621 = vmatprep.subr.bf16.mxu0 0
      %1622 = vmatpush1.bf16.msra.mxu0 0
      %1623 = vmatprep.subr.bf16.mxu0 0
      %1624 = vmatpush1.bf16.msra.mxu0 0
      %1625 = vmatprep.subr.bf16.mxu0 0
      %1626 = vmatpush1.bf16.msra.mxu0 0
      %1627 = vmatprep.subr.bf16.mxu0 0
      %1628 = vmatpush1.bf16.msra.mxu0 0
      %1629 = vmatprep.subr.bf16.mxu0 0
      %1630 = vmatpush1.bf16.msra.mxu0 0
      %1631 = vmatprep.subr.bf16.mxu0 0
      %1632 = vmatpush1.bf16.msra.mxu0 0
      %1633 = vmatprep.subr.bf16.mxu0 0
      %1634 = vmatpush1.bf16.msra.mxu0 0
      %1635 = vmatprep.mubr.bf16.mxu0 0
      %1636 = vmatmul.mubr.bf16.gmra.mrb[0].mxu0 %v1598
      %v1637 = vpop.f32.mrb[0].mxu0
      %v1638 = vadd.f32 %v1471, %v1637
      %v1639 = vpop.f32.mrb[0].mxu0
      %v1640 = vpop.f32.mrb[0].mxu0
      %v1641 = vadd.f32 %v1474, %v1640
      %v1642 = vpop.f32.mrb[0].mxu0
      %1643 = vmatprep.mubr.bf16.mxu0 0
      %1644 = vmatmul.mubr.bf16.gmra.mrb[0].mxu0 %v1385
      %v1645 = vpop.f32.mrb[0].mxu0
      %v1646 = vadd.f32 %v1479, %v1645
      %v1647 = vpop.f32.mrb[0].mxu0
      %v1648 = vpop.f32.mrb[0].mxu0
      %v1649 = vadd.f32 %v1482, %v1648
      %v1650 = vpop.f32.mrb[0].mxu0
      %1651 = vmatprep.mubr.bf16.mxu0 0
      %1652 = vmatmul.mubr.bf16.gmra.mrb[0].mxu0 %v1388
      %v1653 = vpop.f32.mrb[0].mxu0
      %v1654 = vadd.f32 %v1487, %v1653
      %v1655 = vpop.f32.mrb[0].mxu0
      %v1656 = vpop.f32.mrb[0].mxu0
      %v1657 = vadd.f32 %v1490, %v1656
      %v1658 = vpop.f32.mrb[0].mxu0
      %1659 = vmatprep.mubr.bf16.mxu0 0
      %1660 = vmatmul.mubr.bf16.gmra.mrb[0].mxu0 %v1391
      %v1661 = vpop.f32.mrb[0].mxu0
      %v1662 = vadd.f32 %v1495, %v1661
      %v1663 = vpop.f32.mrb[0].mxu0
      %v1664 = vpop.f32.mrb[0].mxu0
      %v1665 = vadd.f32 %v1498, %v1664
      %v1666 = vpop.f32.mrb[0].mxu0
      %1667 = vmatprep.mubr.bf16.mxu0 0
      %1668 = vmatmul.mubr.bf16.gmra.mrb[0].mxu0 %v1394
      %v1669 = vpop.f32.mrb[0].mxu0
      %v1670 = vadd.f32 %v1503, %v1669
      %v1671 = vpop.f32.mrb[0].mxu0
      %v1672 = vpop.f32.mrb[0].mxu0
      %v1673 = vadd.f32 %v1506, %v1672
      %v1674 = vpop.f32.mrb[0].mxu0
      %1675 = vmatprep.mubr.bf16.mxu0 0
      %1676 = vmatmul.mubr.bf16.gmra.mrb[0].mxu0 %v1397
      %v1677 = vpop.f32.mrb[0].mxu0
      %v1678 = vadd.f32 %v1511, %v1677
      %v1679 = vpop.f32.mrb[0].mxu0
      %v1680 = vpop.f32.mrb[0].mxu0
      %v1681 = vadd.f32 %v1514, %v1680
      %v1682 = vpop.f32.mrb[0].mxu0
      %1683 = vmatprep.mubr.bf16.mxu0 0
      %1684 = vmatmul.mubr.bf16.gmra.mrb[0].mxu0 %v1400
      %v1685 = vpop.f32.mrb[0].mxu0
      %v1686 = vadd.f32 %v1519, %v1685
      %v1687 = vpop.f32.mrb[0].mxu0
      %v1688 = vpop.f32.mrb[0].mxu0
      %v1689 = vadd.f32 %v1522, %v1688
      %v1690 = vpop.f32.mrb[0].mxu0
      %1691 = vmatprep.mubr.bf16.mxu0 0
      %1692 = vmatmul.mubr.bf16.gmra.mrb[0].mxu0 %v1403
      %v1693 = vpop.f32.mrb[0].mxu0
      %v1694 = vadd.f32 %v1527, %v1693
      %v1695 = vpop.f32.mrb[0].mxu0
      %v1696 = vpop.f32.mrb[0].mxu0
      %v1697 = vadd.f32 %v1530, %v1696
      %v1698 = vpop.f32.mrb[0].mxu0
      %1699 = vmatprep.mubr.bf16.mxu0 0
      %1700 = vmatmul.mubr.bf16.gmra.mrb[0].mxu0 %v1406
      %v1701 = vpop.f32.mrb[0].mxu0
      %v1702 = vadd.f32 %v1535, %v1701
      %v1703 = vpop.f32.mrb[0].mxu0
      %v1704 = vpop.f32.mrb[0].mxu0
      %v1705 = vadd.f32 %v1538, %v1704
      %v1706 = vpop.f32.mrb[0].mxu0
      %1707 = vmatprep.mubr.bf16.mxu0 0
      %1708 = vmatmul.mubr.bf16.gmra.mrb[0].mxu0 %v1409
      %v1709 = vpop.f32.mrb[0].mxu0
      %v1710 = vadd.f32 %v1543, %v1709
      %v1711 = vpop.f32.mrb[0].mxu0
      %v1712 = vpop.f32.mrb[0].mxu0
      %v1713 = vadd.f32 %v1546, %v1712
      %v1714 = vpop.f32.mrb[0].mxu0
      %1715 = vmatprep.mubr.bf16.mxu0 0
      %1716 = vmatmul.mubr.bf16.gmra.mrb[0].mxu0 %v1412
      %v1717 = vpop.f32.mrb[0].mxu0
      %v1718 = vadd.f32 %v1551, %v1717
      %v1719 = vpop.f32.mrb[0].mxu0
      %v1720 = vpop.f32.mrb[0].mxu0
      %v1721 = vadd.f32 %v1554, %v1720
      %v1722 = vpop.f32.mrb[0].mxu0
      %1723 = vmatprep.mubr.bf16.mxu0 0
      %1724 = vmatmul.mubr.bf16.gmra.mrb[0].mxu0 %v1415
      %v1725 = vpop.f32.mrb[0].mxu0
      %v1726 = vadd.f32 %v1559, %v1725
      %v1727 = vpop.f32.mrb[0].mxu0
      %v1728 = vpop.f32.mrb[0].mxu0
      %v1729 = vadd.f32 %v1562, %v1728
      %v1730 = vpop.f32.mrb[0].mxu0
      %1731 = vmatprep.mubr.bf16.mxu0 0
      %1732 = vmatmul.mubr.bf16.gmra.mrb[0].mxu0 %v1418
      %v1733 = vpop.f32.mrb[0].mxu0
      %v1734 = vadd.f32 %v1567, %v1733
      %v1735 = vpop.f32.mrb[0].mxu0
      %v1736 = vpop.f32.mrb[0].mxu0
      %v1737 = vadd.f32 %v1570, %v1736
      %v1738 = vpop.f32.mrb[0].mxu0
      %1739 = vmatprep.mubr.bf16.mxu0 0
      %1740 = vmatmul.mubr.bf16.gmra.mrb[0].mxu0 %v1421
      %v1741 = vpop.f32.mrb[0].mxu0
      %v1742 = vadd.f32 %v1575, %v1741
      %v1743 = vpop.f32.mrb[0].mxu0
      %v1744 = vpop.f32.mrb[0].mxu0
      %v1745 = vadd.f32 %v1578, %v1744
      %v1746 = vpop.f32.mrb[0].mxu0
      %1747 = vmatprep.mubr.bf16.mxu0 0
      %1748 = vmatmul.mubr.bf16.gmra.mrb[0].mxu0 %v1424
      %v1749 = vpop.f32.mrb[0].mxu0
      %v1750 = vadd.f32 %v1583, %v1749
      %v1751 = vpop.f32.mrb[0].mxu0
      %v1752 = vpop.f32.mrb[0].mxu0
      %v1753 = vadd.f32 %v1586, %v1752
      %v1754 = vpop.f32.mrb[0].mxu0
      %1755 = vmatprep.mubr.bf16.mxu0 0
      %1756 = vmatmul.mubr.bf16.gmra.mrb[0].mxu0 %v1427
      %v1757 = vpop.f32.mrb[0].mxu0
      %v1758 = vadd.f32 %v1591, %v1757
      %v1759 = vpop.f32.mrb[0].mxu0
      %v1760 = vpop.f32.mrb[0].mxu0
      %v1761 = vadd.f32 %v1594, %v1760
      %v1762 = vpop.f32.mrb[0].mxu0
      %1763 = vdwg.mxu0
      %v1765 = vsel %vm1432, %v446, 0
      %1767 = vmatprep.subr.bf16.mxu0 0
      %1768 = vmatpush1.bf16.msra.mxu0 %v1765
      %1769 = vmatprep.subr.bf16.mxu0 0
      %1770 = vmatpush1.bf16.msra.mxu0 0
      %1771 = vmatprep.subr.bf16.mxu0 0
      %1772 = vmatpush1.bf16.msra.mxu0 0
      %1773 = vmatprep.subr.bf16.mxu0 0
      %1774 = vmatpush1.bf16.msra.mxu0 0
      %1775 = vmatprep.subr.bf16.mxu0 0
      %1776 = vmatpush1.bf16.msra.mxu0 0
      %1777 = vmatprep.subr.bf16.mxu0 0
      %1778 = vmatpush1.bf16.msra.mxu0 0
      %1779 = vmatprep.subr.bf16.mxu0 0
      %1780 = vmatpush1.bf16.msra.mxu0 0
      %1781 = vmatprep.subr.bf16.mxu0 0
      %1782 = vmatpush1.bf16.msra.mxu0 0
      %1783 = vmatprep.subr.bf16.mxu0 0
      %1784 = vmatpush1.bf16.msra.mxu0 0
      %1785 = vmatprep.subr.bf16.mxu0 0
      %1786 = vmatpush1.bf16.msra.mxu0 0
      %1787 = vmatprep.subr.bf16.mxu0 0
      %1788 = vmatpush1.bf16.msra.mxu0 0
      %1789 = vmatprep.subr.bf16.mxu0 0
      %1790 = vmatpush1.bf16.msra.mxu0 0
      %1791 = vmatprep.subr.bf16.mxu0 0
      %1792 = vmatpush1.bf16.msra.mxu0 0
      %1793 = vmatprep.subr.bf16.mxu0 0
      %1794 = vmatpush1.bf16.msra.mxu0 0
      %1795 = vmatprep.subr.bf16.mxu0 0
      %1796 = vmatpush1.bf16.msra.mxu0 0
      %1797 = vmatprep.subr.bf16.mxu0 0
      %1798 = vmatpush1.bf16.msra.mxu0 0
      %1799 = vmatprep.mubr.bf16.mxu0 0
      %1800 = vmatmul.mubr.bf16.gmra.mrb[0].mxu0 %v1388
      %v1801 = vpop.f32.mrb[0].mxu0
      %v1802 = vadd.f32 0.0, %v1801
      %v1803 = vpop.f32.mrb[0].mxu0
      %v1804 = vpop.f32.mrb[0].mxu0
      %v1805 = vadd.f32 0.0, %v1804
      %v1806 = vpop.f32.mrb[0].mxu0
      %1807 = vmatprep.mubr.bf16.mxu0 0
      %1808 = vmatmul.mubr.bf16.gmra.mrb[0].mxu0 %v1391
      %v1809 = vpop.f32.mrb[0].mxu0
      %v1810 = vadd.f32 0.0, %v1809
      %v1811 = vpop.f32.mrb[0].mxu0
      %v1812 = vpop.f32.mrb[0].mxu0
      %v1813 = vadd.f32 0.0, %v1812
      %v1814 = vpop.f32.mrb[0].mxu0
      %1815 = vmatprep.mubr.bf16.mxu0 0
      %1816 = vmatmul.mubr.bf16.gmra.mrb[0].mxu0 %v1394
      %v1817 = vpop.f32.mrb[0].mxu0
      %v1818 = vadd.f32 0.0, %v1817
      %v1819 = vpop.f32.mrb[0].mxu0
      %v1820 = vpop.f32.mrb[0].mxu0
      %v1821 = vadd.f32 0.0, %v1820
      %v1822 = vpop.f32.mrb[0].mxu0
      %1823 = vmatprep.mubr.bf16.mxu0 0
      %1824 = vmatmul.mubr.bf16.gmra.mrb[0].mxu0 %v1397
      %v1825 = vpop.f32.mrb[0].mxu0
      %v1826 = vadd.f32 0.0, %v1825
      %v1827 = vpop.f32.mrb[0].mxu0
      %v1828 = vpop.f32.mrb[0].mxu0
      %v1829 = vadd.f32 0.0, %v1828
      %v1830 = vpop.f32.mrb[0].mxu0
      %1831 = vmatprep.mubr.bf16.mxu0 0
      %1832 = vmatmul.mubr.bf16.gmra.mrb[0].mxu0 %v1400
      %v1833 = vpop.f32.mrb[0].mxu0
      %v1834 = vadd.f32 0.0, %v1833
      %v1835 = vpop.f32.mrb[0].mxu0
      %v1836 = vpop.f32.mrb[0].mxu0
      %v1837 = vadd.f32 0.0, %v1836
      %v1838 = vpop.f32.mrb[0].mxu0
      %1839 = vmatprep.mubr.bf16.mxu0 0
      %1840 = vmatmul.mubr.bf16.gmra.mrb[0].mxu0 %v1403
      %v1841 = vpop.f32.mrb[0].mxu0
      %v1842 = vadd.f32 0.0, %v1841
      %v1843 = vpop.f32.mrb[0].mxu0
      %v1844 = vpop.f32.mrb[0].mxu0
      %v1845 = vadd.f32 0.0, %v1844
      %v1846 = vpop.f32.mrb[0].mxu0
      %1847 = vmatprep.mubr.bf16.mxu0 0
      %1848 = vmatmul.mubr.bf16.gmra.mrb[0].mxu0 %v1406
      %v1849 = vpop.f32.mrb[0].mxu0
      %v1850 = vadd.f32 0.0, %v1849
      %v1851 = vpop.f32.mrb[0].mxu0
      %v1852 = vpop.f32.mrb[0].mxu0
      %v1853 = vadd.f32 0.0, %v1852
      %v1854 = vpop.f32.mrb[0].mxu0
      %1855 = vmatprep.mubr.bf16.mxu0 0
      %1856 = vmatmul.mubr.bf16.gmra.mrb[0].mxu0 %v1409
      %v1857 = vpop.f32.mrb[0].mxu0
      %v1858 = vadd.f32 0.0, %v1857
      %v1859 = vpop.f32.mrb[0].mxu0
      %v1860 = vpop.f32.mrb[0].mxu0
      %v1861 = vadd.f32 0.0, %v1860
      %v1862 = vpop.f32.mrb[0].mxu0
      %1863 = vmatprep.mubr.bf16.mxu0 0
      %1864 = vmatmul.mubr.bf16.gmra.mrb[0].mxu0 %v1412
      %v1865 = vpop.f32.mrb[0].mxu0
      %v1866 = vadd.f32 0.0, %v1865
      %v1867 = vpop.f32.mrb[0].mxu0
      %v1868 = vpop.f32.mrb[0].mxu0
      %v1869 = vadd.f32 0.0, %v1868
      %v1870 = vpop.f32.mrb[0].mxu0
      %1871 = vmatprep.mubr.bf16.mxu0 0
      %1872 = vmatmul.mubr.bf16.gmra.mrb[0].mxu0 %v1415
      %v1873 = vpop.f32.mrb[0].mxu0
      %v1874 = vadd.f32 0.0, %v1873
      %v1875 = vpop.f32.mrb[0].mxu0
      %v1876 = vpop.f32.mrb[0].mxu0
      %v1877 = vadd.f32 0.0, %v1876
      %v1878 = vpop.f32.mrb[0].mxu0
      %1879 = vmatprep.mubr.bf16.mxu0 0
      %1880 = vmatmul.mubr.bf16.gmra.mrb[0].mxu0 %v1418
      %v1881 = vpop.f32.mrb[0].mxu0
      %v1882 = vadd.f32 0.0, %v1881
      %v1883 = vpop.f32.mrb[0].mxu0
      %v1884 = vpop.f32.mrb[0].mxu0
      %v1885 = vadd.f32 0.0, %v1884
      %v1886 = vpop.f32.mrb[0].mxu0
      %1887 = vmatprep.mubr.bf16.mxu0 0
      %1888 = vmatmul.mubr.bf16.gmra.mrb[0].mxu0 %v1421
      %v1889 = vpop.f32.mrb[0].mxu0
      %v1890 = vadd.f32 0.0, %v1889
      %v1891 = vpop.f32.mrb[0].mxu0
      %v1892 = vpop.f32.mrb[0].mxu0
      %v1893 = vadd.f32 0.0, %v1892
      %v1894 = vpop.f32.mrb[0].mxu0
      %1895 = vmatprep.mubr.bf16.mxu0 0
      %1896 = vmatmul.mubr.bf16.gmra.mrb[0].mxu0 %v1424
      %v1897 = vpop.f32.mrb[0].mxu0
      %v1898 = vadd.f32 0.0, %v1897
      %v1899 = vpop.f32.mrb[0].mxu0
      %v1900 = vpop.f32.mrb[0].mxu0
      %v1901 = vadd.f32 0.0, %v1900
      %v1902 = vpop.f32.mrb[0].mxu0
      %1903 = vmatprep.mubr.bf16.mxu0 0
      %1904 = vmatmul.mubr.bf16.gmra.mrb[0].mxu0 %v1427
      %v1905 = vpop.f32.mrb[0].mxu0
      %v1906 = vadd.f32 0.0, %v1905
      %v1907 = vpop.f32.mrb[0].mxu0
      %v1908 = vpop.f32.mrb[0].mxu0
      %v1909 = vadd.f32 0.0, %v1908
      %v1910 = vpop.f32.mrb[0].mxu0
      %1911 = vmatprep.mubr.bf16.mxu0 0
      %1912 = vmatmul.mubr.bf16.gmra.mrb[0].mxu0 %v1430
      %v1913 = vpop.f32.mrb[0].mxu0
      %v1914 = vadd.f32 0.0, %v1913
      %v1915 = vpop.f32.mrb[0].mxu0
      %v1916 = vpop.f32.mrb[0].mxu0
      %v1917 = vadd.f32 0.0, %v1916
      %v1918 = vpop.f32.mrb[0].mxu0
      %1919 = vmatprep.mubr.bf16.mxu0 0
      %1920 = vmatmul.mubr.bf16.gmra.mrb[0].mxu0 %v1598
      %v1921 = vpop.f32.mrb[0].mxu0
      %v1922 = vadd.f32 0.0, %v1921
      %v1923 = vpop.f32.mrb[0].mxu0
      %v1924 = vpop.f32.mrb[0].mxu0
      %v1925 = vadd.f32 0.0, %v1924
      %v1926 = vpop.f32.mrb[0].mxu0
      %1927 = vdwg.mxu0
      %v1928 = vadd.f32 %v1638, %v1802
      %v1929 = vadd.f32 %v1641, %v1805
      %v1930 = vadd.f32 %v1646, %v1810
      %v1931 = vadd.f32 %v1649, %v1813
      %v1932 = vadd.f32 %v1654, %v1818
      %v1933 = vadd.f32 %v1657, %v1821
      %v1934 = vadd.f32 %v1662, %v1826
      %v1935 = vadd.f32 %v1665, %v1829
      %v1936 = vadd.f32 %v1670, %v1834
      %v1937 = vadd.f32 %v1673, %v1837
      %v1938 = vadd.f32 %v1678, %v1842
      %v1939 = vadd.f32 %v1681, %v1845
      %v1940 = vadd.f32 %v1686, %v1850
      %v1941 = vadd.f32 %v1689, %v1853
      %v1942 = vadd.f32 %v1694, %v1858
      %v1943 = vadd.f32 %v1697, %v1861
      %v1944 = vadd.f32 %v1702, %v1866
      %v1945 = vadd.f32 %v1705, %v1869
      %v1946 = vadd.f32 %v1710, %v1874
      %v1947 = vadd.f32 %v1713, %v1877
      %v1948 = vadd.f32 %v1718, %v1882
      %v1949 = vadd.f32 %v1721, %v1885
      %v1950 = vadd.f32 %v1726, %v1890
      %v1951 = vadd.f32 %v1729, %v1893
      %v1952 = vadd.f32 %v1734, %v1898
      %v1953 = vadd.f32 %v1737, %v1901
      %v1954 = vadd.f32 %v1742, %v1906
      %v1955 = vadd.f32 %v1745, %v1909
      %v1956 = vadd.f32 %v1750, %v1914
      %v1957 = vadd.f32 %v1753, %v1917
      %v1958 = vadd.f32 %v1758, %v1922
      %v1959 = vadd.f32 %v1761, %v1925
      %v1960 = vsel %vm680, %v1928, 0.0
      %v1961 = vsel %vm680, %v1929, 0.0
      %v1962 = vadd.f32 %v1960, %v1961
      %v1963 = vsel %vm680, %v1930, 0.0
      %v1964 = vadd.f32 %v1962, %v1963
      %v1965 = vsel %vm680, %v1931, 0.0
      %v1966 = vadd.f32 %v1964, %v1965
      %v1967 = vsel %vm680, %v1932, 0.0
      %v1968 = vadd.f32 %v1966, %v1967
      %v1969 = vsel %vm680, %v1933, 0.0
      %v1970 = vadd.f32 %v1968, %v1969
      %v1971 = vsel %vm680, %v1934, 0.0
      %v1972 = vadd.f32 %v1970, %v1971
      %v1973 = vsel %vm680, %v1935, 0.0
      %v1974 = vadd.f32 %v1972, %v1973
      %v1975 = vsel %vm680, %v1936, 0.0
      %v1976 = vadd.f32 %v1974, %v1975
      %v1977 = vsel %vm680, %v1937, 0.0
      %v1978 = vadd.f32 %v1976, %v1977
      %v1979 = vsel %vm680, %v1938, 0.0
      %v1980 = vadd.f32 %v1978, %v1979
      %v1981 = vsel %vm680, %v1939, 0.0
      %v1982 = vadd.f32 %v1980, %v1981
      %v1983 = vsel %vm680, %v1940, 0.0
      %v1984 = vadd.f32 %v1982, %v1983
      %v1985 = vsel %vm680, %v1941, 0.0
      %v1986 = vadd.f32 %v1984, %v1985
      %v1987 = vsel %vm680, %v1942, 0.0
      %v1988 = vadd.f32 %v1986, %v1987
      %v1989 = vsel %vm680, %v1943, 0.0
      %v1990 = vadd.f32 %v1988, %v1989
      %v1991 = vsel %vm680, %v1944, 0.0
      %v1992 = vadd.f32 %v1990, %v1991
      %v1993 = vsel %vm680, %v1945, 0.0
      %v1994 = vadd.f32 %v1992, %v1993
      %v1995 = vsel %vm680, %v1946, 0.0
      %v1996 = vadd.f32 %v1994, %v1995
      %v1997 = vsel %vm680, %v1947, 0.0
      %v1998 = vadd.f32 %v1996, %v1997
      %v1999 = vsel %vm680, %v1948, 0.0
      %v2000 = vadd.f32 %v1998, %v1999
      %v2001 = vsel %vm680, %v1949, 0.0
      %v2002 = vadd.f32 %v2000, %v2001
      %v2003 = vsel %vm680, %v1950, 0.0
      %v2004 = vadd.f32 %v2002, %v2003
      %v2005 = vsel %vm680, %v1951, 0.0
      %v2006 = vadd.f32 %v2004, %v2005
      %v2007 = vsel %vm680, %v1952, 0.0
      %v2008 = vadd.f32 %v2006, %v2007
      %v2009 = vsel %vm680, %v1953, 0.0
      %v2010 = vadd.f32 %v2008, %v2009
      %v2011 = vsel %vm680, %v1954, 0.0
      %v2012 = vadd.f32 %v2010, %v2011
      %v2013 = vsel %vm680, %v1955, 0.0
      %v2014 = vadd.f32 %v2012, %v2013
      %v2015 = vsel %vm680, %v1956, 0.0
      %v2016 = vadd.f32 %v2014, %v2015
      %v2017 = vsel %vm680, %v1957, 0.0
      %v2018 = vadd.f32 %v2016, %v2017
      %v2019 = vsel %vm680, %v1958, 0.0
      %v2020 = vadd.f32 %v2018, %v2019
      %v2021 = vsel %vm680, %v1959, 0.0
      %v2022 = vadd.f32 %v2020, %v2021
      %v2023 = vrot.slane %v2022, 4
      %v2024 = vadd.f32 %v2022, %v2023
      %v2025 = vrot.slane %v2024, 2
      %v2026 = vadd.f32 %v2024, %v2025
      %v2027 = vrot.slane %v2026, 1
      %v2028 = vadd.f32 %v2026, %v2027
      %v2029 = vmul.f32 %v1928, %v1928
      %v2030 = vmul.f32 %v1929, %v1929
      %v2031 = vmul.f32 %v1930, %v1930
      %v2032 = vmul.f32 %v1931, %v1931
      %v2033 = vmul.f32 %v1932, %v1932
      %v2034 = vmul.f32 %v1933, %v1933
      %v2035 = vmul.f32 %v1934, %v1934
      %v2036 = vmul.f32 %v1935, %v1935
      %v2037 = vmul.f32 %v1936, %v1936
      %v2038 = vmul.f32 %v1937, %v1937
      %v2039 = vmul.f32 %v1938, %v1938
      %v2040 = vmul.f32 %v1939, %v1939
      %v2041 = vmul.f32 %v1940, %v1940
      %v2042 = vmul.f32 %v1941, %v1941
      %v2043 = vmul.f32 %v1942, %v1942
      %v2044 = vmul.f32 %v1943, %v1943
      %v2045 = vmul.f32 %v1944, %v1944
      %v2046 = vmul.f32 %v1945, %v1945
      %v2047 = vmul.f32 %v1946, %v1946
      %v2048 = vmul.f32 %v1947, %v1947
      %v2049 = vmul.f32 %v1948, %v1948
      %v2050 = vmul.f32 %v1949, %v1949
      %v2051 = vmul.f32 %v1950, %v1950
      %v2052 = vmul.f32 %v1951, %v1951
      %v2053 = vmul.f32 %v1952, %v1952
      %v2054 = vmul.f32 %v1953, %v1953
      %v2055 = vmul.f32 %v1954, %v1954
      %v2056 = vmul.f32 %v1955, %v1955
      %v2057 = vmul.f32 %v1956, %v1956
      %v2058 = vmul.f32 %v1957, %v1957
      %v2059 = vmul.f32 %v1958, %v1958
      %v2060 = vmul.f32 %v1959, %v1959
      %v2061 = vsel %vm680, %v2029, 0.0
      %v2062 = vsel %vm680, %v2030, 0.0
      %v2063 = vadd.f32 %v2061, %v2062
      %v2064 = vsel %vm680, %v2031, 0.0
      %v2065 = vadd.f32 %v2063, %v2064
      %v2066 = vsel %vm680, %v2032, 0.0
      %v2067 = vadd.f32 %v2065, %v2066
      %v2068 = vsel %vm680, %v2033, 0.0
      %v2069 = vadd.f32 %v2067, %v2068
      %v2070 = vsel %vm680, %v2034, 0.0
      %v2071 = vadd.f32 %v2069, %v2070
      %v2072 = vsel %vm680, %v2035, 0.0
      %v2073 = vadd.f32 %v2071, %v2072
      %v2074 = vsel %vm680, %v2036, 0.0
      %v2075 = vadd.f32 %v2073, %v2074
      %v2076 = vsel %vm680, %v2037, 0.0
      %v2077 = vadd.f32 %v2075, %v2076
      %v2078 = vsel %vm680, %v2038, 0.0
      %v2079 = vadd.f32 %v2077, %v2078
      %v2080 = vsel %vm680, %v2039, 0.0
      %v2081 = vadd.f32 %v2079, %v2080
      %v2082 = vsel %vm680, %v2040, 0.0
      %v2083 = vadd.f32 %v2081, %v2082
      %v2084 = vsel %vm680, %v2041, 0.0
      %v2085 = vadd.f32 %v2083, %v2084
      %v2086 = vsel %vm680, %v2042, 0.0
      %v2087 = vadd.f32 %v2085, %v2086
      %v2088 = vsel %vm680, %v2043, 0.0
      %v2089 = vadd.f32 %v2087, %v2088
      %v2090 = vsel %vm680, %v2044, 0.0
      %v2091 = vadd.f32 %v2089, %v2090
      %v2092 = vsel %vm680, %v2045, 0.0
      %v2093 = vadd.f32 %v2091, %v2092
      %v2094 = vsel %vm680, %v2046, 0.0
      %v2095 = vadd.f32 %v2093, %v2094
      %v2096 = vsel %vm680, %v2047, 0.0
      %v2097 = vadd.f32 %v2095, %v2096
      %v2098 = vsel %vm680, %v2048, 0.0
      %v2099 = vadd.f32 %v2097, %v2098
      %v2100 = vsel %vm680, %v2049, 0.0
      %v2101 = vadd.f32 %v2099, %v2100
      %v2102 = vsel %vm680, %v2050, 0.0
      %v2103 = vadd.f32 %v2101, %v2102
      %v2104 = vsel %vm680, %v2051, 0.0
      %v2105 = vadd.f32 %v2103, %v2104
      %v2106 = vsel %vm680, %v2052, 0.0
      %v2107 = vadd.f32 %v2105, %v2106
      %v2108 = vsel %vm680, %v2053, 0.0
      %v2109 = vadd.f32 %v2107, %v2108
      %v2110 = vsel %vm680, %v2054, 0.0
      %v2111 = vadd.f32 %v2109, %v2110
      %v2112 = vsel %vm680, %v2055, 0.0
      %v2113 = vadd.f32 %v2111, %v2112
      %v2114 = vsel %vm680, %v2056, 0.0
      %v2115 = vadd.f32 %v2113, %v2114
      %v2116 = vsel %vm680, %v2057, 0.0
      %v2117 = vadd.f32 %v2115, %v2116
      %v2118 = vsel %vm680, %v2058, 0.0
      %v2119 = vadd.f32 %v2117, %v2118
      %v2120 = vsel %vm680, %v2059, 0.0
      %v2121 = vadd.f32 %v2119, %v2120
      %v2122 = vsel %vm680, %v2060, 0.0
      %v2123 = vadd.f32 %v2121, %v2122
      %v2124 = vrot.slane %v2123, 4
      %v2125 = vadd.f32 %v2123, %v2124
      %v2126 = vrot.slane %v2125, 2
      %v2127 = vadd.f32 %v2125, %v2126
      %v2128 = vrot.slane %v2127, 1
      %v2129 = vadd.f32 %v2127, %v2128
      %v2130 = vsel %vm1432, %v2028, %v2129
      %vm2131 = vcmask 25600
      %2132 = vst.msk [vmem:[%s265] sm:$0x3] %vm2131, %v2130
      %v2133 = vpack.c.bf16 %v1929, %v1928
      %v2134 = vpack.c.bf16 %v1931, %v1930
      %v2135 = vpack.c.bf16 %v1933, %v1932
      %v2136 = vpack.c.bf16 %v1935, %v1934
      %v2137 = vpack.c.bf16 %v1937, %v1936
      %v2138 = vpack.c.bf16 %v1939, %v1938
      %v2139 = vpack.c.bf16 %v1941, %v1940
      %v2140 = vpack.c.bf16 %v1943, %v1942
      %v2141 = vpack.c.bf16 %v1945, %v1944
      %v2142 = vpack.c.bf16 %v1947, %v1946
      %v2143 = vpack.c.bf16 %v1949, %v1948
      %v2144 = vpack.c.bf16 %v1951, %v1950
      %v2145 = vpack.c.bf16 %v1953, %v1952
      %v2146 = vpack.c.bf16 %v1955, %v1954
      %v2147 = vpack.c.bf16 %v1957, %v1956
      %v2148 = vpack.c.bf16 %v1959, %v1958
      %v2165 = vunpack.c.l.b16 %v2133
      %v2166 = vunpack.c.h.b16 %v2133
      %v2167 = vunpack.c.l.b16 %v2134
      %v2168 = vunpack.c.h.b16 %v2134
      %v2169 = vunpack.c.l.b16 %v2135
      %v2170 = vunpack.c.h.b16 %v2135
      %v2171 = vunpack.c.l.b16 %v2136
      %v2172 = vunpack.c.h.b16 %v2136
      %v2173 = vunpack.c.l.b16 %v2137
      %v2174 = vunpack.c.h.b16 %v2137
      %v2175 = vunpack.c.l.b16 %v2138
      %v2176 = vunpack.c.h.b16 %v2138
      %v2177 = vunpack.c.l.b16 %v2139
      %v2178 = vunpack.c.h.b16 %v2139
      %v2179 = vunpack.c.l.b16 %v2140
      %v2180 = vunpack.c.h.b16 %v2140
      %v2181 = vunpack.c.l.b16 %v2141
      %v2182 = vunpack.c.h.b16 %v2141
      %v2183 = vunpack.c.l.b16 %v2142
      %v2184 = vunpack.c.h.b16 %v2142
      %v2185 = vunpack.c.l.b16 %v2143
      %v2186 = vunpack.c.h.b16 %v2143
      %v2187 = vunpack.c.l.b16 %v2144
      %v2188 = vunpack.c.h.b16 %v2144
      %v2189 = vunpack.c.l.b16 %v2145
      %v2190 = vunpack.c.h.b16 %v2145
      %v2191 = vunpack.c.l.b16 %v2146
      %v2192 = vunpack.c.h.b16 %v2146
      %v2193 = vunpack.c.l.b16 %v2147
      %v2194 = vunpack.c.h.b16 %v2147
      %v2195 = vunpack.c.l.b16 %v2148
      %v2196 = vunpack.c.h.b16 %v2148
      %v2197 = vpack.c.b16 %v2165, %v2165
      %v2198 = vpack.c.b16 %v2166, %v2166
      %v2199 = vpack.c.b16 %v2167, %v2167
      %v2200 = vpack.c.b16 %v2168, %v2168
      %v2201 = vpack.c.b16 %v2169, %v2169
      %v2202 = vpack.c.b16 %v2170, %v2170
      %v2203 = vpack.c.b16 %v2171, %v2171
      %v2204 = vpack.c.b16 %v2172, %v2172
      %v2205 = vpack.c.b16 %v2173, %v2173
      %v2206 = vpack.c.b16 %v2174, %v2174
      %v2207 = vpack.c.b16 %v2175, %v2175
      %v2208 = vpack.c.b16 %v2176, %v2176
      %v2209 = vpack.c.b16 %v2177, %v2177
      %v2210 = vpack.c.b16 %v2178, %v2178
      %v2211 = vpack.c.b16 %v2179, %v2179
      %v2212 = vpack.c.b16 %v2180, %v2180
      %v2213 = vpack.c.b16 %v2181, %v2181
      %v2214 = vpack.c.b16 %v2182, %v2182
      %v2215 = vpack.c.b16 %v2183, %v2183
      %v2216 = vpack.c.b16 %v2184, %v2184
      %v2217 = vpack.c.b16 %v2185, %v2185
      %v2218 = vpack.c.b16 %v2186, %v2186
      %v2219 = vpack.c.b16 %v2187, %v2187
      %v2220 = vpack.c.b16 %v2188, %v2188
      %v2221 = vpack.c.b16 %v2189, %v2189
      %v2222 = vpack.c.b16 %v2190, %v2190
      %v2223 = vpack.c.b16 %v2191, %v2191
      %v2224 = vpack.c.b16 %v2192, %v2192
      %v2225 = vpack.c.b16 %v2193, %v2193
      %v2226 = vpack.c.b16 %v2194, %v2194
      %v2227 = vpack.c.b16 %v2195, %v2195
      %v2228 = vpack.c.b16 %v2196, %v2196
      %vm2261 = vcmask 27648
      %2262 = vst.msk [vmem:[%s260] sm:$0xf] %vm2261, %v2197
      %2263 = vst.msk [vmem:[%s260 + $0x4] sm:$0xf] %vm2261, %v2198
      %2264 = vst.msk [vmem:[%s260 + $0x8] sm:$0xf] %vm2261, %v2199
      %2265 = vst.msk [vmem:[%s260 + $0xc] sm:$0xf] %vm2261, %v2200
      %2266 = vst.msk [vmem:[%s260 + $0x10] sm:$0xf] %vm2261, %v2201
      %2267 = vst.msk [vmem:[%s260 + $0x14] sm:$0xf] %vm2261, %v2202
      %2268 = vst.msk [vmem:[%s260 + $0x18] sm:$0xf] %vm2261, %v2203
      %2269 = vst.msk [vmem:[%s260 + $0x1c] sm:$0xf] %vm2261, %v2204
      %2270 = vst.msk [vmem:[%s260 + $0x20] sm:$0xf] %vm2261, %v2205
      %2271 = vst.msk [vmem:[%s260 + $0x24] sm:$0xf] %vm2261, %v2206
      %2272 = vst.msk [vmem:[%s260 + $0x28] sm:$0xf] %vm2261, %v2207
      %2273 = vst.msk [vmem:[%s260 + $0x2c] sm:$0xf] %vm2261, %v2208
      %2274 = vst.msk [vmem:[%s260 + $0x30] sm:$0xf] %vm2261, %v2209
      %2275 = vst.msk [vmem:[%s260 + $0x34] sm:$0xf] %vm2261, %v2210
      %2276 = vst.msk [vmem:[%s260 + $0x38] sm:$0xf] %vm2261, %v2211
      %2277 = vst.msk [vmem:[%s260 + $0x3c] sm:$0xf] %vm2261, %v2212
      %2278 = vst.msk [vmem:[%s260 + $0x40] sm:$0xf] %vm2261, %v2213
      %2279 = vst.msk [vmem:[%s260 + $0x44] sm:$0xf] %vm2261, %v2214
      %2280 = vst.msk [vmem:[%s260 + $0x48] sm:$0xf] %vm2261, %v2215
      %2281 = vst.msk [vmem:[%s260 + $0x4c] sm:$0xf] %vm2261, %v2216
      %2282 = vst.msk [vmem:[%s260 + $0x50] sm:$0xf] %vm2261, %v2217
      %2283 = vst.msk [vmem:[%s260 + $0x54] sm:$0xf] %vm2261, %v2218
      %2284 = vst.msk [vmem:[%s260 + $0x58] sm:$0xf] %vm2261, %v2219
      %2285 = vst.msk [vmem:[%s260 + $0x5c] sm:$0xf] %vm2261, %v2220
      %2286 = vst.msk [vmem:[%s260 + $0x60] sm:$0xf] %vm2261, %v2221
      %2287 = vst.msk [vmem:[%s260 + $0x64] sm:$0xf] %vm2261, %v2222
      %2288 = vst.msk [vmem:[%s260 + $0x68] sm:$0xf] %vm2261, %v2223
      %2289 = vst.msk [vmem:[%s260 + $0x6c] sm:$0xf] %vm2261, %v2224
      %2290 = vst.msk [vmem:[%s260 + $0x70] sm:$0xf] %vm2261, %v2225
      %2291 = vst.msk [vmem:[%s260 + $0x74] sm:$0xf] %vm2261, %v2226
      %2292 = vst.msk [vmem:[%s260 + $0x78] sm:$0xf] %vm2261, %v2227
      %2293 = vst.msk [vmem:[%s260 + $0x7c] sm:$0xf] %vm2261, %v2228
      %s2294 = smul.u32 32, %s18
      %p2295 = scmp.lt.s32.totalorder %s2294, 63
      %s2296 = scalar_select %p2295, %s2294, 63
      %s2297 = smul.addr %s2296, 4
      %s2298 = scalar_lea.vmem %s5, %s2297
      %p2299 = scmp.lt.s32.totalorder %s18, 1
      %s2300 = scalar_select %p2299, %s18, 1
      %s2301 = smul.addr %s2300, 2
      %s2302 = scalar_lea.vmem %s6, %s2301
      // Predicated region
      $region41: #{_lambda_.4} parent=39 // pred_check
        %p2303 = pneg %p146
      $region42: #{_lambda_.4} parent=39 // pred_check_branch
        %2305 = sbr.rel (%p2303) target = $region44
      $region43: #{_lambda_.4} parent=39 // pred_region
        %s2306 = smul.u32 32, %s18
      $region44: #{_lambda_.4} parent=39 // pred_fallthru
        _
      // Predicated region
      $region45: #{_lambda_.4} parent=39 // pred_check
        %p2307 = pneg %p172
      $region46: #{_lambda_.4} parent=39 // pred_check_branch
        %2309 = sbr.rel (%p2307) target = $region48
      $region47: #{_lambda_.4} parent=39 // pred_region
        _
      $region48: #{_lambda_.4} parent=39 // pred_fallthru
        _
    $region40: #{_lambda_.4} parent=5 // pred_fallthru
      _
    %p2310 = scmp.le.s32.totalorder 2, %s13
    // Predicated region
    $region49: #{_lambda_.4} parent=5 // pred_check
      %p2311 = pneg %p2310
    $region50: #{_lambda_.4} parent=5 // pred_check_branch
      %2313 = sbr.rel (%p2311) target = $region52
    $region51: #{_lambda_.4} parent=5 // pred_region
      %s2314 = ssub.s32 %s13, 2
      // Predicated region
      $region53: #{_lambda_.4} parent=51 // pred_check
        %p2315 = pneg %p152
      $region54: #{_lambda_.4} parent=51 // pred_check_branch
        %2317 = sbr.rel (%p2315) target = $region56
      $region55: #{_lambda_.4} parent=51 // pred_region
        %s2318 = smul.u32 32, %s19
        %p2319 = scmp.lt.s32.totalorder %s2318, 63
        %s2320 = scalar_select %p2319, %s2318, 63
        %s2321 = smul.addr %s2320, 4
        %s2322 = scalar_lea.vmem %s5, %s2321
      $region56: #{_lambda_.4} parent=51 // pred_fallthru
        _
      // Predicated region
      $region57: #{_lambda_.4} parent=51 // pred_check
        %p2323 = pneg %p178
      $region58: #{_lambda_.4} parent=51 // pred_check_branch
        %2325 = sbr.rel (%p2323) target = $region60
      $region59: #{_lambda_.4} parent=51 // pred_region
        %p2326 = scmp.lt.s32.totalorder %s19, 1
        %s2327 = scalar_select %p2326, %s19, 1
        %s2328 = smul.addr %s2327, 2
        %s2329 = scalar_lea.vmem %s6, %s2328
      $region60: #{_lambda_.4} parent=51 // pred_fallthru
        _
    $region52: #{_lambda_.4} parent=5 // pred_fallthru
      _
  $region6: #{_lambda_.4} parent=0 // loop_footer
    %s17 = sadd.s32 1, %s13
  $region7: #{_lambda_.4} parent=0 // loop_footer_branch
    %12 = sbr.rel target = $region3
  $region8: #{_lambda_.4} parent=0 // loop_exit
    _

</llo_original>
